<compile_context>
chip_gen: v5e
topology: v5e:2x2
jax: 0.10.0
libtpu: 0.0.40
codegen_flags: <defaults>
</compile_context>

<pallas_src>
import jax
import jax.numpy as jnp
from jax.experimental import pallas as pl
from jax.experimental.pallas import tpu as pltpu


# ----------------------------------------------------------------------------
# Fused kernel: maxpool(2) -> conv3x3+BN+ReLU -> conv3x3+BN+ReLU
# ----------------------------------------------------------------------------
def _down_kernel(x_ref, w1_ref, s1_ref, b1_ref, w2_ref, s2_ref, b2_ref,
                 o_ref, pad1_ref, pad2_ref):
    # Per grid step (= one batch element):
    #   x_ref   : (1, 2*Ho, Wo, 2*Cin) f32  input, W-pool pairs folded on lanes
    #   w1_ref  : (9, Cin,  Cmid) bf16      per-tap weights, conv1
    #   w2_ref  : (9, Cmid, Cout) bf16      per-tap weights, conv2
    #   s*/b*   : (1, C) f32                folded BatchNorm scale / bias
    #   o_ref   : (1, Ho, Wo, Cout) f32
    #   pad1_ref: (Ho+2, Wo+2, Cin)  bf16   VMEM scratch (pooled + zero halo)
    #   pad2_ref: (Ho+2, Wo+2, Cmid) bf16   VMEM scratch (conv1 act + zero halo)
    Ho = o_ref.shape[1]
    Wo = o_ref.shape[2]
    Cin = pad1_ref.shape[2]
    Cmid = pad2_ref.shape[2]
    Cout = o_ref.shape[3]

    def zero_border(pad_ref):
        # Only the 1-pixel halo border needs zeroing; the interior is fully
        # overwritten every grid step.
        H2, W2, C = pad_ref.shape
        zrow = jnp.zeros((1, W2, C), pad_ref.dtype)
        pad_ref[0:1, :, :] = zrow
        pad_ref[H2 - 1:H2, :, :] = zrow
        zcol = jnp.zeros((H2, 1, C), pad_ref.dtype)
        pad_ref[:, 0:1, :] = zcol
        pad_ref[:, W2 - 1:W2, :] = zcol

    # ---- MaxPool2d(2): W-pairs are adjacent on the lane axis (folded by a
    # free contiguous reshape in the wrapper), H-pairs on rows.  All pooling
    # math in f32.
    x = x_ref[0]                                            # (2*Ho, Wo, 2*Cin)
    xw = jnp.maximum(x[:, :, :Cin], x[:, :, Cin:])          # pool along W
    pooled = jnp.max(xw.reshape(Ho, 2, Wo, Cin), axis=1)    # pool along H

    # ---- conv1 input: bf16 halo buffer resident in VMEM.
    zero_border(pad1_ref)
    pad1_ref[1:Ho + 1, 1:Wo + 1, :] = pooled.astype(pad1_ref.dtype)

    def conv3x3_bn_relu(pad_ref, w_ref, s_ref, b_ref):
        # Nine per-tap bf16 matmuls accumulated into one f32 accumulator
        # (no im2col patch blowup).
        cin = pad_ref.shape[2]
        acc = None
        for kh in range(3):
            for kw in range(3):
                slab = pad_ref[kh:kh + Ho, kw:kw + Wo, :].reshape(Ho * Wo, cin)
                d = jnp.dot(slab, w_ref[kh * 3 + kw],
                            preferred_element_type=jnp.float32)
                acc = d if acc is None else acc + d
        # folded BatchNorm (eval mode) + ReLU, in f32
        return jnp.maximum(acc * s_ref[...] + b_ref[...], 0.0)

    y1 = conv3x3_bn_relu(pad1_ref, w1_ref, s1_ref, b1_ref)  # (Ho*Wo, Cmid) f32

    zero_border(pad2_ref)
    pad2_ref[1:Ho + 1, 1:Wo + 1, :] = (
        y1.reshape(Ho, Wo, Cmid).astype(pad2_ref.dtype))

    y2 = conv3x3_bn_relu(pad2_ref, w2_ref, s2_ref, b2_ref)  # (Ho*Wo, Cout) f32
    o_ref[...] = y2.reshape(1, Ho, Wo, Cout).astype(o_ref.dtype)


# ----------------------------------------------------------------------------
# Pallas wrapper
# ----------------------------------------------------------------------------
def _down_call(x2, w1, s1, b1, w2, s2, b2, Ho, Wo):
    N = x2.shape[0]
    Cin = x2.shape[3] // 2
    Cmid = w1.shape[2]
    Cout = w2.shape[2]

    return pl.pallas_call(
        _down_kernel,
        out_shape=jax.ShapeDtypeStruct((N, Ho, Wo, Cout), jnp.float32),
        grid=(N,),
        in_specs=[
            pl.BlockSpec((1, 2 * Ho, Wo, 2 * Cin), lambda n: (n, 0, 0, 0)),
            pl.BlockSpec(w1.shape, lambda n: (0, 0, 0)),
            pl.BlockSpec(s1.shape, lambda n: (0, 0)),
            pl.BlockSpec(b1.shape, lambda n: (0, 0)),
            pl.BlockSpec(w2.shape, lambda n: (0, 0, 0)),
            pl.BlockSpec(s2.shape, lambda n: (0, 0)),
            pl.BlockSpec(b2.shape, lambda n: (0, 0)),
        ],
        out_specs=pl.BlockSpec((1, Ho, Wo, Cout), lambda n: (n, 0, 0, 0)),
        scratch_shapes=[
            pltpu.VMEM((Ho + 2, Wo + 2, Cin), jnp.bfloat16),
            pltpu.VMEM((Ho + 2, Wo + 2, Cmid), jnp.bfloat16),
        ],
        compiler_params=pltpu.CompilerParams(
            dimension_semantics=("parallel",)),
    )(x2, w1, s1, b1, w2, s2, b2)


@jax.jit
def down_forward(x_nchw, params):
    """PyTorch `Down.forward` semantics: NCHW in, NCHW out."""
    N, Cin, Hin, Win = x_nchw.shape
    Ho, Wo = Hin // 2, Win // 2                      # MaxPool2d floors odd dims
    x = jnp.transpose(x_nchw, (0, 2, 3, 1))          # NCHW -> NHWC (channels on lanes)
    x = x[:, :2 * Ho, :2 * Wo, :]
    x2 = x.reshape(N, 2 * Ho, Wo, 2 * Cin)           # fold W-pool pairs onto lanes (free)
    y = _down_call(x2, params["w1"], params["s1"], params["b1"],
                   params["w2"], params["s2"], params["b2"], Ho, Wo)
    return jnp.transpose(y, (0, 3, 1, 2))            # NHWC -> NCHW


# ----------------------------------------------------------------------------
# Parameter setup (deterministic, synthetic)
# ----------------------------------------------------------------------------
def make_down_params(key, in_channels, out_channels):
    mid = out_channels  # DoubleConv default: mid_channels = out_channels
    ks = jax.random.split(key, 10)
    eps = 1e-5

    def bn_fold(kg, kb, km, kv, c):
        gamma = 1.0 + 0.1 * jax.random.normal(kg, (c,), jnp.float32)
        beta = 0.1 * jax.random.normal(kb, (c,), jnp.float32)
        mean = 0.1 * jax.random.normal(km, (c,), jnp.float32)
        var = 1.0 + 0.2 * jax.random.uniform(kv, (c,), jnp.float32)
        scale = gamma / jnp.sqrt(var + eps)
        bias = beta - mean * scale
        return scale.reshape(1, c), bias.reshape(1, c)

    # conv weights in PyTorch (Cout, Cin, 3, 3) layout -> bf16 per-tap (9, Cin, Cout)
    def to_taps(w_oihw):
        co, ci = w_oihw.shape[0], w_oihw.shape[1]
        w_hwio = jnp.transpose(w_oihw, (2, 3, 1, 0))        # (3,3,Cin,Cout)
        return w_hwio.reshape(9, ci, co).astype(jnp.bfloat16)

    w1_oihw = 0.1 * jax.random.normal(ks[0], (mid, in_channels, 3, 3), jnp.float32)
    w2_oihw = 0.1 * jax.random.normal(ks[1], (out_channels, mid, 3, 3), jnp.float32)

    s1, b1 = bn_fold(ks[2], ks[3], ks[4], ks[5], mid)
    s2, b2 = bn_fold(ks[6], ks[7], ks[8], ks[9], out_channels)
    return dict(w1=to_taps(w1_oihw), s1=s1, b1=b1,
                w2=to_taps(w2_oihw), s2=s2, b2=b2)


# ----------------------------------------------------------------------------
# Pure-JAX reference (same bf16-rounded weights; f32 activations everywhere)
# ----------------------------------------------------------------------------
def down_reference(x_nchw, params):
    x = jnp.transpose(x_nchw, (0, 2, 3, 1))  # NHWC
    N, H, W, C = x.shape
    x = x.reshape(N, H // 2, 2, W // 2, 2, C).max(axis=(2, 4))

    def cbr(x, w_taps, s, b):
        ci = w_taps.shape[1]
        co = w_taps.shape[2]
        w = w_taps.astype(jnp.float32).reshape(3, 3, ci, co)  # HWIO
        y = jax.lax.conv_general_dilated(
            x, w, window_strides=(1, 1), padding="SAME",
            dimension_numbers=("NHWC", "HWIO", "NHWC"))
        return jnp.maximum(y * s[0] + b[0], 0.0)

    x = cbr(x, params["w1"], params["s1"], params["b1"])
    x = cbr(x, params["w2"], params["s2"], params["b2"])
    return jnp.transpose(x, (0, 3, 1, 2))


if __name__ == "__main__":
    key = jax.random.PRNGKey(0)
    kx, kp = jax.random.split(key)

    N, Cin, Hin, Win = 2, 4, 16, 16
    Cout = 8
    x = jax.random.normal(kx, (N, Cin, Hin, Win), jnp.float32)
    params = make_down_params(kp, Cin, Cout)

    out = jax.block_until_ready(down_forward(x, params))
    assert out.shape == (N, Cout, Hin // 2, Win // 2), out.shape

    ref = down_reference(x, params)
    max_err = float(jnp.max(jnp.abs(out - ref)))
    # bf16 activations/weights on the MXU inside the kernel -> small rounding error
    assert jnp.allclose(out, ref, atol=5e-2, rtol=5e-2), max_err

    print("KERNEL_OK")
</pallas_src>

<mosaic_0001>
module attributes {stable_mosaic.version = 11 : i64} {
  func.func @_down_kernel(%arg0: i32, %arg1: memref<1x16x8x8xf32, #tpu.memory_space<vmem>>, %arg2: memref<9x4x8xbf16, #tpu.memory_space<vmem>>, %arg3: memref<1x8xf32, #tpu.memory_space<vmem>>, %arg4: memref<1x8xf32, #tpu.memory_space<vmem>>, %arg5: memref<9x8x8xbf16, #tpu.memory_space<vmem>>, %arg6: memref<1x8xf32, #tpu.memory_space<vmem>>, %arg7: memref<1x8xf32, #tpu.memory_space<vmem>>, %arg8: memref<1x8x8x8xf32, #tpu.memory_space<vmem>>, %arg9: memref<10x10x4xbf16, #tpu.memory_space<vmem>>, %arg10: memref<10x10x8xbf16, #tpu.memory_space<vmem>>) attributes {dimension_semantics = [#tpu.dimension_semantics<parallel>], iteration_bounds = array<i64: 2>, scalar_prefetch = 0 : i64, scratch_operands = 2 : i64, tpu.core_type = #tpu.core_type<tc>, window_params = [{transform_indices = @transform_0, window_bounds = array<i64: 1, 16, 8, 8>}, {pipeline_mode = #tpu.pipeline_mode<synchronous>, transform_indices = @transform_1, window_bounds = array<i64: 9, 4, 8>}, {pipeline_mode = #tpu.pipeline_mode<synchronous>, transform_indices = @transform_2, window_bounds = array<i64: 1, 8>}, {pipeline_mode = #tpu.pipeline_mode<synchronous>, transform_indices = @transform_3, window_bounds = array<i64: 1, 8>}, {pipeline_mode = #tpu.pipeline_mode<synchronous>, transform_indices = @transform_4, window_bounds = array<i64: 9, 8, 8>}, {pipeline_mode = #tpu.pipeline_mode<synchronous>, transform_indices = @transform_5, window_bounds = array<i64: 1, 8>}, {pipeline_mode = #tpu.pipeline_mode<synchronous>, transform_indices = @transform_6, window_bounds = array<i64: 1, 8>}, {transform_indices = @transform_7, window_bounds = array<i64: 1, 8, 8, 8>}]} {
    %c0 = arith.constant 0 : index
    %c0_0 = arith.constant 0 : index
    %c0_1 = arith.constant 0 : index
    %c0_2 = arith.constant 0 : index
    %0 = vector.load %arg1[%c0, %c0_0, %c0_1, %c0_2] : memref<1x16x8x8xf32, #tpu.memory_space<vmem>>, vector<1x16x8x8xf32>
    %1 = vector.shape_cast %0 : vector<1x16x8x8xf32> to vector<16x8x8xf32>
    %2 = vector.extract_strided_slice %1 {offsets = [0, 0, 0], sizes = [16, 8, 4], strides = [1, 1, 1]} : vector<16x8x8xf32> to vector<16x8x4xf32>
    %3 = vector.extract_strided_slice %1 {offsets = [0, 0, 4], sizes = [16, 8, 4], strides = [1, 1, 1]} : vector<16x8x8xf32> to vector<16x8x4xf32>
    %4 = arith.maximumf %2, %3 : vector<16x8x4xf32>
    %5 = vector.shape_cast %4 : vector<16x8x4xf32> to vector<8x2x8x4xf32>
    %cst = arith.constant dense<0xFF800000> : vector<8x8x4xf32>
    %6 = vector.multi_reduction <maximumf>, %5, %cst [1] : vector<8x2x8x4xf32> to vector<8x8x4xf32>
    %cst_3 = arith.constant 0.000000e+00 : bf16
    %7 = vector.broadcast %cst_3 : bf16 to vector<1x10x4xbf16>
    %c0_4 = arith.constant 0 : index
    %c0_5 = arith.constant 0 : index
    %c0_6 = arith.constant 0 : index
    %8 = vector.load %arg9[%c0_4, %c0_5, %c0_6] : memref<10x10x4xbf16, #tpu.memory_space<vmem>>, vector<1x10x4xbf16>
    tpu.vector_store %arg9[%c0_4, %c0_5, %c0_6], %7 {strides = array<i32>} : memref<10x10x4xbf16, #tpu.memory_space<vmem>>, vector<1x10x4xbf16>,
    %c9 = arith.constant 9 : index
    %c0_7 = arith.constant 0 : index
    %c0_8 = arith.constant 0 : index
    %9 = vector.load %arg9[%c9, %c0_7, %c0_8] : memref<10x10x4xbf16, #tpu.memory_space<vmem>>, vector<1x10x4xbf16>
    tpu.vector_store %arg9[%c9, %c0_7, %c0_8], %7 {strides = array<i32>} : memref<10x10x4xbf16, #tpu.memory_space<vmem>>, vector<1x10x4xbf16>,
    %cst_9 = arith.constant 0.000000e+00 : bf16
    %10 = vector.broadcast %cst_9 : bf16 to vector<10x1x4xbf16>
    %c0_10 = arith.constant 0 : index
    %c0_11 = arith.constant 0 : index
    %c0_12 = arith.constant 0 : index
    %11 = vector.load %arg9[%c0_10, %c0_11, %c0_12] : memref<10x10x4xbf16, #tpu.memory_space<vmem>>, vector<10x1x4xbf16>
    tpu.vector_store %arg9[%c0_10, %c0_11, %c0_12], %10 {strides = array<i32>} : memref<10x10x4xbf16, #tpu.memory_space<vmem>>, vector<10x1x4xbf16>,
    %c0_13 = arith.constant 0 : index
    %c9_14 = arith.constant 9 : index
    %c0_15 = arith.constant 0 : index
    %12 = vector.load %arg9[%c0_13, %c9_14, %c0_15] : memref<10x10x4xbf16, #tpu.memory_space<vmem>>, vector<10x1x4xbf16>
    tpu.vector_store %arg9[%c0_13, %c9_14, %c0_15], %10 {strides = array<i32>} : memref<10x10x4xbf16, #tpu.memory_space<vmem>>, vector<10x1x4xbf16>,
    %13 = arith.truncf %6 : vector<8x8x4xf32> to vector<8x8x4xbf16>
    %c1 = arith.constant 1 : index
    %c1_16 = arith.constant 1 : index
    %c0_17 = arith.constant 0 : index
    %14 = vector.load %arg9[%c1, %c1_16, %c0_17] : memref<10x10x4xbf16, #tpu.memory_space<vmem>>, vector<8x8x4xbf16>
    tpu.vector_store %arg9[%c1, %c1_16, %c0_17], %13 {strides = array<i32>} : memref<10x10x4xbf16, #tpu.memory_space<vmem>>, vector<8x8x4xbf16>,
    %c0_18 = arith.constant 0 : index
    %c0_19 = arith.constant 0 : index
    %c0_20 = arith.constant 0 : index
    %15 = vector.load %arg9[%c0_18, %c0_19, %c0_20] : memref<10x10x4xbf16, #tpu.memory_space<vmem>>, vector<8x8x4xbf16>
    %16 = vector.shape_cast %15 : vector<8x8x4xbf16> to vector<64x4xbf16>
    %c0_21 = arith.constant 0 : index
    %c0_22 = arith.constant 0 : index
    %c0_23 = arith.constant 0 : index
    %17 = vector.load %arg2[%c0_21, %c0_22, %c0_23] : memref<9x4x8xbf16, #tpu.memory_space<vmem>>, vector<1x4x8xbf16>
    %18 = vector.shape_cast %17 : vector<1x4x8xbf16> to vector<4x8xbf16>
    %cst_24 = arith.constant dense<0.000000e+00> : vector<64x8xf32>
    %19 = tpu.matmul %16, %18, %cst_24 {dimension_numbers = #tpu.dot_dimension_numbers<[1], [0], [0], [1], [0, 0, 1, 1], [], []>} : vector<64x4xbf16>, vector<4x8xbf16>, vector<64x8xf32> -> vector<64x8xf32>
    %c0_25 = arith.constant 0 : index
    %c1_26 = arith.constant 1 : index
    %c0_27 = arith.constant 0 : index
    %20 = vector.load %arg9[%c0_25, %c1_26, %c0_27] : memref<10x10x4xbf16, #tpu.memory_space<vmem>>, vector<8x8x4xbf16>
    %21 = vector.shape_cast %20 : vector<8x8x4xbf16> to vector<64x4xbf16>
    %c1_28 = arith.constant 1 : index
    %c0_29 = arith.constant 0 : index
    %c0_30 = arith.constant 0 : index
    %22 = vector.load %arg2[%c1_28, %c0_29, %c0_30] : memref<9x4x8xbf16, #tpu.memory_space<vmem>>, vector<1x4x8xbf16>
    %23 = vector.shape_cast %22 : vector<1x4x8xbf16> to vector<4x8xbf16>
    %cst_31 = arith.constant dense<0.000000e+00> : vector<64x8xf32>
    %24 = tpu.matmul %21, %23, %cst_31 {dimension_numbers = #tpu.dot_dimension_numbers<[1], [0], [0], [1], [0, 0, 1, 1], [], []>} : vector<64x4xbf16>, vector<4x8xbf16>, vector<64x8xf32> -> vector<64x8xf32>
    %25 = arith.addf %19, %24 : vector<64x8xf32>
    %c0_32 = arith.constant 0 : index
    %c2 = arith.constant 2 : index
    %c0_33 = arith.constant 0 : index
    %26 = vector.load %arg9[%c0_32, %c2, %c0_33] : memref<10x10x4xbf16, #tpu.memory_space<vmem>>, vector<8x8x4xbf16>
    %27 = vector.shape_cast %26 : vector<8x8x4xbf16> to vector<64x4xbf16>
    %c2_34 = arith.constant 2 : index
    %c0_35 = arith.constant 0 : index
    %c0_36 = arith.constant 0 : index
    %28 = vector.load %arg2[%c2_34, %c0_35, %c0_36] : memref<9x4x8xbf16, #tpu.memory_space<vmem>>, vector<1x4x8xbf16>
    %29 = vector.shape_cast %28 : vector<1x4x8xbf16> to vector<4x8xbf16>
    %cst_37 = arith.constant dense<0.000000e+00> : vector<64x8xf32>
    %30 = tpu.matmul %27, %29, %cst_37 {dimension_numbers = #tpu.dot_dimension_numbers<[1], [0], [0], [1], [0, 0, 1, 1], [], []>} : vector<64x4xbf16>, vector<4x8xbf16>, vector<64x8xf32> -> vector<64x8xf32>
    %31 = arith.addf %25, %30 : vector<64x8xf32>
    %c1_38 = arith.constant 1 : index
    %c0_39 = arith.constant 0 : index
    %c0_40 = arith.constant 0 : index
    %32 = vector.load %arg9[%c1_38, %c0_39, %c0_40] : memref<10x10x4xbf16, #tpu.memory_space<vmem>>, vector<8x8x4xbf16>
    %33 = vector.shape_cast %32 : vector<8x8x4xbf16> to vector<64x4xbf16>
    %c3 = arith.constant 3 : index
    %c0_41 = arith.constant 0 : index
    %c0_42 = arith.constant 0 : index
    %34 = vector.load %arg2[%c3, %c0_41, %c0_42] : memref<9x4x8xbf16, #tpu.memory_space<vmem>>, vector<1x4x8xbf16>
    %35 = vector.shape_cast %34 : vector<1x4x8xbf16> to vector<4x8xbf16>
    %cst_43 = arith.constant dense<0.000000e+00> : vector<64x8xf32>
    %36 = tpu.matmul %33, %35, %cst_43 {dimension_numbers = #tpu.dot_dimension_numbers<[1], [0], [0], [1], [0, 0, 1, 1], [], []>} : vector<64x4xbf16>, vector<4x8xbf16>, vector<64x8xf32> -> vector<64x8xf32>
    %37 = arith.addf %31, %36 : vector<64x8xf32>
    %c1_44 = arith.constant 1 : index
    %c1_45 = arith.constant 1 : index
    %c0_46 = arith.constant 0 : index
    %38 = vector.load %arg9[%c1_44, %c1_45, %c0_46] : memref<10x10x4xbf16, #tpu.memory_space<vmem>>, vector<8x8x4xbf16>
    %39 = vector.shape_cast %38 : vector<8x8x4xbf16> to vector<64x4xbf16>
    %c4 = arith.constant 4 : index
    %c0_47 = arith.constant 0 : index
    %c0_48 = arith.constant 0 : index
    %40 = vector.load %arg2[%c4, %c0_47, %c0_48] : memref<9x4x8xbf16, #tpu.memory_space<vmem>>, vector<1x4x8xbf16>
    %41 = vector.shape_cast %40 : vector<1x4x8xbf16> to vector<4x8xbf16>
    %cst_49 = arith.constant dense<0.000000e+00> : vector<64x8xf32>
    %42 = tpu.matmul %39, %41, %cst_49 {dimension_numbers = #tpu.dot_dimension_numbers<[1], [0], [0], [1], [0, 0, 1, 1], [], []>} : vector<64x4xbf16>, vector<4x8xbf16>, vector<64x8xf32> -> vector<64x8xf32>
    %43 = arith.addf %37, %42 : vector<64x8xf32>
    %c1_50 = arith.constant 1 : index
    %c2_51 = arith.constant 2 : index
    %c0_52 = arith.constant 0 : index
    %44 = vector.load %arg9[%c1_50, %c2_51, %c0_52] : memref<10x10x4xbf16, #tpu.memory_space<vmem>>, vector<8x8x4xbf16>
    %45 = vector.shape_cast %44 : vector<8x8x4xbf16> to vector<64x4xbf16>
    %c5 = arith.constant 5 : index
    %c0_53 = arith.constant 0 : index
    %c0_54 = arith.constant 0 : index
    %46 = vector.load %arg2[%c5, %c0_53, %c0_54] : memref<9x4x8xbf16, #tpu.memory_space<vmem>>, vector<1x4x8xbf16>
    %47 = vector.shape_cast %46 : vector<1x4x8xbf16> to vector<4x8xbf16>
    %cst_55 = arith.constant dense<0.000000e+00> : vector<64x8xf32>
    %48 = tpu.matmul %45, %47, %cst_55 {dimension_numbers = #tpu.dot_dimension_numbers<[1], [0], [0], [1], [0, 0, 1, 1], [], []>} : vector<64x4xbf16>, vector<4x8xbf16>, vector<64x8xf32> -> vector<64x8xf32>
    %49 = arith.addf %43, %48 : vector<64x8xf32>
    %c2_56 = arith.constant 2 : index
    %c0_57 = arith.constant 0 : index
    %c0_58 = arith.constant 0 : index
    %50 = vector.load %arg9[%c2_56, %c0_57, %c0_58] : memref<10x10x4xbf16, #tpu.memory_space<vmem>>, vector<8x8x4xbf16>
    %51 = vector.shape_cast %50 : vector<8x8x4xbf16> to vector<64x4xbf16>
    %c6 = arith.constant 6 : index
    %c0_59 = arith.constant 0 : index
    %c0_60 = arith.constant 0 : index
    %52 = vector.load %arg2[%c6, %c0_59, %c0_60] : memref<9x4x8xbf16, #tpu.memory_space<vmem>>, vector<1x4x8xbf16>
    %53 = vector.shape_cast %52 : vector<1x4x8xbf16> to vector<4x8xbf16>
    %cst_61 = arith.constant dense<0.000000e+00> : vector<64x8xf32>
    %54 = tpu.matmul %51, %53, %cst_61 {dimension_numbers = #tpu.dot_dimension_numbers<[1], [0], [0], [1], [0, 0, 1, 1], [], []>} : vector<64x4xbf16>, vector<4x8xbf16>, vector<64x8xf32> -> vector<64x8xf32>
    %55 = arith.addf %49, %54 : vector<64x8xf32>
    %c2_62 = arith.constant 2 : index
    %c1_63 = arith.constant 1 : index
    %c0_64 = arith.constant 0 : index
    %56 = vector.load %arg9[%c2_62, %c1_63, %c0_64] : memref<10x10x4xbf16, #tpu.memory_space<vmem>>, vector<8x8x4xbf16>
    %57 = vector.shape_cast %56 : vector<8x8x4xbf16> to vector<64x4xbf16>
    %c7 = arith.constant 7 : index
    %c0_65 = arith.constant 0 : index
    %c0_66 = arith.constant 0 : index
    %58 = vector.load %arg2[%c7, %c0_65, %c0_66] : memref<9x4x8xbf16, #tpu.memory_space<vmem>>, vector<1x4x8xbf16>
    %59 = vector.shape_cast %58 : vector<1x4x8xbf16> to vector<4x8xbf16>
    %cst_67 = arith.constant dense<0.000000e+00> : vector<64x8xf32>
    %60 = tpu.matmul %57, %59, %cst_67 {dimension_numbers = #tpu.dot_dimension_numbers<[1], [0], [0], [1], [0, 0, 1, 1], [], []>} : vector<64x4xbf16>, vector<4x8xbf16>, vector<64x8xf32> -> vector<64x8xf32>
    %61 = arith.addf %55, %60 : vector<64x8xf32>
    %c2_68 = arith.constant 2 : index
    %c2_69 = arith.constant 2 : index
    %c0_70 = arith.constant 0 : index
    %62 = vector.load %arg9[%c2_68, %c2_69, %c0_70] : memref<10x10x4xbf16, #tpu.memory_space<vmem>>, vector<8x8x4xbf16>
    %63 = vector.shape_cast %62 : vector<8x8x4xbf16> to vector<64x4xbf16>
    %c8 = arith.constant 8 : index
    %c0_71 = arith.constant 0 : index
    %c0_72 = arith.constant 0 : index
    %64 = vector.load %arg2[%c8, %c0_71, %c0_72] : memref<9x4x8xbf16, #tpu.memory_space<vmem>>, vector<1x4x8xbf16>
    %65 = vector.shape_cast %64 : vector<1x4x8xbf16> to vector<4x8xbf16>
    %cst_73 = arith.constant dense<0.000000e+00> : vector<64x8xf32>
    %66 = tpu.matmul %63, %65, %cst_73 {dimension_numbers = #tpu.dot_dimension_numbers<[1], [0], [0], [1], [0, 0, 1, 1], [], []>} : vector<64x4xbf16>, vector<4x8xbf16>, vector<64x8xf32> -> vector<64x8xf32>
    %67 = arith.addf %61, %66 : vector<64x8xf32>
    %c0_74 = arith.constant 0 : index
    %c0_75 = arith.constant 0 : index
    %68 = vector.load %arg3[%c0_74, %c0_75] : memref<1x8xf32, #tpu.memory_space<vmem>>, vector<1x8xf32>
    %69 = vector.broadcast %68 : vector<1x8xf32> to vector<64x8xf32>
    %70 = arith.mulf %67, %69 : vector<64x8xf32>
    %c0_76 = arith.constant 0 : index
    %c0_77 = arith.constant 0 : index
    %71 = vector.load %arg4[%c0_76, %c0_77] : memref<1x8xf32, #tpu.memory_space<vmem>>, vector<1x8xf32>
    %72 = vector.broadcast %71 : vector<1x8xf32> to vector<64x8xf32>
    %73 = arith.addf %70, %72 : vector<64x8xf32>
    %cst_78 = arith.constant 0.000000e+00 : f32
    %74 = vector.broadcast %cst_78 : f32 to vector<64x8xf32>
    %75 = arith.maximumf %73, %74 : vector<64x8xf32>
    %cst_79 = arith.constant 0.000000e+00 : bf16
    %76 = vector.broadcast %cst_79 : bf16 to vector<1x10x8xbf16>
    %c0_80 = arith.constant 0 : index
    %c0_81 = arith.constant 0 : index
    %c0_82 = arith.constant 0 : index
    %77 = vector.load %arg10[%c0_80, %c0_81, %c0_82] : memref<10x10x8xbf16, #tpu.memory_space<vmem>>, vector<1x10x8xbf16>
    tpu.vector_store %arg10[%c0_80, %c0_81, %c0_82], %76 {strides = array<i32>} : memref<10x10x8xbf16, #tpu.memory_space<vmem>>, vector<1x10x8xbf16>,
    %c9_83 = arith.constant 9 : index
    %c0_84 = arith.constant 0 : index
    %c0_85 = arith.constant 0 : index
    %78 = vector.load %arg10[%c9_83, %c0_84, %c0_85] : memref<10x10x8xbf16, #tpu.memory_space<vmem>>, vector<1x10x8xbf16>
    tpu.vector_store %arg10[%c9_83, %c0_84, %c0_85], %76 {strides = array<i32>} : memref<10x10x8xbf16, #tpu.memory_space<vmem>>, vector<1x10x8xbf16>,
    %cst_86 = arith.constant 0.000000e+00 : bf16
    %79 = vector.broadcast %cst_86 : bf16 to vector<10x1x8xbf16>
    %c0_87 = arith.constant 0 : index
    %c0_88 = arith.constant 0 : index
    %c0_89 = arith.constant 0 : index
    %80 = vector.load %arg10[%c0_87, %c0_88, %c0_89] : memref<10x10x8xbf16, #tpu.memory_space<vmem>>, vector<10x1x8xbf16>
    tpu.vector_store %arg10[%c0_87, %c0_88, %c0_89], %79 {strides = array<i32>} : memref<10x10x8xbf16, #tpu.memory_space<vmem>>, vector<10x1x8xbf16>,
    %c0_90 = arith.constant 0 : index
    %c9_91 = arith.constant 9 : index
    %c0_92 = arith.constant 0 : index
    %81 = vector.load %arg10[%c0_90, %c9_91, %c0_92] : memref<10x10x8xbf16, #tpu.memory_space<vmem>>, vector<10x1x8xbf16>
    tpu.vector_store %arg10[%c0_90, %c9_91, %c0_92], %79 {strides = array<i32>} : memref<10x10x8xbf16, #tpu.memory_space<vmem>>, vector<10x1x8xbf16>,
    %82 = vector.shape_cast %75 : vector<64x8xf32> to vector<8x8x8xf32>
    %83 = arith.truncf %82 : vector<8x8x8xf32> to vector<8x8x8xbf16>
    %c1_93 = arith.constant 1 : index
    %c1_94 = arith.constant 1 : index
    %c0_95 = arith.constant 0 : index
    %84 = vector.load %arg10[%c1_93, %c1_94, %c0_95] : memref<10x10x8xbf16, #tpu.memory_space<vmem>>, vector<8x8x8xbf16>
    tpu.vector_store %arg10[%c1_93, %c1_94, %c0_95], %83 {strides = array<i32>} : memref<10x10x8xbf16, #tpu.memory_space<vmem>>, vector<8x8x8xbf16>,
    %c0_96 = arith.constant 0 : index
    %c0_97 = arith.constant 0 : index
    %c0_98 = arith.constant 0 : index
    %85 = vector.load %arg10[%c0_96, %c0_97, %c0_98] : memref<10x10x8xbf16, #tpu.memory_space<vmem>>, vector<8x8x8xbf16>
    %86 = vector.shape_cast %85 : vector<8x8x8xbf16> to vector<64x8xbf16>
    %c0_99 = arith.constant 0 : index
    %c0_100 = arith.constant 0 : index
    %c0_101 = arith.constant 0 : index
    %87 = vector.load %arg5[%c0_99, %c0_100, %c0_101] : memref<9x8x8xbf16, #tpu.memory_space<vmem>>, vector<1x8x8xbf16>
    %88 = vector.shape_cast %87 : vector<1x8x8xbf16> to vector<8x8xbf16>
    %cst_102 = arith.constant dense<0.000000e+00> : vector<64x8xf32>
    %89 = tpu.matmul %86, %88, %cst_102 {dimension_numbers = #tpu.dot_dimension_numbers<[1], [0], [0], [1], [0, 0, 1, 1], [], []>} : vector<64x8xbf16>, vector<8x8xbf16>, vector<64x8xf32> -> vector<64x8xf32>
    %c0_103 = arith.constant 0 : index
    %c1_104 = arith.constant 1 : index
    %c0_105 = arith.constant 0 : index
    %90 = vector.load %arg10[%c0_103, %c1_104, %c0_105] : memref<10x10x8xbf16, #tpu.memory_space<vmem>>, vector<8x8x8xbf16>
    %91 = vector.shape_cast %90 : vector<8x8x8xbf16> to vector<64x8xbf16>
    %c1_106 = arith.constant 1 : index
    %c0_107 = arith.constant 0 : index
    %c0_108 = arith.constant 0 : index
    %92 = vector.load %arg5[%c1_106, %c0_107, %c0_108] : memref<9x8x8xbf16, #tpu.memory_space<vmem>>, vector<1x8x8xbf16>
    %93 = vector.shape_cast %92 : vector<1x8x8xbf16> to vector<8x8xbf16>
    %cst_109 = arith.constant dense<0.000000e+00> : vector<64x8xf32>
    %94 = tpu.matmul %91, %93, %cst_109 {dimension_numbers = #tpu.dot_dimension_numbers<[1], [0], [0], [1], [0, 0, 1, 1], [], []>} : vector<64x8xbf16>, vector<8x8xbf16>, vector<64x8xf32> -> vector<64x8xf32>
    %95 = arith.addf %89, %94 : vector<64x8xf32>
    %c0_110 = arith.constant 0 : index
    %c2_111 = arith.constant 2 : index
    %c0_112 = arith.constant 0 : index
    %96 = vector.load %arg10[%c0_110, %c2_111, %c0_112] : memref<10x10x8xbf16, #tpu.memory_space<vmem>>, vector<8x8x8xbf16>
    %97 = vector.shape_cast %96 : vector<8x8x8xbf16> to vector<64x8xbf16>
    %c2_113 = arith.constant 2 : index
    %c0_114 = arith.constant 0 : index
    %c0_115 = arith.constant 0 : index
    %98 = vector.load %arg5[%c2_113, %c0_114, %c0_115] : memref<9x8x8xbf16, #tpu.memory_space<vmem>>, vector<1x8x8xbf16>
    %99 = vector.shape_cast %98 : vector<1x8x8xbf16> to vector<8x8xbf16>
    %cst_116 = arith.constant dense<0.000000e+00> : vector<64x8xf32>
    %100 = tpu.matmul %97, %99, %cst_116 {dimension_numbers = #tpu.dot_dimension_numbers<[1], [0], [0], [1], [0, 0, 1, 1], [], []>} : vector<64x8xbf16>, vector<8x8xbf16>, vector<64x8xf32> -> vector<64x8xf32>
    %101 = arith.addf %95, %100 : vector<64x8xf32>
    %c1_117 = arith.constant 1 : index
    %c0_118 = arith.constant 0 : index
    %c0_119 = arith.constant 0 : index
    %102 = vector.load %arg10[%c1_117, %c0_118, %c0_119] : memref<10x10x8xbf16, #tpu.memory_space<vmem>>, vector<8x8x8xbf16>
    %103 = vector.shape_cast %102 : vector<8x8x8xbf16> to vector<64x8xbf16>
    %c3_120 = arith.constant 3 : index
    %c0_121 = arith.constant 0 : index
    %c0_122 = arith.constant 0 : index
    %104 = vector.load %arg5[%c3_120, %c0_121, %c0_122] : memref<9x8x8xbf16, #tpu.memory_space<vmem>>, vector<1x8x8xbf16>
    %105 = vector.shape_cast %104 : vector<1x8x8xbf16> to vector<8x8xbf16>
    %cst_123 = arith.constant dense<0.000000e+00> : vector<64x8xf32>
    %106 = tpu.matmul %103, %105, %cst_123 {dimension_numbers = #tpu.dot_dimension_numbers<[1], [0], [0], [1], [0, 0, 1, 1], [], []>} : vector<64x8xbf16>, vector<8x8xbf16>, vector<64x8xf32> -> vector<64x8xf32>
    %107 = arith.addf %101, %106 : vector<64x8xf32>
    %c1_124 = arith.constant 1 : index
    %c1_125 = arith.constant 1 : index
    %c0_126 = arith.constant 0 : index
    %108 = vector.load %arg10[%c1_124, %c1_125, %c0_126] : memref<10x10x8xbf16, #tpu.memory_space<vmem>>, vector<8x8x8xbf16>
    %109 = vector.shape_cast %108 : vector<8x8x8xbf16> to vector<64x8xbf16>
    %c4_127 = arith.constant 4 : index
    %c0_128 = arith.constant 0 : index
    %c0_129 = arith.constant 0 : index
    %110 = vector.load %arg5[%c4_127, %c0_128, %c0_129] : memref<9x8x8xbf16, #tpu.memory_space<vmem>>, vector<1x8x8xbf16>
    %111 = vector.shape_cast %110 : vector<1x8x8xbf16> to vector<8x8xbf16>
    %cst_130 = arith.constant dense<0.000000e+00> : vector<64x8xf32>
    %112 = tpu.matmul %109, %111, %cst_130 {dimension_numbers = #tpu.dot_dimension_numbers<[1], [0], [0], [1], [0, 0, 1, 1], [], []>} : vector<64x8xbf16>, vector<8x8xbf16>, vector<64x8xf32> -> vector<64x8xf32>
    %113 = arith.addf %107, %112 : vector<64x8xf32>
    %c1_131 = arith.constant 1 : index
    %c2_132 = arith.constant 2 : index
    %c0_133 = arith.constant 0 : index
    %114 = vector.load %arg10[%c1_131, %c2_132, %c0_133] : memref<10x10x8xbf16, #tpu.memory_space<vmem>>, vector<8x8x8xbf16>
    %115 = vector.shape_cast %114 : vector<8x8x8xbf16> to vector<64x8xbf16>
    %c5_134 = arith.constant 5 : index
    %c0_135 = arith.constant 0 : index
    %c0_136 = arith.constant 0 : index
    %116 = vector.load %arg5[%c5_134, %c0_135, %c0_136] : memref<9x8x8xbf16, #tpu.memory_space<vmem>>, vector<1x8x8xbf16>
    %117 = vector.shape_cast %116 : vector<1x8x8xbf16> to vector<8x8xbf16>
    %cst_137 = arith.constant dense<0.000000e+00> : vector<64x8xf32>
    %118 = tpu.matmul %115, %117, %cst_137 {dimension_numbers = #tpu.dot_dimension_numbers<[1], [0], [0], [1], [0, 0, 1, 1], [], []>} : vector<64x8xbf16>, vector<8x8xbf16>, vector<64x8xf32> -> vector<64x8xf32>
    %119 = arith.addf %113, %118 : vector<64x8xf32>
    %c2_138 = arith.constant 2 : index
    %c0_139 = arith.constant 0 : index
    %c0_140 = arith.constant 0 : index
    %120 = vector.load %arg10[%c2_138, %c0_139, %c0_140] : memref<10x10x8xbf16, #tpu.memory_space<vmem>>, vector<8x8x8xbf16>
    %121 = vector.shape_cast %120 : vector<8x8x8xbf16> to vector<64x8xbf16>
    %c6_141 = arith.constant 6 : index
    %c0_142 = arith.constant 0 : index
    %c0_143 = arith.constant 0 : index
    %122 = vector.load %arg5[%c6_141, %c0_142, %c0_143] : memref<9x8x8xbf16, #tpu.memory_space<vmem>>, vector<1x8x8xbf16>
    %123 = vector.shape_cast %122 : vector<1x8x8xbf16> to vector<8x8xbf16>
    %cst_144 = arith.constant dense<0.000000e+00> : vector<64x8xf32>
    %124 = tpu.matmul %121, %123, %cst_144 {dimension_numbers = #tpu.dot_dimension_numbers<[1], [0], [0], [1], [0, 0, 1, 1], [], []>} : vector<64x8xbf16>, vector<8x8xbf16>, vector<64x8xf32> -> vector<64x8xf32>
    %125 = arith.addf %119, %124 : vector<64x8xf32>
    %c2_145 = arith.constant 2 : index
    %c1_146 = arith.constant 1 : index
    %c0_147 = arith.constant 0 : index
    %126 = vector.load %arg10[%c2_145, %c1_146, %c0_147] : memref<10x10x8xbf16, #tpu.memory_space<vmem>>, vector<8x8x8xbf16>
    %127 = vector.shape_cast %126 : vector<8x8x8xbf16> to vector<64x8xbf16>
    %c7_148 = arith.constant 7 : index
    %c0_149 = arith.constant 0 : index
    %c0_150 = arith.constant 0 : index
    %128 = vector.load %arg5[%c7_148, %c0_149, %c0_150] : memref<9x8x8xbf16, #tpu.memory_space<vmem>>, vector<1x8x8xbf16>
    %129 = vector.shape_cast %128 : vector<1x8x8xbf16> to vector<8x8xbf16>
    %cst_151 = arith.constant dense<0.000000e+00> : vector<64x8xf32>
    %130 = tpu.matmul %127, %129, %cst_151 {dimension_numbers = #tpu.dot_dimension_numbers<[1], [0], [0], [1], [0, 0, 1, 1], [], []>} : vector<64x8xbf16>, vector<8x8xbf16>, vector<64x8xf32> -> vector<64x8xf32>
    %131 = arith.addf %125, %130 : vector<64x8xf32>
    %c2_152 = arith.constant 2 : index
    %c2_153 = arith.constant 2 : index
    %c0_154 = arith.constant 0 : index
    %132 = vector.load %arg10[%c2_152, %c2_153, %c0_154] : memref<10x10x8xbf16, #tpu.memory_space<vmem>>, vector<8x8x8xbf16>
    %133 = vector.shape_cast %132 : vector<8x8x8xbf16> to vector<64x8xbf16>
    %c8_155 = arith.constant 8 : index
    %c0_156 = arith.constant 0 : index
    %c0_157 = arith.constant 0 : index
    %134 = vector.load %arg5[%c8_155, %c0_156, %c0_157] : memref<9x8x8xbf16, #tpu.memory_space<vmem>>, vector<1x8x8xbf16>
    %135 = vector.shape_cast %134 : vector<1x8x8xbf16> to vector<8x8xbf16>
    %cst_158 = arith.constant dense<0.000000e+00> : vector<64x8xf32>
    %136 = tpu.matmul %133, %135, %cst_158 {dimension_numbers = #tpu.dot_dimension_numbers<[1], [0], [0], [1], [0, 0, 1, 1], [], []>} : vector<64x8xbf16>, vector<8x8xbf16>, vector<64x8xf32> -> vector<64x8xf32>
    %137 = arith.addf %131, %136 : vector<64x8xf32>
    %c0_159 = arith.constant 0 : index
    %c0_160 = arith.constant 0 : index
    %138 = vector.load %arg6[%c0_159, %c0_160] : memref<1x8xf32, #tpu.memory_space<vmem>>, vector<1x8xf32>
    %139 = vector.broadcast %138 : vector<1x8xf32> to vector<64x8xf32>
    %140 = arith.mulf %137, %139 : vector<64x8xf32>
    %c0_161 = arith.constant 0 : index
    %c0_162 = arith.constant 0 : index
    %141 = vector.load %arg7[%c0_161, %c0_162] : memref<1x8xf32, #tpu.memory_space<vmem>>, vector<1x8xf32>
    %142 = vector.broadcast %141 : vector<1x8xf32> to vector<64x8xf32>
    %143 = arith.addf %140, %142 : vector<64x8xf32>
    %cst_163 = arith.constant 0.000000e+00 : f32
    %144 = vector.broadcast %cst_163 : f32 to vector<64x8xf32>
    %145 = arith.maximumf %143, %144 : vector<64x8xf32>
    %146 = vector.shape_cast %145 : vector<64x8xf32> to vector<1x8x8x8xf32>
    %c0_164 = arith.constant 0 : index
    %c0_165 = arith.constant 0 : index
    %c0_166 = arith.constant 0 : index
    %c0_167 = arith.constant 0 : index
    %147 = vector.load %arg8[%c0_164, %c0_165, %c0_166, %c0_167] : memref<1x8x8x8xf32, #tpu.memory_space<vmem>>, vector<1x8x8x8xf32>
    tpu.vector_store %arg8[%c0_164, %c0_165, %c0_166, %c0_167], %146 {strides = array<i32>} : memref<1x8x8x8xf32, #tpu.memory_space<vmem>>, vector<1x8x8x8xf32>,
    return
  }
  func.func @transform_0(%arg0: i32) -> (i32, i32, i32, i32) {
    %c0_i32 = arith.constant 0 : i32
    %c0_i32_0 = arith.constant 0 : i32
    %c0_i32_1 = arith.constant 0 : i32
    %c0_i32_2 = arith.constant 0 : i32
    return %arg0, %c0_i32, %c0_i32_0, %c0_i32_1 : i32, i32, i32, i32
  }
  func.func @transform_1(%arg0: i32) -> (i32, i32, i32) {
    %c0_i32 = arith.constant 0 : i32
    %c0_i32_0 = arith.constant 0 : i32
    %c0_i32_1 = arith.constant 0 : i32
    %c0_i32_2 = arith.constant 0 : i32
    return %c0_i32, %c0_i32_0, %c0_i32_1 : i32, i32, i32
  }
  func.func @transform_2(%arg0: i32) -> (i32, i32) {
    %c0_i32 = arith.constant 0 : i32
    %c0_i32_0 = arith.constant 0 : i32
    %c0_i32_1 = arith.constant 0 : i32
    return %c0_i32, %c0_i32_0 : i32, i32
  }
  func.func @transform_3(%arg0: i32) -> (i32, i32) {
    %c0_i32 = arith.constant 0 : i32
    %c0_i32_0 = arith.constant 0 : i32
    %c0_i32_1 = arith.constant 0 : i32
    return %c0_i32, %c0_i32_0 : i32, i32
  }
  func.func @transform_4(%arg0: i32) -> (i32, i32, i32) {
    %c0_i32 = arith.constant 0 : i32
    %c0_i32_0 = arith.constant 0 : i32
    %c0_i32_1 = arith.constant 0 : i32
    %c0_i32_2 = arith.constant 0 : i32
    return %c0_i32, %c0_i32_0, %c0_i32_1 : i32, i32, i32
  }
  func.func @transform_5(%arg0: i32) -> (i32, i32) {
    %c0_i32 = arith.constant 0 : i32
    %c0_i32_0 = arith.constant 0 : i32
    %c0_i32_1 = arith.constant 0 : i32
    return %c0_i32, %c0_i32_0 : i32, i32
  }
  func.func @transform_6(%arg0: i32) -> (i32, i32) {
    %c0_i32 = arith.constant 0 : i32
    %c0_i32_0 = arith.constant 0 : i32
    %c0_i32_1 = arith.constant 0 : i32
    return %c0_i32, %c0_i32_0 : i32, i32
  }
  func.func @transform_7(%arg0: i32) -> (i32, i32, i32, i32) {
    %c0_i32 = arith.constant 0 : i32
    %c0_i32_0 = arith.constant 0 : i32
    %c0_i32_1 = arith.constant 0 : i32
    %c0_i32_2 = arith.constant 0 : i32
    return %arg0, %c0_i32, %c0_i32_0, %c0_i32_1 : i32, i32, i32, i32
  }
}

</mosaic_0001>

<llo_original>
// kernel: down_forward.1
$region0: #{down_forward.1}
  #allocation0 [shape = 'u32[]', space=smem, size = 0x4, offset = 0x4, fixed_abs, tag = 'smem constant byte address 0x4 - core index']
  #allocation1 [shape = 'u32[72,128]{1,0:T(1,128)}', space=vmem, size = 0x9000, scoped, tag = 'internal scratch']
  #allocation2 [shape = 'bf16[10,10,4]{2,1,0:T(8,128)(2,1)}', space=vmem, size = 0xa000, scoped, tag = 'scratch operand']
  #allocation3 [shape = 'bf16[10,10,8]{2,1,0:T(8,128)(2,1)}', space=vmem, size = 0xa000, scoped, tag = 'scratch operand']
  %s0 = inlined_call_operand.vmem [shape: f32[2,16,8,8], index: 0, kind: input, shape index: {}]
  %s1 = inlined_call_operand.vmem [shape: bf16[9,4,8], index: 1, kind: input, shape index: {}]
  %s2 = inlined_call_operand.vmem [shape: f32[1,8], index: 2, kind: input, shape index: {}]
  %s3 = inlined_call_operand.vmem [shape: f32[1,8], index: 3, kind: input, shape index: {}]
  %s4 = inlined_call_operand.vmem [shape: bf16[9,8,8], index: 4, kind: input, shape index: {}]
  %s5 = inlined_call_operand.vmem [shape: f32[1,8], index: 5, kind: input, shape index: {}]
  %s6 = inlined_call_operand.vmem [shape: f32[1,8], index: 6, kind: input, shape index: {}]
  %s7 = inlined_call_operand.vmem [shape: f32[2,8,8,8], index: 7, kind: output, shape index: {}]
  %s8 = sld [smem:[#allocation0]]
  $region61: #{down_forward.1} parent=0
    _
  %s10 = ssub.s32 1, %s8
  %s11 = scalar_select 0, %s10, %s8
  loop: start=0, step=1, limit=4
  $region2: #{down_forward.1} parent=0 // loop_pre_header
    _
  $region3: #{down_forward.1} parent=0 // loop_header
    %s13 = sphi 0, %s17
    %p14 = scmp.ge.s32.totalorder %s13, 4
    %s23 = sphi 0, %s25
    %s26 = sphi 0, %s23
    %s27 = sphi 0, %s26
    %s43 = sphi 0, %s27
    %s47 = sphi 0, %s47
    %s49 = sphi 0, %s47
    %s50 = sphi 0, %s49
    %s64 = sphi 0, %s50
    %s68 = sphi 0, %s68
    %s70 = sphi 0, %s68
    %s71 = sphi 0, %s70
    %s85 = sphi 0, %s71
    %s89 = sphi 0, %s89
    %s91 = sphi 0, %s89
    %s92 = sphi 0, %s91
    %s106 = sphi 0, %s92
    %s110 = sphi 0, %s110
    %s112 = sphi 0, %s110
    %s113 = sphi 0, %s112
    %s127 = sphi 0, %s113
    %s131 = sphi 0, %s131
    %s133 = sphi 0, %s131
    %s134 = sphi 0, %s133
    %s148 = sphi 0, %s134
    %s152 = sphi 0, %s152
    %s154 = sphi 0, %s152
    %s155 = sphi 0, %s154
    %s169 = sphi 0, %s155
    %s175 = sphi 0, %s177
    %s178 = sphi 0, %s175
    %s179 = sphi 0, %s178
    %s195 = sphi 0, %s179
  $region4: #{down_forward.1} parent=0 // loop_header_branch
    %16 = sbr.rel (%p14) target = $region8
  $region5: #{down_forward.1} parent=0 // loop_body
    %s18 = ssub.s32 %s13, 1
    %s19 = ssub.s32 %s13, 2
    %s20 = sadd.s32 %s13, 1
    %s21 = ssub.s32 %s13, %s20
    %p22 = scmp.eq.s32.totalorder %s21, 0
    %s24 = sadd.s32 %s23, 1
    %s25 = scalar_select %p22, %s23, %s24
    %p28 = pneg %p22
    %p29 = scmp.eq.s32.totalorder %s13, 1
    %p30 = por %p28, %p29
    %p31 = scmp.ne.s32.totalorder %s23, %s26
    %p32 = scmp.eq.s32.totalorder %s13, 0
    %p33 = por %p31, %p32
    %p34 = scmp.ne.s32.totalorder %s23, %s26
    %p35 = scmp.eq.s32.totalorder %s18, 1
    %p36 = por %p34, %p35
    %p37 = scmp.ne.s32.totalorder %s26, %s27
    %p38 = scmp.eq.s32.totalorder %s18, 0
    %p39 = por %p37, %p38
    %p40 = scmp.ne.s32.totalorder %s26, %s27
    %p41 = scmp.eq.s32.totalorder %s19, 1
    %p42 = por %p40, %p41
    %p44 = scmp.ne.s32.totalorder %s27, %s43
    %p45 = scmp.eq.s32.totalorder %s19, 0
    %p46 = por %p44, %p45
    %s48 = sadd.s32 %s47, 1
    %p51 = scmp.eq.s32.totalorder %s13, 1
    %p52 = scmp.ne.s32.totalorder %s47, %s49
    %p53 = scmp.eq.s32.totalorder %s13, 0
    %p54 = por %p52, %p53
    %p55 = scmp.ne.s32.totalorder %s47, %s49
    %p56 = scmp.eq.s32.totalorder %s18, 1
    %p57 = por %p55, %p56
    %p58 = scmp.ne.s32.totalorder %s49, %s50
    %p59 = scmp.eq.s32.totalorder %s18, 0
    %p60 = por %p58, %p59
    %p61 = scmp.ne.s32.totalorder %s49, %s50
    %p62 = scmp.eq.s32.totalorder %s19, 1
    %p63 = por %p61, %p62
    %p65 = scmp.ne.s32.totalorder %s50, %s64
    %p66 = scmp.eq.s32.totalorder %s19, 0
    %p67 = por %p65, %p66
    %s69 = sadd.s32 %s68, 1
    %p72 = scmp.eq.s32.totalorder %s13, 1
    %p73 = scmp.ne.s32.totalorder %s68, %s70
    %p74 = scmp.eq.s32.totalorder %s13, 0
    %p75 = por %p73, %p74
    %p76 = scmp.ne.s32.totalorder %s68, %s70
    %p77 = scmp.eq.s32.totalorder %s18, 1
    %p78 = por %p76, %p77
    %p79 = scmp.ne.s32.totalorder %s70, %s71
    %p80 = scmp.eq.s32.totalorder %s18, 0
    %p81 = por %p79, %p80
    %p82 = scmp.ne.s32.totalorder %s70, %s71
    %p83 = scmp.eq.s32.totalorder %s19, 1
    %p84 = por %p82, %p83
    %p86 = scmp.ne.s32.totalorder %s71, %s85
    %p87 = scmp.eq.s32.totalorder %s19, 0
    %p88 = por %p86, %p87
    %s90 = sadd.s32 %s89, 1
    %p93 = scmp.eq.s32.totalorder %s13, 1
    %p94 = scmp.ne.s32.totalorder %s89, %s91
    %p95 = scmp.eq.s32.totalorder %s13, 0
    %p96 = por %p94, %p95
    %p97 = scmp.ne.s32.totalorder %s89, %s91
    %p98 = scmp.eq.s32.totalorder %s18, 1
    %p99 = por %p97, %p98
    %p100 = scmp.ne.s32.totalorder %s91, %s92
    %p101 = scmp.eq.s32.totalorder %s18, 0
    %p102 = por %p100, %p101
    %p103 = scmp.ne.s32.totalorder %s91, %s92
    %p104 = scmp.eq.s32.totalorder %s19, 1
    %p105 = por %p103, %p104
    %p107 = scmp.ne.s32.totalorder %s92, %s106
    %p108 = scmp.eq.s32.totalorder %s19, 0
    %p109 = por %p107, %p108
    %s111 = sadd.s32 %s110, 1
    %p114 = scmp.eq.s32.totalorder %s13, 1
    %p115 = scmp.ne.s32.totalorder %s110, %s112
    %p116 = scmp.eq.s32.totalorder %s13, 0
    %p117 = por %p115, %p116
    %p118 = scmp.ne.s32.totalorder %s110, %s112
    %p119 = scmp.eq.s32.totalorder %s18, 1
    %p120 = por %p118, %p119
    %p121 = scmp.ne.s32.totalorder %s112, %s113
    %p122 = scmp.eq.s32.totalorder %s18, 0
    %p123 = por %p121, %p122
    %p124 = scmp.ne.s32.totalorder %s112, %s113
    %p125 = scmp.eq.s32.totalorder %s19, 1
    %p126 = por %p124, %p125
    %p128 = scmp.ne.s32.totalorder %s113, %s127
    %p129 = scmp.eq.s32.totalorder %s19, 0
    %p130 = por %p128, %p129
    %s132 = sadd.s32 %s131, 1
    %p135 = scmp.eq.s32.totalorder %s13, 1
    %p136 = scmp.ne.s32.totalorder %s131, %s133
    %p137 = scmp.eq.s32.totalorder %s13, 0
    %p138 = por %p136, %p137
    %p139 = scmp.ne.s32.totalorder %s131, %s133
    %p140 = scmp.eq.s32.totalorder %s18, 1
    %p141 = por %p139, %p140
    %p142 = scmp.ne.s32.totalorder %s133, %s134
    %p143 = scmp.eq.s32.totalorder %s18, 0
    %p144 = por %p142, %p143
    %p145 = scmp.ne.s32.totalorder %s133, %s134
    %p146 = scmp.eq.s32.totalorder %s19, 1
    %p147 = por %p145, %p146
    %p149 = scmp.ne.s32.totalorder %s134, %s148
    %p150 = scmp.eq.s32.totalorder %s19, 0
    %p151 = por %p149, %p150
    %s153 = sadd.s32 %s152, 1
    %p156 = scmp.eq.s32.totalorder %s13, 1
    %p157 = scmp.ne.s32.totalorder %s152, %s154
    %p158 = scmp.eq.s32.totalorder %s13, 0
    %p159 = por %p157, %p158
    %p160 = scmp.ne.s32.totalorder %s152, %s154
    %p161 = scmp.eq.s32.totalorder %s18, 1
    %p162 = por %p160, %p161
    %p163 = scmp.ne.s32.totalorder %s154, %s155
    %p164 = scmp.eq.s32.totalorder %s18, 0
    %p165 = por %p163, %p164
    %p166 = scmp.ne.s32.totalorder %s154, %s155
    %p167 = scmp.eq.s32.totalorder %s19, 1
    %p168 = por %p166, %p167
    %p170 = scmp.ne.s32.totalorder %s155, %s169
    %p171 = scmp.eq.s32.totalorder %s19, 0
    %p172 = por %p170, %p171
    %s173 = ssub.s32 %s13, %s20
    %p174 = scmp.eq.s32.totalorder %s173, 0
    %s176 = sadd.s32 %s175, 1
    %s177 = scalar_select %p174, %s175, %s176
    %p180 = pneg %p174
    %p181 = scmp.eq.s32.totalorder %s13, 1
    %p182 = por %p180, %p181
    %p183 = scmp.ne.s32.totalorder %s175, %s178
    %p184 = scmp.eq.s32.totalorder %s13, 0
    %p185 = por %p183, %p184
    %p186 = scmp.ne.s32.totalorder %s175, %s178
    %p187 = scmp.eq.s32.totalorder %s18, 1
    %p188 = por %p186, %p187
    %p189 = scmp.ne.s32.totalorder %s178, %s179
    %p190 = scmp.eq.s32.totalorder %s18, 0
    %p191 = por %p189, %p190
    %p192 = scmp.ne.s32.totalorder %s178, %s179
    %p193 = scmp.eq.s32.totalorder %s19, 1
    %p194 = por %p192, %p193
    %p196 = scmp.ne.s32.totalorder %s179, %s195
    %p197 = scmp.eq.s32.totalorder %s19, 0
    %p198 = por %p196, %p197
    %p199 = scmp.le.s32.totalorder 1, %s13
    %p200 = scmp.lt.s32.totalorder %s13, 3
    %p201 = pnand %p199, %p200
    %p202 = pneg %p201
    // Predicated region
    $region9: #{down_forward.1} parent=5 // pred_check
      _
    $region10: #{down_forward.1} parent=5 // pred_check_branch
      %204 = sbr.rel (%p201) target = $region12
    $region11: #{down_forward.1} parent=5 // pred_region
      %s205 = ssub.s32 %s13, 1
      // Predicated region
      $region13: #{down_forward.1} parent=11 // pred_check
        %p206 = pneg %p60
      $region14: #{down_forward.1} parent=11 // pred_check_branch
        %208 = sbr.rel (%p206) target = $region16
      $region15: #{down_forward.1} parent=11 // pred_region
        _
      $region16: #{down_forward.1} parent=11 // pred_fallthru
        _
      // Predicated region
      $region17: #{down_forward.1} parent=11 // pred_check
        %p209 = pneg %p81
      $region18: #{down_forward.1} parent=11 // pred_check_branch
        %211 = sbr.rel (%p209) target = $region20
      $region19: #{down_forward.1} parent=11 // pred_region
        _
      $region20: #{down_forward.1} parent=11 // pred_fallthru
        _
      // Predicated region
      $region21: #{down_forward.1} parent=11 // pred_check
        %p212 = pneg %p102
      $region22: #{down_forward.1} parent=11 // pred_check_branch
        %214 = sbr.rel (%p212) target = $region24
      $region23: #{down_forward.1} parent=11 // pred_region
        _
      $region24: #{down_forward.1} parent=11 // pred_fallthru
        _
      // Predicated region
      $region25: #{down_forward.1} parent=11 // pred_check
        %p215 = pneg %p123
      $region26: #{down_forward.1} parent=11 // pred_check_branch
        %217 = sbr.rel (%p215) target = $region28
      $region27: #{down_forward.1} parent=11 // pred_region
        _
      $region28: #{down_forward.1} parent=11 // pred_fallthru
        _
      // Predicated region
      $region29: #{down_forward.1} parent=11 // pred_check
        %p218 = pneg %p144
      $region30: #{down_forward.1} parent=11 // pred_check_branch
        %220 = sbr.rel (%p218) target = $region32
      $region31: #{down_forward.1} parent=11 // pred_region
        _
      $region32: #{down_forward.1} parent=11 // pred_fallthru
        _
      // Predicated region
      $region33: #{down_forward.1} parent=11 // pred_check
        %p221 = pneg %p165
      $region34: #{down_forward.1} parent=11 // pred_check_branch
        %223 = sbr.rel (%p221) target = $region36
      $region35: #{down_forward.1} parent=11 // pred_region
        _
      $region36: #{down_forward.1} parent=11 // pred_fallthru
        _
    $region12: #{down_forward.1} parent=5 // pred_fallthru
      _
    %p224 = scmp.lt.s32.totalorder %s13, 2
    // Predicated region
    $region37: #{down_forward.1} parent=5 // pred_check
      %p225 = pneg %p224
    $region38: #{down_forward.1} parent=5 // pred_check_branch
      %227 = sbr.rel (%p225) target = $region40
    $region39: #{down_forward.1} parent=5 // pred_region
      // Predicated region
      $region41: #{down_forward.1} parent=39 // pred_check
        %p228 = pneg %p33
      $region42: #{down_forward.1} parent=39 // pred_check_branch
        %230 = sbr.rel (%p228) target = $region44
      $region43: #{down_forward.1} parent=39 // pred_region
        %p231 = scmp.lt.s32.totalorder %s13, 1
        %s232 = scalar_select %p231, %s13, 1
        %s233 = smul.addr %s232, 16
        %s234 = smul.addr %s233, 8
        %s235 = scalar_lea.vmem %s0, %s234
      $region44: #{down_forward.1} parent=39 // pred_fallthru
        _
    $region40: #{down_forward.1} parent=5 // pred_fallthru
      _
    %p236 = scmp.le.s32.totalorder 1, %s13
    %p237 = scmp.lt.s32.totalorder %s13, 3
    %p238 = pnand %p236, %p237
    %p239 = pneg %p238
    // Predicated region
    $region45: #{down_forward.1} parent=5 // pred_check
      _
    $region46: #{down_forward.1} parent=5 // pred_check_branch
      %241 = sbr.rel (%p238) target = $region48
    $region47: #{down_forward.1} parent=5 // pred_region
      %s242 = ssub.s32 %s13, 1
      %p243 = scmp.lt.s32.totalorder %s18, 1
      %s244 = scalar_select %p243, %s18, 1
      %s245 = smul.addr %s244, 16
      %s246 = smul.addr %s245, 8
      %s247 = scalar_lea.vmem %s0, %s246
      %p248 = pneg %p39
      %p249 = pneg %p36
      %p250 = pneg %p60
      %p251 = pneg %p57
      %p252 = pneg %p81
      %p253 = pneg %p78
      %p254 = pneg %p102
      %p255 = pneg %p99
      %p256 = pneg %p123
      %p257 = pneg %p120
      %p258 = pneg %p144
      %p259 = pneg %p141
      %p260 = pneg %p165
      %p261 = pneg %p162
      %p262 = pneg %p191
      %p263 = pneg %p188
      %p264 = scmp.lt.s32.totalorder %s18, 1
      %s265 = scalar_select %p264, %s18, 1
      %s266 = smul.addr %s265, 8
      %s267 = smul.addr %s266, 8
      %s268 = scalar_lea.vmem %s7, %s267
      %p269 = scmp.lt.s32.totalorder %s18, 1
      %s270 = scalar_select %p269, %s18, 1
      %s271 = smul.addr %s270, 16
      %s272 = smul.addr %s271, 8
      %s273 = scalar_lea.vmem %s0, %s272
      %p274 = scmp.lt.s32.totalorder %s18, 1
      %s275 = scalar_select %p274, %s18, 1
      %s276 = smul.addr %s275, 8
      %s277 = smul.addr %s276, 8
      %s278 = scalar_lea.vmem %s7, %s277
      %v280 = vld [vmem:[%s273] sm:$0xff]
      %v281 = vld [vmem:[%s273 + $0x8] sm:$0xff]
      %v282 = vld [vmem:[%s273 + $0x10] sm:$0xff]
      %v283 = vld [vmem:[%s273 + $0x18] sm:$0xff]
      %v284 = vld [vmem:[%s273 + $0x20] sm:$0xff]
      %v285 = vld [vmem:[%s273 + $0x28] sm:$0xff]
      %v286 = vld [vmem:[%s273 + $0x30] sm:$0xff]
      %v287 = vld [vmem:[%s273 + $0x38] sm:$0xff]
      %v288 = vld [vmem:[%s273 + $0x40] sm:$0xff]
      %v289 = vld [vmem:[%s273 + $0x48] sm:$0xff]
      %v290 = vld [vmem:[%s273 + $0x50] sm:$0xff]
      %v291 = vld [vmem:[%s273 + $0x58] sm:$0xff]
      %v292 = vld [vmem:[%s273 + $0x60] sm:$0xff]
      %v293 = vld [vmem:[%s273 + $0x68] sm:$0xff]
      %v294 = vld [vmem:[%s273 + $0x70] sm:$0xff]
      %v295 = vld [vmem:[%s273 + $0x78] sm:$0xff]
      %312 = vrot.lane.b32.xlu0 %v280, 124
      %v313 = vpop.permute.xlu0 %312
      %314 = vrot.lane.b32.xlu0 %v281, 124
      %v315 = vpop.permute.xlu0 %314
      %316 = vrot.lane.b32.xlu0 %v282, 124
      %v317 = vpop.permute.xlu0 %316
      %318 = vrot.lane.b32.xlu0 %v283, 124
      %v319 = vpop.permute.xlu0 %318
      %320 = vrot.lane.b32.xlu0 %v284, 124
      %v321 = vpop.permute.xlu0 %320
      %322 = vrot.lane.b32.xlu0 %v285, 124
      %v323 = vpop.permute.xlu0 %322
      %324 = vrot.lane.b32.xlu0 %v286, 124
      %v325 = vpop.permute.xlu0 %324
      %326 = vrot.lane.b32.xlu0 %v287, 124
      %v327 = vpop.permute.xlu0 %326
      %328 = vrot.lane.b32.xlu0 %v288, 124
      %v329 = vpop.permute.xlu0 %328
      %330 = vrot.lane.b32.xlu0 %v289, 124
      %v331 = vpop.permute.xlu0 %330
      %332 = vrot.lane.b32.xlu0 %v290, 124
      %v333 = vpop.permute.xlu0 %332
      %334 = vrot.lane.b32.xlu0 %v291, 124
      %v335 = vpop.permute.xlu0 %334
      %336 = vrot.lane.b32.xlu0 %v292, 124
      %v337 = vpop.permute.xlu0 %336
      %338 = vrot.lane.b32.xlu0 %v293, 124
      %v339 = vpop.permute.xlu0 %338
      %340 = vrot.lane.b32.xlu0 %v294, 124
      %v341 = vpop.permute.xlu0 %340
      %342 = vrot.lane.b32.xlu0 %v295, 124
      %v343 = vpop.permute.xlu0 %342
      %v360 = vmax.f32 %v280, %v313
      %v361 = vmax.f32 %v281, %v315
      %v362 = vmax.f32 %v282, %v317
      %v363 = vmax.f32 %v283, %v319
      %v364 = vmax.f32 %v284, %v321
      %v365 = vmax.f32 %v285, %v323
      %v366 = vmax.f32 %v286, %v325
      %v367 = vmax.f32 %v287, %v327
      %v368 = vmax.f32 %v288, %v329
      %v369 = vmax.f32 %v289, %v331
      %v370 = vmax.f32 %v290, %v333
      %v371 = vmax.f32 %v291, %v335
      %v372 = vmax.f32 %v292, %v337
      %v373 = vmax.f32 %v293, %v339
      %v374 = vmax.f32 %v294, %v341
      %v375 = vmax.f32 %v295, %v343
      %vm376 = vcmask 31744
      %v377 = vsel %vm376, %v360, -inf
      %v378 = vsel %vm376, %v361, -inf
      %v379 = vmax.f32 %v377, %v378
      %v380 = vsel %vm376, %v362, -inf
      %v381 = vsel %vm376, %v363, -inf
      %v382 = vmax.f32 %v380, %v381
      %v383 = vsel %vm376, %v364, -inf
      %v384 = vsel %vm376, %v365, -inf
      %v385 = vmax.f32 %v383, %v384
      %v386 = vsel %vm376, %v366, -inf
      %v387 = vsel %vm376, %v367, -inf
      %v388 = vmax.f32 %v386, %v387
      %v389 = vsel %vm376, %v368, -inf
      %v390 = vsel %vm376, %v369, -inf
      %v391 = vmax.f32 %v389, %v390
      %v392 = vsel %vm376, %v370, -inf
      %v393 = vsel %vm376, %v371, -inf
      %v394 = vmax.f32 %v392, %v393
      %v395 = vsel %vm376, %v372, -inf
      %v396 = vsel %vm376, %v373, -inf
      %v397 = vmax.f32 %v395, %v396
      %v398 = vsel %vm376, %v374, -inf
      %v399 = vsel %vm376, %v375, -inf
      %v400 = vmax.f32 %v398, %v399
      %vm401 = vcmask 27648
      %402 = vst.msk [vmem:[#allocation2] sm:$0xf] %vm401, 0
      %vm403 = vcmask 24576
      %404 = vst.msk [vmem:[#allocation2 + $0x4] sm:$0x1] %vm403, 0
      %s405 = scalar_lea.vmem [#allocation2], 72
      %406 = vst.msk [vmem:[%s405] sm:$0xf] %vm401, 0
      %407 = vst.msk [vmem:[%s405 + $0x4] sm:$0x1] %vm403, 0
      %vm408 = vcmask 24576
      %vm409 = vsmask.f32 256
      %vm410 = vmand %vm408, %vm409
      %v411 = vld [vmem:[#allocation2] sm:$0x1]
      %v412 = vsel %vm410, 0, %v411
      %413 = vst [vmem:[#allocation2] sm:$0x1] %v412
      %v414 = vld [vmem:[#allocation2 + $0x8] sm:$0x1]
      %v415 = vsel %vm410, 0, %v414
      %416 = vst [vmem:[#allocation2 + $0x8] sm:$0x1] %v415
      %v417 = vld [vmem:[#allocation2 + $0x10] sm:$0x1]
      %v418 = vsel %vm410, 0, %v417
      %419 = vst [vmem:[#allocation2 + $0x10] sm:$0x1] %v418
      %v420 = vld [vmem:[#allocation2 + $0x18] sm:$0x1]
      %v421 = vsel %vm410, 0, %v420
      %422 = vst [vmem:[#allocation2 + $0x18] sm:$0x1] %v421
      %v423 = vld [vmem:[#allocation2 + $0x20] sm:$0x1]
      %v424 = vsel %vm410, 0, %v423
      %425 = vst [vmem:[#allocation2 + $0x20] sm:$0x1] %v424
      %v426 = vld [vmem:[#allocation2 + $0x28] sm:$0x1]
      %v427 = vsel %vm410, 0, %v426
      %428 = vst [vmem:[#allocation2 + $0x28] sm:$0x1] %v427
      %v429 = vld [vmem:[#allocation2 + $0x30] sm:$0x1]
      %v430 = vsel %vm410, 0, %v429
      %431 = vst [vmem:[#allocation2 + $0x30] sm:$0x1] %v430
      %v432 = vld [vmem:[#allocation2 + $0x38] sm:$0x1]
      %v433 = vsel %vm410, 0, %v432
      %434 = vst [vmem:[#allocation2 + $0x38] sm:$0x1] %v433
      %v435 = vld [vmem:[#allocation2 + $0x40] sm:$0x1]
      %v436 = vsel %vm410, 0, %v435
      %437 = vst [vmem:[#allocation2 + $0x40] sm:$0x1] %v436
      %v438 = vld [vmem:[#allocation2 + $0x48] sm:$0x1]
      %v439 = vsel %vm410, 0, %v438
      %440 = vst [vmem:[#allocation2 + $0x48] sm:$0x1] %v439
      %vm441 = vsmask.f32 7938
      %vm442 = vmand %vm408, %vm441
      %v443 = vld [vmem:[#allocation2 + $0x4] sm:$0x1]
      %v444 = vsel %vm442, 0, %v443
      %445 = vst [vmem:[#allocation2 + $0x4] sm:$0x1] %v444
      %v446 = vld [vmem:[#allocation2 + $0xc] sm:$0x1]
      %v447 = vsel %vm442, 0, %v446
      %448 = vst [vmem:[#allocation2 + $0xc] sm:$0x1] %v447
      %v449 = vld [vmem:[#allocation2 + $0x14] sm:$0x1]
      %v450 = vsel %vm442, 0, %v449
      %451 = vst [vmem:[#allocation2 + $0x14] sm:$0x1] %v450
      %v452 = vld [vmem:[#allocation2 + $0x1c] sm:$0x1]
      %v453 = vsel %vm442, 0, %v452
      %454 = vst [vmem:[#allocation2 + $0x1c] sm:$0x1] %v453
      %v455 = vld [vmem:[#allocation2 + $0x24] sm:$0x1]
      %v456 = vsel %vm442, 0, %v455
      %457 = vst [vmem:[#allocation2 + $0x24] sm:$0x1] %v456
      %v458 = vld [vmem:[#allocation2 + $0x2c] sm:$0x1]
      %v459 = vsel %vm442, 0, %v458
      %460 = vst [vmem:[#allocation2 + $0x2c] sm:$0x1] %v459
      %v461 = vld [vmem:[#allocation2 + $0x34] sm:$0x1]
      %v462 = vsel %vm442, 0, %v461
      %463 = vst [vmem:[#allocation2 + $0x34] sm:$0x1] %v462
      %v464 = vld [vmem:[#allocation2 + $0x3c] sm:$0x1]
      %v465 = vsel %vm442, 0, %v464
      %466 = vst [vmem:[#allocation2 + $0x3c] sm:$0x1] %v465
      %v467 = vld [vmem:[#allocation2 + $0x44] sm:$0x1]
      %v468 = vsel %vm442, 0, %v467
      %469 = vst [vmem:[#allocation2 + $0x44] sm:$0x1] %v468
      %v470 = vld [vmem:[#allocation2 + $0x4c] sm:$0x1]
      %v471 = vsel %vm442, 0, %v470
      %472 = vst [vmem:[#allocation2 + $0x4c] sm:$0x1] %v471
      %v473 = vpack.c.bf16 %v379, %v379
      %v474 = vpack.c.bf16 %v382, %v382
      %v475 = vpack.c.bf16 %v385, %v385
      %v476 = vpack.c.bf16 %v388, %v388
      %v477 = vpack.c.bf16 %v391, %v391
      %v478 = vpack.c.bf16 %v394, %v394
      %v479 = vpack.c.bf16 %v397, %v397
      %v480 = vpack.c.bf16 %v400, %v400
      %v482 = vshrl.u32 %v473, 16
      %v484 = vrot.slane %v482, 7
      %v485 = vshll.u32 %v473, 16
      %v487 = vor.u32 %v484, %v485
      %v488 = vrot.slane %v484, 4
      %v490 = vshrl.u32 %v474, 16
      %v492 = vrot.slane %v490, 7
      %v493 = vshll.u32 %v474, 16
      %v495 = vor.u32 %v492, %v493
      %v496 = vrot.slane %v492, 4
      %v498 = vshrl.u32 %v475, 16
      %v500 = vrot.slane %v498, 7
      %v501 = vshll.u32 %v475, 16
      %v503 = vor.u32 %v500, %v501
      %v504 = vrot.slane %v500, 4
      %v506 = vshrl.u32 %v476, 16
      %v508 = vrot.slane %v506, 7
      %v509 = vshll.u32 %v476, 16
      %v511 = vor.u32 %v508, %v509
      %v512 = vrot.slane %v508, 4
      %v514 = vshrl.u32 %v477, 16
      %v516 = vrot.slane %v514, 7
      %v517 = vshll.u32 %v477, 16
      %v519 = vor.u32 %v516, %v517
      %v520 = vrot.slane %v516, 4
      %v522 = vshrl.u32 %v478, 16
      %v524 = vrot.slane %v522, 7
      %v525 = vshll.u32 %v478, 16
      %v527 = vor.u32 %v524, %v525
      %v528 = vrot.slane %v524, 4
      %v530 = vshrl.u32 %v479, 16
      %v532 = vrot.slane %v530, 7
      %v533 = vshll.u32 %v479, 16
      %v535 = vor.u32 %v532, %v533
      %v536 = vrot.slane %v532, 4
      %v538 = vshrl.u32 %v480, 16
      %v540 = vrot.slane %v538, 7
      %v541 = vshll.u32 %v480, 16
      %v543 = vor.u32 %v540, %v541
      %v544 = vrot.slane %v540, 4
      %s561 = scalar_lea.vmem [#allocation2], 8
      %vm562 = vcmask 27648
      %vm563 = vmand %vm562, %vm441
      %v564 = vld [vmem:[%s561] sm:$0xf]
      %v565 = vsel %vm563, %v487, %v564
      %566 = vst [vmem:[%s561] sm:$0xf] %v565
      %v567 = vld [vmem:[%s561 + $0x4] sm:$0x1]
      %v568 = vsel %vm410, %v488, %v567
      %569 = vst [vmem:[%s561 + $0x4] sm:$0x1] %v568
      %v570 = vld [vmem:[%s561 + $0x8] sm:$0xf]
      %v571 = vsel %vm563, %v495, %v570
      %572 = vst [vmem:[%s561 + $0x8] sm:$0xf] %v571
      %v573 = vld [vmem:[%s561 + $0xc] sm:$0x1]
      %v574 = vsel %vm410, %v496, %v573
      %575 = vst [vmem:[%s561 + $0xc] sm:$0x1] %v574
      %v576 = vld [vmem:[%s561 + $0x10] sm:$0xf]
      %v577 = vsel %vm563, %v503, %v576
      %578 = vst [vmem:[%s561 + $0x10] sm:$0xf] %v577
      %v579 = vld [vmem:[%s561 + $0x14] sm:$0x1]
      %v580 = vsel %vm410, %v504, %v579
      %581 = vst [vmem:[%s561 + $0x14] sm:$0x1] %v580
      %v582 = vld [vmem:[%s561 + $0x18] sm:$0xf]
      %v583 = vsel %vm563, %v511, %v582
      %584 = vst [vmem:[%s561 + $0x18] sm:$0xf] %v583
      %v585 = vld [vmem:[%s561 + $0x1c] sm:$0x1]
      %v586 = vsel %vm410, %v512, %v585
      %587 = vst [vmem:[%s561 + $0x1c] sm:$0x1] %v586
      %v588 = vld [vmem:[%s561 + $0x20] sm:$0xf]
      %v589 = vsel %vm563, %v519, %v588
      %590 = vst [vmem:[%s561 + $0x20] sm:$0xf] %v589
      %v591 = vld [vmem:[%s561 + $0x24] sm:$0x1]
      %v592 = vsel %vm410, %v520, %v591
      %593 = vst [vmem:[%s561 + $0x24] sm:$0x1] %v592
      %v594 = vld [vmem:[%s561 + $0x28] sm:$0xf]
      %v595 = vsel %vm563, %v527, %v594
      %596 = vst [vmem:[%s561 + $0x28] sm:$0xf] %v595
      %v597 = vld [vmem:[%s561 + $0x2c] sm:$0x1]
      %v598 = vsel %vm410, %v528, %v597
      %599 = vst [vmem:[%s561 + $0x2c] sm:$0x1] %v598
      %v600 = vld [vmem:[%s561 + $0x30] sm:$0xf]
      %v601 = vsel %vm563, %v535, %v600
      %602 = vst [vmem:[%s561 + $0x30] sm:$0xf] %v601
      %v603 = vld [vmem:[%s561 + $0x34] sm:$0x1]
      %v604 = vsel %vm410, %v536, %v603
      %605 = vst [vmem:[%s561 + $0x34] sm:$0x1] %v604
      %v606 = vld [vmem:[%s561 + $0x38] sm:$0xf]
      %v607 = vsel %vm563, %v543, %v606
      %608 = vst [vmem:[%s561 + $0x38] sm:$0xf] %v607
      %v609 = vld [vmem:[%s561 + $0x3c] sm:$0x1]
      %v610 = vsel %vm410, %v544, %v609
      %611 = vst [vmem:[%s561 + $0x3c] sm:$0x1] %v610
      %v612 = vld [vmem:[#allocation2] sm:$0xf]
      %v613 = vld [vmem:[#allocation2 + $0x8] sm:$0xf]
      %v614 = vld [vmem:[#allocation2 + $0x10] sm:$0xf]
      %v615 = vld [vmem:[#allocation2 + $0x18] sm:$0xf]
      %v616 = vld [vmem:[#allocation2 + $0x20] sm:$0xf]
      %v617 = vld [vmem:[#allocation2 + $0x28] sm:$0xf]
      %v618 = vld [vmem:[#allocation2 + $0x30] sm:$0xf]
      %v619 = vld [vmem:[#allocation2 + $0x38] sm:$0xf]
      %v620 = vld [vmem:[%s1] sm:$0x3]
      %v621 = vld [vmem:[#allocation2 + $0x4] sm:$0x1]
      %v622 = vld [vmem:[#allocation2 + $0xc] sm:$0x1]
      %v623 = vld [vmem:[#allocation2 + $0x14] sm:$0x1]
      %v624 = vld [vmem:[#allocation2 + $0x1c] sm:$0x1]
      %v625 = vld [vmem:[#allocation2 + $0x24] sm:$0x1]
      %v626 = vld [vmem:[#allocation2 + $0x2c] sm:$0x1]
      %v627 = vld [vmem:[#allocation2 + $0x34] sm:$0x1]
      %v628 = vld [vmem:[#allocation2 + $0x3c] sm:$0x1]
      %vm629 = vsmask.f32 3328
      %vm630 = vsmask.f32 7440
      %vm631 = vmor %vm629, %vm630
      %v633 = vshrl.u32 %v612, 16
      %v635 = vrot.slane %v633, 4
      %v636 = vshll.u32 %v612, 16
      %v638 = vrot.slane %v636, 5
      %v639 = vor.u32 %v635, %v638
      %v640 = vrot.slane %v639, 4
      %v642 = vshll.u32 %v621, 16
      %v644 = vrot.slane %v642, 5
      %v645 = vsel %vm631, %v640, %v644
      %v647 = vshrl.u32 %v613, 16
      %v649 = vrot.slane %v647, 4
      %v650 = vshll.u32 %v613, 16
      %v652 = vrot.slane %v650, 5
      %v653 = vor.u32 %v649, %v652
      %v654 = vrot.slane %v653, 4
      %v656 = vshll.u32 %v622, 16
      %v658 = vrot.slane %v656, 5
      %v659 = vsel %vm631, %v654, %v658
      %v661 = vshrl.u32 %v614, 16
      %v663 = vrot.slane %v661, 4
      %v664 = vshll.u32 %v614, 16
      %v666 = vrot.slane %v664, 5
      %v667 = vor.u32 %v663, %v666
      %v668 = vrot.slane %v667, 4
      %v670 = vshll.u32 %v623, 16
      %v672 = vrot.slane %v670, 5
      %v673 = vsel %vm631, %v668, %v672
      %v675 = vshrl.u32 %v615, 16
      %v677 = vrot.slane %v675, 4
      %v678 = vshll.u32 %v615, 16
      %v680 = vrot.slane %v678, 5
      %v681 = vor.u32 %v677, %v680
      %v682 = vrot.slane %v681, 4
      %v684 = vshll.u32 %v624, 16
      %v686 = vrot.slane %v684, 5
      %v687 = vsel %vm631, %v682, %v686
      %v689 = vshrl.u32 %v616, 16
      %v691 = vrot.slane %v689, 4
      %v692 = vshll.u32 %v616, 16
      %v694 = vrot.slane %v692, 5
      %v695 = vor.u32 %v691, %v694
      %v696 = vrot.slane %v695, 4
      %v698 = vshll.u32 %v625, 16
      %v700 = vrot.slane %v698, 5
      %v701 = vsel %vm631, %v696, %v700
      %v703 = vshrl.u32 %v617, 16
      %v705 = vrot.slane %v703, 4
      %v706 = vshll.u32 %v617, 16
      %v708 = vrot.slane %v706, 5
      %v709 = vor.u32 %v705, %v708
      %v710 = vrot.slane %v709, 4
      %v712 = vshll.u32 %v626, 16
      %v714 = vrot.slane %v712, 5
      %v715 = vsel %vm631, %v710, %v714
      %v717 = vshrl.u32 %v618, 16
      %v719 = vrot.slane %v717, 4
      %v720 = vshll.u32 %v618, 16
      %v722 = vrot.slane %v720, 5
      %v723 = vor.u32 %v719, %v722
      %v724 = vrot.slane %v723, 4
      %v726 = vshll.u32 %v627, 16
      %v728 = vrot.slane %v726, 5
      %v729 = vsel %vm631, %v724, %v728
      %v731 = vshrl.u32 %v619, 16
      %v733 = vrot.slane %v731, 4
      %v734 = vshll.u32 %v619, 16
      %v736 = vrot.slane %v734, 5
      %v737 = vor.u32 %v733, %v736
      %v738 = vrot.slane %v737, 4
      %v740 = vshll.u32 %v628, 16
      %v742 = vrot.slane %v740, 5
      %v743 = vsel %vm631, %v738, %v742
      %s744 = scalar_lea.vmem %s1, 2
      %v745 = vld [vmem:[%s744] sm:$0x3]
      %v746 = vunpack.c.l.b16 %v645
      %v747 = vunpack.c.l.b16 %v659
      %v748 = vunpack.c.l.b16 %v673
      %v749 = vunpack.c.l.b16 %v687
      %v750 = vunpack.c.l.b16 %v701
      %v751 = vunpack.c.l.b16 %v715
      %v752 = vunpack.c.l.b16 %v729
      %v753 = vunpack.c.l.b16 %v743
      %v754 = vpack.c.b16 %v747, %v746
      %v755 = vpack.c.b16 %v749, %v748
      %v756 = vpack.c.b16 %v751, %v750
      %v757 = vpack.c.b16 %v753, %v752
      %v759 = vsel %vm376, %v754, 0
      %v762 = vsel %vm376, %v755, 0
      %v765 = vsel %vm376, %v756, 0
      %v768 = vsel %vm376, %v757, 0
      %vm770 = vcmask 1041408
      %v772 = vsel %vm770, %v745, 0
      %774 = vmatpush.bf16.msra.mxu0 0
      %775 = vmatpush.bf16.msra.mxu0 0
      %776 = vmatpush.bf16.msra.mxu0 0
      %777 = vmatpush.bf16.msra.mxu0 0
      %778 = vmatpush.bf16.msra.mxu0 0
      %779 = vmatpush.bf16.msra.mxu0 0
      %780 = vmatpush.bf16.msra.mxu0 0
      %781 = vmatpush.bf16.msra.mxu0 %v772
      %782 = vmatmul.bf16.gmra.mxu0 %v759
      %v783 = vpop.f32.mrf.mxu0
      %v784 = vadd.f32 0.0, %v783
      %v785 = vpop.f32.mrf.mxu0
      %v786 = vadd.f32 0.0, %v785
      %787 = vmatmul.bf16.gmra.mxu0 %v762
      %v788 = vpop.f32.mrf.mxu0
      %v789 = vadd.f32 0.0, %v788
      %v790 = vpop.f32.mrf.mxu0
      %v791 = vadd.f32 0.0, %v790
      %792 = vmatmul.bf16.gmra.mxu0 %v765
      %v793 = vpop.f32.mrf.mxu0
      %v794 = vadd.f32 0.0, %v793
      %v795 = vpop.f32.mrf.mxu0
      %v796 = vadd.f32 0.0, %v795
      %797 = vmatmul.bf16.gmra.mxu0 %v768
      %v798 = vpop.f32.mrf.mxu0
      %v799 = vadd.f32 0.0, %v798
      %v800 = vpop.f32.mrf.mxu0
      %v801 = vadd.f32 0.0, %v800
      %802 = vdwg.mxu0
      %v811 = vunpack.c.l.b16 %v612
      %v812 = vunpack.c.l.b16 %v613
      %v813 = vunpack.c.l.b16 %v614
      %v814 = vunpack.c.l.b16 %v615
      %v815 = vunpack.c.l.b16 %v616
      %v816 = vunpack.c.l.b16 %v617
      %v817 = vunpack.c.l.b16 %v618
      %v818 = vunpack.c.l.b16 %v619
      %v819 = vpack.c.b16 %v812, %v811
      %v820 = vpack.c.b16 %v814, %v813
      %v821 = vpack.c.b16 %v816, %v815
      %v822 = vpack.c.b16 %v818, %v817
      %v824 = vsel %vm376, %v819, 0
      %v827 = vsel %vm376, %v820, 0
      %v830 = vsel %vm376, %v821, 0
      %v833 = vsel %vm376, %v822, 0
      %v836 = vsel %vm770, %v620, 0
      %838 = vmatpush.bf16.msra.mxu0 0
      %839 = vmatpush.bf16.msra.mxu0 0
      %840 = vmatpush.bf16.msra.mxu0 0
      %841 = vmatpush.bf16.msra.mxu0 0
      %842 = vmatpush.bf16.msra.mxu0 0
      %843 = vmatpush.bf16.msra.mxu0 0
      %844 = vmatpush.bf16.msra.mxu0 0
      %845 = vmatpush.bf16.msra.mxu0 %v836
      %846 = vmatmul.bf16.gmra.mxu0 %v824
      %v847 = vpop.f32.mrf.mxu0
      %v848 = vadd.f32 %v784, %v847
      %v849 = vpop.f32.mrf.mxu0
      %v850 = vadd.f32 %v786, %v849
      %851 = vmatmul.bf16.gmra.mxu0 %v827
      %v852 = vpop.f32.mrf.mxu0
      %v853 = vadd.f32 %v789, %v852
      %v854 = vpop.f32.mrf.mxu0
      %v855 = vadd.f32 %v791, %v854
      %856 = vmatmul.bf16.gmra.mxu0 %v830
      %v857 = vpop.f32.mrf.mxu0
      %v858 = vadd.f32 %v794, %v857
      %v859 = vpop.f32.mrf.mxu0
      %v860 = vadd.f32 %v796, %v859
      %861 = vmatmul.bf16.gmra.mxu0 %v833
      %v862 = vpop.f32.mrf.mxu0
      %v863 = vadd.f32 %v799, %v862
      %v864 = vpop.f32.mrf.mxu0
      %v865 = vadd.f32 %v801, %v864
      %866 = vdwg.mxu0
      %v867 = vld [vmem:[#allocation2] sm:$0xe]
      %v868 = vld [vmem:[#allocation2 + $0x8] sm:$0xe]
      %v869 = vld [vmem:[#allocation2 + $0x10] sm:$0xe]
      %v870 = vld [vmem:[#allocation2 + $0x18] sm:$0xe]
      %v871 = vld [vmem:[#allocation2 + $0x20] sm:$0xe]
      %v872 = vld [vmem:[#allocation2 + $0x28] sm:$0xe]
      %v873 = vld [vmem:[#allocation2 + $0x30] sm:$0xe]
      %v874 = vld [vmem:[#allocation2 + $0x38] sm:$0xe]
      %vm891 = vcmask 1042432
      %vm892 = vcmask 1046532
      %vm893 = vmor %vm891, %vm892
      %v894 = vrot.slane %v867, 5
      %v895 = vrot.slane %v894, 4
      %v896 = vrot.slane %v621, 5
      %v897 = vsel %vm893, %v895, %v896
      %v898 = vrot.slane %v868, 5
      %v899 = vrot.slane %v898, 4
      %v900 = vrot.slane %v622, 5
      %v901 = vsel %vm893, %v899, %v900
      %v902 = vrot.slane %v869, 5
      %v903 = vrot.slane %v902, 4
      %v904 = vrot.slane %v623, 5
      %v905 = vsel %vm893, %v903, %v904
      %v906 = vrot.slane %v870, 5
      %v907 = vrot.slane %v906, 4
      %v908 = vrot.slane %v624, 5
      %v909 = vsel %vm893, %v907, %v908
      %v910 = vrot.slane %v871, 5
      %v911 = vrot.slane %v910, 4
      %v912 = vrot.slane %v625, 5
      %v913 = vsel %vm893, %v911, %v912
      %v914 = vrot.slane %v872, 5
      %v915 = vrot.slane %v914, 4
      %v916 = vrot.slane %v626, 5
      %v917 = vsel %vm893, %v915, %v916
      %v918 = vrot.slane %v873, 5
      %v919 = vrot.slane %v918, 4
      %v920 = vrot.slane %v627, 5
      %v921 = vsel %vm893, %v919, %v920
      %v922 = vrot.slane %v874, 5
      %v923 = vrot.slane %v922, 4
      %v924 = vrot.slane %v628, 5
      %v925 = vsel %vm893, %v923, %v924
      %s926 = scalar_lea.vmem %s1, 4
      %v927 = vld [vmem:[%s926] sm:$0x3]
      %v928 = vunpack.c.l.b16 %v897
      %v929 = vunpack.c.l.b16 %v901
      %v930 = vunpack.c.l.b16 %v905
      %v931 = vunpack.c.l.b16 %v909
      %v932 = vunpack.c.l.b16 %v913
      %v933 = vunpack.c.l.b16 %v917
      %v934 = vunpack.c.l.b16 %v921
      %v935 = vunpack.c.l.b16 %v925
      %v936 = vpack.c.b16 %v929, %v928
      %v937 = vpack.c.b16 %v931, %v930
      %v938 = vpack.c.b16 %v933, %v932
      %v939 = vpack.c.b16 %v935, %v934
      %v941 = vsel %vm376, %v936, 0
      %v944 = vsel %vm376, %v937, 0
      %v947 = vsel %vm376, %v938, 0
      %v950 = vsel %vm376, %v939, 0
      %v953 = vsel %vm770, %v927, 0
      %955 = vmatpush.bf16.msra.mxu0 0
      %956 = vmatpush.bf16.msra.mxu0 0
      %957 = vmatpush.bf16.msra.mxu0 0
      %958 = vmatpush.bf16.msra.mxu0 0
      %959 = vmatpush.bf16.msra.mxu0 0
      %960 = vmatpush.bf16.msra.mxu0 0
      %961 = vmatpush.bf16.msra.mxu0 0
      %962 = vmatpush.bf16.msra.mxu0 %v953
      %963 = vmatmul.bf16.gmra.mxu0 %v941
      %v964 = vpop.f32.mrf.mxu0
      %v965 = vadd.f32 0.0, %v964
      %v966 = vpop.f32.mrf.mxu0
      %v967 = vadd.f32 0.0, %v966
      %968 = vmatmul.bf16.gmra.mxu0 %v944
      %v969 = vpop.f32.mrf.mxu0
      %v970 = vadd.f32 0.0, %v969
      %v971 = vpop.f32.mrf.mxu0
      %v972 = vadd.f32 0.0, %v971
      %973 = vmatmul.bf16.gmra.mxu0 %v947
      %v974 = vpop.f32.mrf.mxu0
      %v975 = vadd.f32 0.0, %v974
      %v976 = vpop.f32.mrf.mxu0
      %v977 = vadd.f32 0.0, %v976
      %978 = vmatmul.bf16.gmra.mxu0 %v950
      %v979 = vpop.f32.mrf.mxu0
      %v980 = vadd.f32 0.0, %v979
      %v981 = vpop.f32.mrf.mxu0
      %v982 = vadd.f32 0.0, %v981
      %983 = vdwg.mxu0
      %v984 = vadd.f32 %v848, %v965
      %v985 = vadd.f32 %v850, %v967
      %v986 = vadd.f32 %v853, %v970
      %v987 = vadd.f32 %v855, %v972
      %v988 = vadd.f32 %v858, %v975
      %v989 = vadd.f32 %v860, %v977
      %v990 = vadd.f32 %v863, %v980
      %v991 = vadd.f32 %v865, %v982
      %v992 = vld [vmem:[%s561] sm:$0xf]
      %v993 = vld [vmem:[%s561 + $0x8] sm:$0xf]
      %v994 = vld [vmem:[%s561 + $0x10] sm:$0xf]
      %v995 = vld [vmem:[%s561 + $0x18] sm:$0xf]
      %v996 = vld [vmem:[%s561 + $0x20] sm:$0xf]
      %v997 = vld [vmem:[%s561 + $0x28] sm:$0xf]
      %v998 = vld [vmem:[%s561 + $0x30] sm:$0xf]
      %v999 = vld [vmem:[%s561 + $0x38] sm:$0xf]
      %s1000 = scalar_lea.vmem %s1, 6
      %v1001 = vld [vmem:[%s1000] sm:$0x3]
      %v1010 = vunpack.c.l.b16 %v992
      %v1011 = vunpack.c.l.b16 %v993
      %v1012 = vunpack.c.l.b16 %v994
      %v1013 = vunpack.c.l.b16 %v995
      %v1014 = vunpack.c.l.b16 %v996
      %v1015 = vunpack.c.l.b16 %v997
      %v1016 = vunpack.c.l.b16 %v998
      %v1017 = vunpack.c.l.b16 %v999
      %v1018 = vpack.c.b16 %v1011, %v1010
      %v1019 = vpack.c.b16 %v1013, %v1012
      %v1020 = vpack.c.b16 %v1015, %v1014
      %v1021 = vpack.c.b16 %v1017, %v1016
      %v1023 = vsel %vm376, %v1018, 0
      %v1026 = vsel %vm376, %v1019, 0
      %v1029 = vsel %vm376, %v1020, 0
      %v1032 = vsel %vm376, %v1021, 0
      %v1035 = vsel %vm770, %v1001, 0
      %1037 = vmatpush.bf16.msra.mxu0 0
      %1038 = vmatpush.bf16.msra.mxu0 0
      %1039 = vmatpush.bf16.msra.mxu0 0
      %1040 = vmatpush.bf16.msra.mxu0 0
      %1041 = vmatpush.bf16.msra.mxu0 0
      %1042 = vmatpush.bf16.msra.mxu0 0
      %1043 = vmatpush.bf16.msra.mxu0 0
      %1044 = vmatpush.bf16.msra.mxu0 %v1035
      %1045 = vmatmul.bf16.gmra.mxu0 %v1023
      %v1046 = vpop.f32.mrf.mxu0
      %v1047 = vadd.f32 0.0, %v1046
      %v1048 = vpop.f32.mrf.mxu0
      %v1049 = vadd.f32 0.0, %v1048
      %1050 = vmatmul.bf16.gmra.mxu0 %v1026
      %v1051 = vpop.f32.mrf.mxu0
      %v1052 = vadd.f32 0.0, %v1051
      %v1053 = vpop.f32.mrf.mxu0
      %v1054 = vadd.f32 0.0, %v1053
      %1055 = vmatmul.bf16.gmra.mxu0 %v1029
      %v1056 = vpop.f32.mrf.mxu0
      %v1057 = vadd.f32 0.0, %v1056
      %v1058 = vpop.f32.mrf.mxu0
      %v1059 = vadd.f32 0.0, %v1058
      %1060 = vmatmul.bf16.gmra.mxu0 %v1032
      %v1061 = vpop.f32.mrf.mxu0
      %v1062 = vadd.f32 0.0, %v1061
      %v1063 = vpop.f32.mrf.mxu0
      %v1064 = vadd.f32 0.0, %v1063
      %1065 = vdwg.mxu0
      %v1066 = vadd.f32 %v984, %v1047
      %v1067 = vadd.f32 %v985, %v1049
      %v1068 = vadd.f32 %v986, %v1052
      %v1069 = vadd.f32 %v987, %v1054
      %v1070 = vadd.f32 %v988, %v1057
      %v1071 = vadd.f32 %v989, %v1059
      %v1072 = vadd.f32 %v990, %v1062
      %v1073 = vadd.f32 %v991, %v1064
      %v1074 = vld [vmem:[%s561] sm:$0xf]
      %v1075 = vld [vmem:[%s561 + $0x4] sm:$0x1]
      %v1076 = vld [vmem:[%s561 + $0x8] sm:$0xf]
      %v1077 = vld [vmem:[%s561 + $0xc] sm:$0x1]
      %v1078 = vld [vmem:[%s561 + $0x10] sm:$0xf]
      %v1079 = vld [vmem:[%s561 + $0x14] sm:$0x1]
      %v1080 = vld [vmem:[%s561 + $0x18] sm:$0xf]
      %v1081 = vld [vmem:[%s561 + $0x1c] sm:$0x1]
      %v1082 = vld [vmem:[%s561 + $0x20] sm:$0xf]
      %v1083 = vld [vmem:[%s561 + $0x24] sm:$0x1]
      %v1084 = vld [vmem:[%s561 + $0x28] sm:$0xf]
      %v1085 = vld [vmem:[%s561 + $0x2c] sm:$0x1]
      %v1086 = vld [vmem:[%s561 + $0x30] sm:$0xf]
      %v1087 = vld [vmem:[%s561 + $0x34] sm:$0x1]
      %v1088 = vld [vmem:[%s561 + $0x38] sm:$0xf]
      %v1089 = vld [vmem:[%s561 + $0x3c] sm:$0x1]
      %v1091 = vshrl.u32 %v1074, 16
      %v1093 = vrot.slane %v1091, 4
      %v1094 = vshll.u32 %v1074, 16
      %v1096 = vrot.slane %v1094, 5
      %v1097 = vor.u32 %v1093, %v1096
      %v1098 = vrot.slane %v1097, 4
      %v1100 = vshll.u32 %v1075, 16
      %v1102 = vrot.slane %v1100, 5
      %v1103 = vsel %vm631, %v1098, %v1102
      %v1105 = vshrl.u32 %v1076, 16
      %v1107 = vrot.slane %v1105, 4
      %v1108 = vshll.u32 %v1076, 16
      %v1110 = vrot.slane %v1108, 5
      %v1111 = vor.u32 %v1107, %v1110
      %v1112 = vrot.slane %v1111, 4
      %v1114 = vshll.u32 %v1077, 16
      %v1116 = vrot.slane %v1114, 5
      %v1117 = vsel %vm631, %v1112, %v1116
      %v1119 = vshrl.u32 %v1078, 16
      %v1121 = vrot.slane %v1119, 4
      %v1122 = vshll.u32 %v1078, 16
      %v1124 = vrot.slane %v1122, 5
      %v1125 = vor.u32 %v1121, %v1124
      %v1126 = vrot.slane %v1125, 4
      %v1128 = vshll.u32 %v1079, 16
      %v1130 = vrot.slane %v1128, 5
      %v1131 = vsel %vm631, %v1126, %v1130
      %v1133 = vshrl.u32 %v1080, 16
      %v1135 = vrot.slane %v1133, 4
      %v1136 = vshll.u32 %v1080, 16
      %v1138 = vrot.slane %v1136, 5
      %v1139 = vor.u32 %v1135, %v1138
      %v1140 = vrot.slane %v1139, 4
      %v1142 = vshll.u32 %v1081, 16
      %v1144 = vrot.slane %v1142, 5
      %v1145 = vsel %vm631, %v1140, %v1144
      %v1147 = vshrl.u32 %v1082, 16
      %v1149 = vrot.slane %v1147, 4
      %v1150 = vshll.u32 %v1082, 16
      %v1152 = vrot.slane %v1150, 5
      %v1153 = vor.u32 %v1149, %v1152
      %v1154 = vrot.slane %v1153, 4
      %v1156 = vshll.u32 %v1083, 16
      %v1158 = vrot.slane %v1156, 5
      %v1159 = vsel %vm631, %v1154, %v1158
      %v1161 = vshrl.u32 %v1084, 16
      %v1163 = vrot.slane %v1161, 4
      %v1164 = vshll.u32 %v1084, 16
      %v1166 = vrot.slane %v1164, 5
      %v1167 = vor.u32 %v1163, %v1166
      %v1168 = vrot.slane %v1167, 4
      %v1170 = vshll.u32 %v1085, 16
      %v1172 = vrot.slane %v1170, 5
      %v1173 = vsel %vm631, %v1168, %v1172
      %v1175 = vshrl.u32 %v1086, 16
      %v1177 = vrot.slane %v1175, 4
      %v1178 = vshll.u32 %v1086, 16
      %v1180 = vrot.slane %v1178, 5
      %v1181 = vor.u32 %v1177, %v1180
      %v1182 = vrot.slane %v1181, 4
      %v1184 = vshll.u32 %v1087, 16
      %v1186 = vrot.slane %v1184, 5
      %v1187 = vsel %vm631, %v1182, %v1186
      %v1189 = vshrl.u32 %v1088, 16
      %v1191 = vrot.slane %v1189, 4
      %v1192 = vshll.u32 %v1088, 16
      %v1194 = vrot.slane %v1192, 5
      %v1195 = vor.u32 %v1191, %v1194
      %v1196 = vrot.slane %v1195, 4
      %v1198 = vshll.u32 %v1089, 16
      %v1200 = vrot.slane %v1198, 5
      %v1201 = vsel %vm631, %v1196, %v1200
      %s1202 = scalar_lea.vmem %s1, 8
      %v1203 = vld [vmem:[%s1202] sm:$0x3]
      %v1204 = vunpack.c.l.b16 %v1103
      %v1205 = vunpack.c.l.b16 %v1117
      %v1206 = vunpack.c.l.b16 %v1131
      %v1207 = vunpack.c.l.b16 %v1145
      %v1208 = vunpack.c.l.b16 %v1159
      %v1209 = vunpack.c.l.b16 %v1173
      %v1210 = vunpack.c.l.b16 %v1187
      %v1211 = vunpack.c.l.b16 %v1201
      %v1212 = vpack.c.b16 %v1205, %v1204
      %v1213 = vpack.c.b16 %v1207, %v1206
      %v1214 = vpack.c.b16 %v1209, %v1208
      %v1215 = vpack.c.b16 %v1211, %v1210
      %v1217 = vsel %vm376, %v1212, 0
      %v1220 = vsel %vm376, %v1213, 0
      %v1223 = vsel %vm376, %v1214, 0
      %v1226 = vsel %vm376, %v1215, 0
      %v1229 = vsel %vm770, %v1203, 0
      %1231 = vmatpush.bf16.msra.mxu0 0
      %1232 = vmatpush.bf16.msra.mxu0 0
      %1233 = vmatpush.bf16.msra.mxu0 0
      %1234 = vmatpush.bf16.msra.mxu0 0
      %1235 = vmatpush.bf16.msra.mxu0 0
      %1236 = vmatpush.bf16.msra.mxu0 0
      %1237 = vmatpush.bf16.msra.mxu0 0
      %1238 = vmatpush.bf16.msra.mxu0 %v1229
      %1239 = vmatmul.bf16.gmra.mxu0 %v1217
      %v1240 = vpop.f32.mrf.mxu0
      %v1241 = vadd.f32 0.0, %v1240
      %v1242 = vpop.f32.mrf.mxu0
      %v1243 = vadd.f32 0.0, %v1242
      %1244 = vmatmul.bf16.gmra.mxu0 %v1220
      %v1245 = vpop.f32.mrf.mxu0
      %v1246 = vadd.f32 0.0, %v1245
      %v1247 = vpop.f32.mrf.mxu0
      %v1248 = vadd.f32 0.0, %v1247
      %1249 = vmatmul.bf16.gmra.mxu0 %v1223
      %v1250 = vpop.f32.mrf.mxu0
      %v1251 = vadd.f32 0.0, %v1250
      %v1252 = vpop.f32.mrf.mxu0
      %v1253 = vadd.f32 0.0, %v1252
      %1254 = vmatmul.bf16.gmra.mxu0 %v1226
      %v1255 = vpop.f32.mrf.mxu0
      %v1256 = vadd.f32 0.0, %v1255
      %v1257 = vpop.f32.mrf.mxu0
      %v1258 = vadd.f32 0.0, %v1257
      %1259 = vdwg.mxu0
      %v1260 = vadd.f32 %v1066, %v1241
      %v1261 = vadd.f32 %v1067, %v1243
      %v1262 = vadd.f32 %v1068, %v1246
      %v1263 = vadd.f32 %v1069, %v1248
      %v1264 = vadd.f32 %v1070, %v1251
      %v1265 = vadd.f32 %v1071, %v1253
      %v1266 = vadd.f32 %v1072, %v1256
      %v1267 = vadd.f32 %v1073, %v1258
      %v1268 = vld [vmem:[%s561] sm:$0xe]
      %v1269 = vld [vmem:[%s561 + $0x8] sm:$0xe]
      %v1270 = vld [vmem:[%s561 + $0x10] sm:$0xe]
      %v1271 = vld [vmem:[%s561 + $0x18] sm:$0xe]
      %v1272 = vld [vmem:[%s561 + $0x20] sm:$0xe]
      %v1273 = vld [vmem:[%s561 + $0x28] sm:$0xe]
      %v1274 = vld [vmem:[%s561 + $0x30] sm:$0xe]
      %v1275 = vld [vmem:[%s561 + $0x38] sm:$0xe]
      %v1292 = vrot.slane %v1268, 5
      %v1293 = vrot.slane %v1292, 4
      %v1294 = vrot.slane %v1075, 5
      %v1295 = vsel %vm893, %v1293, %v1294
      %v1296 = vrot.slane %v1269, 5
      %v1297 = vrot.slane %v1296, 4
      %v1298 = vrot.slane %v1077, 5
      %v1299 = vsel %vm893, %v1297, %v1298
      %v1300 = vrot.slane %v1270, 5
      %v1301 = vrot.slane %v1300, 4
      %v1302 = vrot.slane %v1079, 5
      %v1303 = vsel %vm893, %v1301, %v1302
      %v1304 = vrot.slane %v1271, 5
      %v1305 = vrot.slane %v1304, 4
      %v1306 = vrot.slane %v1081, 5
      %v1307 = vsel %vm893, %v1305, %v1306
      %v1308 = vrot.slane %v1272, 5
      %v1309 = vrot.slane %v1308, 4
      %v1310 = vrot.slane %v1083, 5
      %v1311 = vsel %vm893, %v1309, %v1310
      %v1312 = vrot.slane %v1273, 5
      %v1313 = vrot.slane %v1312, 4
      %v1314 = vrot.slane %v1085, 5
      %v1315 = vsel %vm893, %v1313, %v1314
      %v1316 = vrot.slane %v1274, 5
      %v1317 = vrot.slane %v1316, 4
      %v1318 = vrot.slane %v1087, 5
      %v1319 = vsel %vm893, %v1317, %v1318
      %v1320 = vrot.slane %v1275, 5
      %v1321 = vrot.slane %v1320, 4
      %v1322 = vrot.slane %v1089, 5
      %v1323 = vsel %vm893, %v1321, %v1322
      %s1324 = scalar_lea.vmem %s1, 10
      %v1325 = vld [vmem:[%s1324] sm:$0x3]
      %v1326 = vunpack.c.l.b16 %v1295
      %v1327 = vunpack.c.l.b16 %v1299
      %v1328 = vunpack.c.l.b16 %v1303
      %v1329 = vunpack.c.l.b16 %v1307
      %v1330 = vunpack.c.l.b16 %v1311
      %v1331 = vunpack.c.l.b16 %v1315
      %v1332 = vunpack.c.l.b16 %v1319
      %v1333 = vunpack.c.l.b16 %v1323
      %v1334 = vpack.c.b16 %v1327, %v1326
      %v1335 = vpack.c.b16 %v1329, %v1328
      %v1336 = vpack.c.b16 %v1331, %v1330
      %v1337 = vpack.c.b16 %v1333, %v1332
      %v1339 = vsel %vm376, %v1334, 0
      %v1342 = vsel %vm376, %v1335, 0
      %v1345 = vsel %vm376, %v1336, 0
      %v1348 = vsel %vm376, %v1337, 0
      %v1351 = vsel %vm770, %v1325, 0
      %1353 = vmatpush.bf16.msra.mxu0 0
      %1354 = vmatpush.bf16.msra.mxu0 0
      %1355 = vmatpush.bf16.msra.mxu0 0
      %1356 = vmatpush.bf16.msra.mxu0 0
      %1357 = vmatpush.bf16.msra.mxu0 0
      %1358 = vmatpush.bf16.msra.mxu0 0
      %1359 = vmatpush.bf16.msra.mxu0 0
      %1360 = vmatpush.bf16.msra.mxu0 %v1351
      %1361 = vmatmul.bf16.gmra.mxu0 %v1339
      %v1362 = vpop.f32.mrf.mxu0
      %v1363 = vadd.f32 0.0, %v1362
      %v1364 = vpop.f32.mrf.mxu0
      %v1365 = vadd.f32 0.0, %v1364
      %1366 = vmatmul.bf16.gmra.mxu0 %v1342
      %v1367 = vpop.f32.mrf.mxu0
      %v1368 = vadd.f32 0.0, %v1367
      %v1369 = vpop.f32.mrf.mxu0
      %v1370 = vadd.f32 0.0, %v1369
      %1371 = vmatmul.bf16.gmra.mxu0 %v1345
      %v1372 = vpop.f32.mrf.mxu0
      %v1373 = vadd.f32 0.0, %v1372
      %v1374 = vpop.f32.mrf.mxu0
      %v1375 = vadd.f32 0.0, %v1374
      %1376 = vmatmul.bf16.gmra.mxu0 %v1348
      %v1377 = vpop.f32.mrf.mxu0
      %v1378 = vadd.f32 0.0, %v1377
      %v1379 = vpop.f32.mrf.mxu0
      %v1380 = vadd.f32 0.0, %v1379
      %1381 = vdwg.mxu0
      %v1382 = vadd.f32 %v1260, %v1363
      %v1383 = vadd.f32 %v1261, %v1365
      %v1384 = vadd.f32 %v1262, %v1368
      %v1385 = vadd.f32 %v1263, %v1370
      %v1386 = vadd.f32 %v1264, %v1373
      %v1387 = vadd.f32 %v1265, %v1375
      %v1388 = vadd.f32 %v1266, %v1378
      %v1389 = vadd.f32 %v1267, %v1380
      %s1390 = scalar_lea.vmem [#allocation2], 16
      %v1391 = vld [vmem:[%s1390] sm:$0xf]
      %v1392 = vld [vmem:[%s1390 + $0x8] sm:$0xf]
      %v1393 = vld [vmem:[%s1390 + $0x10] sm:$0xf]
      %v1394 = vld [vmem:[%s1390 + $0x18] sm:$0xf]
      %v1395 = vld [vmem:[%s1390 + $0x20] sm:$0xf]
      %v1396 = vld [vmem:[%s1390 + $0x28] sm:$0xf]
      %v1397 = vld [vmem:[%s1390 + $0x30] sm:$0xf]
      %v1398 = vld [vmem:[%s1390 + $0x38] sm:$0xf]
      %s1399 = scalar_lea.vmem %s1, 12
      %v1400 = vld [vmem:[%s1399] sm:$0x3]
      %v1409 = vunpack.c.l.b16 %v1391
      %v1410 = vunpack.c.l.b16 %v1392
      %v1411 = vunpack.c.l.b16 %v1393
      %v1412 = vunpack.c.l.b16 %v1394
      %v1413 = vunpack.c.l.b16 %v1395
      %v1414 = vunpack.c.l.b16 %v1396
      %v1415 = vunpack.c.l.b16 %v1397
      %v1416 = vunpack.c.l.b16 %v1398
      %v1417 = vpack.c.b16 %v1410, %v1409
      %v1418 = vpack.c.b16 %v1412, %v1411
      %v1419 = vpack.c.b16 %v1414, %v1413
      %v1420 = vpack.c.b16 %v1416, %v1415
      %v1422 = vsel %vm376, %v1417, 0
      %v1425 = vsel %vm376, %v1418, 0
      %v1428 = vsel %vm376, %v1419, 0
      %v1431 = vsel %vm376, %v1420, 0
      %v1434 = vsel %vm770, %v1400, 0
      %1436 = vmatpush.bf16.msra.mxu0 0
      %1437 = vmatpush.bf16.msra.mxu0 0
      %1438 = vmatpush.bf16.msra.mxu0 0
      %1439 = vmatpush.bf16.msra.mxu0 0
      %1440 = vmatpush.bf16.msra.mxu0 0
      %1441 = vmatpush.bf16.msra.mxu0 0
      %1442 = vmatpush.bf16.msra.mxu0 0
      %1443 = vmatpush.bf16.msra.mxu0 %v1434
      %1444 = vmatmul.bf16.gmra.mxu0 %v1422
      %v1445 = vpop.f32.mrf.mxu0
      %v1446 = vadd.f32 0.0, %v1445
      %v1447 = vpop.f32.mrf.mxu0
      %v1448 = vadd.f32 0.0, %v1447
      %1449 = vmatmul.bf16.gmra.mxu0 %v1425
      %v1450 = vpop.f32.mrf.mxu0
      %v1451 = vadd.f32 0.0, %v1450
      %v1452 = vpop.f32.mrf.mxu0
      %v1453 = vadd.f32 0.0, %v1452
      %1454 = vmatmul.bf16.gmra.mxu0 %v1428
      %v1455 = vpop.f32.mrf.mxu0
      %v1456 = vadd.f32 0.0, %v1455
      %v1457 = vpop.f32.mrf.mxu0
      %v1458 = vadd.f32 0.0, %v1457
      %1459 = vmatmul.bf16.gmra.mxu0 %v1431
      %v1460 = vpop.f32.mrf.mxu0
      %v1461 = vadd.f32 0.0, %v1460
      %v1462 = vpop.f32.mrf.mxu0
      %v1463 = vadd.f32 0.0, %v1462
      %1464 = vdwg.mxu0
      %v1465 = vadd.f32 %v1382, %v1446
      %v1466 = vadd.f32 %v1383, %v1448
      %v1467 = vadd.f32 %v1384, %v1451
      %v1468 = vadd.f32 %v1385, %v1453
      %v1469 = vadd.f32 %v1386, %v1456
      %v1470 = vadd.f32 %v1387, %v1458
      %v1471 = vadd.f32 %v1388, %v1461
      %v1472 = vadd.f32 %v1389, %v1463
      %v1473 = vld [vmem:[%s1390] sm:$0xf]
      %v1474 = vld [vmem:[%s1390 + $0x4] sm:$0x1]
      %v1475 = vld [vmem:[%s1390 + $0x8] sm:$0xf]
      %v1476 = vld [vmem:[%s1390 + $0xc] sm:$0x1]
      %v1477 = vld [vmem:[%s1390 + $0x10] sm:$0xf]
      %v1478 = vld [vmem:[%s1390 + $0x14] sm:$0x1]
      %v1479 = vld [vmem:[%s1390 + $0x18] sm:$0xf]
      %v1480 = vld [vmem:[%s1390 + $0x1c] sm:$0x1]
      %v1481 = vld [vmem:[%s1390 + $0x20] sm:$0xf]
      %v1482 = vld [vmem:[%s1390 + $0x24] sm:$0x1]
      %v1483 = vld [vmem:[%s1390 + $0x28] sm:$0xf]
      %v1484 = vld [vmem:[%s1390 + $0x2c] sm:$0x1]
      %v1485 = vld [vmem:[%s1390 + $0x30] sm:$0xf]
      %v1486 = vld [vmem:[%s1390 + $0x34] sm:$0x1]
      %v1487 = vld [vmem:[%s1390 + $0x38] sm:$0xf]
      %v1488 = vld [vmem:[%s1390 + $0x3c] sm:$0x1]
      %v1490 = vshrl.u32 %v1473, 16
      %v1492 = vrot.slane %v1490, 4
      %v1493 = vshll.u32 %v1473, 16
      %v1495 = vrot.slane %v1493, 5
      %v1496 = vor.u32 %v1492, %v1495
      %v1497 = vrot.slane %v1496, 4
      %v1499 = vshll.u32 %v1474, 16
      %v1501 = vrot.slane %v1499, 5
      %v1502 = vsel %vm631, %v1497, %v1501
      %v1504 = vshrl.u32 %v1475, 16
      %v1506 = vrot.slane %v1504, 4
      %v1507 = vshll.u32 %v1475, 16
      %v1509 = vrot.slane %v1507, 5
      %v1510 = vor.u32 %v1506, %v1509
      %v1511 = vrot.slane %v1510, 4
      %v1513 = vshll.u32 %v1476, 16
      %v1515 = vrot.slane %v1513, 5
      %v1516 = vsel %vm631, %v1511, %v1515
      %v1518 = vshrl.u32 %v1477, 16
      %v1520 = vrot.slane %v1518, 4
      %v1521 = vshll.u32 %v1477, 16
      %v1523 = vrot.slane %v1521, 5
      %v1524 = vor.u32 %v1520, %v1523
      %v1525 = vrot.slane %v1524, 4
      %v1527 = vshll.u32 %v1478, 16
      %v1529 = vrot.slane %v1527, 5
      %v1530 = vsel %vm631, %v1525, %v1529
      %v1532 = vshrl.u32 %v1479, 16
      %v1534 = vrot.slane %v1532, 4
      %v1535 = vshll.u32 %v1479, 16
      %v1537 = vrot.slane %v1535, 5
      %v1538 = vor.u32 %v1534, %v1537
      %v1539 = vrot.slane %v1538, 4
      %v1541 = vshll.u32 %v1480, 16
      %v1543 = vrot.slane %v1541, 5
      %v1544 = vsel %vm631, %v1539, %v1543
      %v1546 = vshrl.u32 %v1481, 16
      %v1548 = vrot.slane %v1546, 4
      %v1549 = vshll.u32 %v1481, 16
      %v1551 = vrot.slane %v1549, 5
      %v1552 = vor.u32 %v1548, %v1551
      %v1553 = vrot.slane %v1552, 4
      %v1555 = vshll.u32 %v1482, 16
      %v1557 = vrot.slane %v1555, 5
      %v1558 = vsel %vm631, %v1553, %v1557
      %v1560 = vshrl.u32 %v1483, 16
      %v1562 = vrot.slane %v1560, 4
      %v1563 = vshll.u32 %v1483, 16
      %v1565 = vrot.slane %v1563, 5
      %v1566 = vor.u32 %v1562, %v1565
      %v1567 = vrot.slane %v1566, 4
      %v1569 = vshll.u32 %v1484, 16
      %v1571 = vrot.slane %v1569, 5
      %v1572 = vsel %vm631, %v1567, %v1571
      %v1574 = vshrl.u32 %v1485, 16
      %v1576 = vrot.slane %v1574, 4
      %v1577 = vshll.u32 %v1485, 16
      %v1579 = vrot.slane %v1577, 5
      %v1580 = vor.u32 %v1576, %v1579
      %v1581 = vrot.slane %v1580, 4
      %v1583 = vshll.u32 %v1486, 16
      %v1585 = vrot.slane %v1583, 5
      %v1586 = vsel %vm631, %v1581, %v1585
      %v1588 = vshrl.u32 %v1487, 16
      %v1590 = vrot.slane %v1588, 4
      %v1591 = vshll.u32 %v1487, 16
      %v1593 = vrot.slane %v1591, 5
      %v1594 = vor.u32 %v1590, %v1593
      %v1595 = vrot.slane %v1594, 4
      %v1597 = vshll.u32 %v1488, 16
      %v1599 = vrot.slane %v1597, 5
      %v1600 = vsel %vm631, %v1595, %v1599
      %s1601 = scalar_lea.vmem %s1, 14
      %v1602 = vld [vmem:[%s1601] sm:$0x3]
      %v1603 = vunpack.c.l.b16 %v1502
      %v1604 = vunpack.c.l.b16 %v1516
      %v1605 = vunpack.c.l.b16 %v1530
      %v1606 = vunpack.c.l.b16 %v1544
      %v1607 = vunpack.c.l.b16 %v1558
      %v1608 = vunpack.c.l.b16 %v1572
      %v1609 = vunpack.c.l.b16 %v1586
      %v1610 = vunpack.c.l.b16 %v1600
      %v1611 = vpack.c.b16 %v1604, %v1603
      %v1612 = vpack.c.b16 %v1606, %v1605
      %v1613 = vpack.c.b16 %v1608, %v1607
      %v1614 = vpack.c.b16 %v1610, %v1609
      %v1616 = vsel %vm376, %v1611, 0
      %v1619 = vsel %vm376, %v1612, 0
      %v1622 = vsel %vm376, %v1613, 0
      %v1625 = vsel %vm376, %v1614, 0
      %v1628 = vsel %vm770, %v1602, 0
      %1630 = vmatpush.bf16.msra.mxu0 0
      %1631 = vmatpush.bf16.msra.mxu0 0
      %1632 = vmatpush.bf16.msra.mxu0 0
      %1633 = vmatpush.bf16.msra.mxu0 0
      %1634 = vmatpush.bf16.msra.mxu0 0
      %1635 = vmatpush.bf16.msra.mxu0 0
      %1636 = vmatpush.bf16.msra.mxu0 0
      %1637 = vmatpush.bf16.msra.mxu0 %v1628
      %1638 = vmatmul.bf16.gmra.mxu0 %v1616
      %v1639 = vpop.f32.mrf.mxu0
      %v1640 = vadd.f32 0.0, %v1639
      %v1641 = vpop.f32.mrf.mxu0
      %v1642 = vadd.f32 0.0, %v1641
      %1643 = vmatmul.bf16.gmra.mxu0 %v1619
      %v1644 = vpop.f32.mrf.mxu0
      %v1645 = vadd.f32 0.0, %v1644
      %v1646 = vpop.f32.mrf.mxu0
      %v1647 = vadd.f32 0.0, %v1646
      %1648 = vmatmul.bf16.gmra.mxu0 %v1622
      %v1649 = vpop.f32.mrf.mxu0
      %v1650 = vadd.f32 0.0, %v1649
      %v1651 = vpop.f32.mrf.mxu0
      %v1652 = vadd.f32 0.0, %v1651
      %1653 = vmatmul.bf16.gmra.mxu0 %v1625
      %v1654 = vpop.f32.mrf.mxu0
      %v1655 = vadd.f32 0.0, %v1654
      %v1656 = vpop.f32.mrf.mxu0
      %v1657 = vadd.f32 0.0, %v1656
      %1658 = vdwg.mxu0
      %v1659 = vadd.f32 %v1465, %v1640
      %v1660 = vadd.f32 %v1466, %v1642
      %v1661 = vadd.f32 %v1467, %v1645
      %v1662 = vadd.f32 %v1468, %v1647
      %v1663 = vadd.f32 %v1469, %v1650
      %v1664 = vadd.f32 %v1470, %v1652
      %v1665 = vadd.f32 %v1471, %v1655
      %v1666 = vadd.f32 %v1472, %v1657
      %v1667 = vld [vmem:[%s1390] sm:$0xe]
      %v1668 = vld [vmem:[%s1390 + $0x8] sm:$0xe]
      %v1669 = vld [vmem:[%s1390 + $0x10] sm:$0xe]
      %v1670 = vld [vmem:[%s1390 + $0x18] sm:$0xe]
      %v1671 = vld [vmem:[%s1390 + $0x20] sm:$0xe]
      %v1672 = vld [vmem:[%s1390 + $0x28] sm:$0xe]
      %v1673 = vld [vmem:[%s1390 + $0x30] sm:$0xe]
      %v1674 = vld [vmem:[%s1390 + $0x38] sm:$0xe]
      %v1691 = vrot.slane %v1667, 5
      %v1692 = vrot.slane %v1691, 4
      %v1693 = vrot.slane %v1474, 5
      %v1694 = vsel %vm893, %v1692, %v1693
      %v1695 = vrot.slane %v1668, 5
      %v1696 = vrot.slane %v1695, 4
      %v1697 = vrot.slane %v1476, 5
      %v1698 = vsel %vm893, %v1696, %v1697
      %v1699 = vrot.slane %v1669, 5
      %v1700 = vrot.slane %v1699, 4
      %v1701 = vrot.slane %v1478, 5
      %v1702 = vsel %vm893, %v1700, %v1701
      %v1703 = vrot.slane %v1670, 5
      %v1704 = vrot.slane %v1703, 4
      %v1705 = vrot.slane %v1480, 5
      %v1706 = vsel %vm893, %v1704, %v1705
      %v1707 = vrot.slane %v1671, 5
      %v1708 = vrot.slane %v1707, 4
      %v1709 = vrot.slane %v1482, 5
      %v1710 = vsel %vm893, %v1708, %v1709
      %v1711 = vrot.slane %v1672, 5
      %v1712 = vrot.slane %v1711, 4
      %v1713 = vrot.slane %v1484, 5
      %v1714 = vsel %vm893, %v1712, %v1713
      %v1715 = vrot.slane %v1673, 5
      %v1716 = vrot.slane %v1715, 4
      %v1717 = vrot.slane %v1486, 5
      %v1718 = vsel %vm893, %v1716, %v1717
      %v1719 = vrot.slane %v1674, 5
      %v1720 = vrot.slane %v1719, 4
      %v1721 = vrot.slane %v1488, 5
      %v1722 = vsel %vm893, %v1720, %v1721
      %s1723 = scalar_lea.vmem %s1, 16
      %v1724 = vld [vmem:[%s1723] sm:$0x3]
      %v1725 = vunpack.c.l.b16 %v1694
      %v1726 = vunpack.c.l.b16 %v1698
      %v1727 = vunpack.c.l.b16 %v1702
      %v1728 = vunpack.c.l.b16 %v1706
      %v1729 = vunpack.c.l.b16 %v1710
      %v1730 = vunpack.c.l.b16 %v1714
      %v1731 = vunpack.c.l.b16 %v1718
      %v1732 = vunpack.c.l.b16 %v1722
      %v1733 = vpack.c.b16 %v1726, %v1725
      %v1734 = vpack.c.b16 %v1728, %v1727
      %v1735 = vpack.c.b16 %v1730, %v1729
      %v1736 = vpack.c.b16 %v1732, %v1731
      %v1738 = vsel %vm376, %v1733, 0
      %v1741 = vsel %vm376, %v1734, 0
      %v1744 = vsel %vm376, %v1735, 0
      %v1747 = vsel %vm376, %v1736, 0
      %v1750 = vsel %vm770, %v1724, 0
      %1752 = vmatpush.bf16.msra.mxu0 0
      %1753 = vmatpush.bf16.msra.mxu0 0
      %1754 = vmatpush.bf16.msra.mxu0 0
      %1755 = vmatpush.bf16.msra.mxu0 0
      %1756 = vmatpush.bf16.msra.mxu0 0
      %1757 = vmatpush.bf16.msra.mxu0 0
      %1758 = vmatpush.bf16.msra.mxu0 0
      %1759 = vmatpush.bf16.msra.mxu0 %v1750
      %1760 = vmatmul.bf16.gmra.mxu0 %v1738
      %v1761 = vpop.f32.mrf.mxu0
      %v1762 = vadd.f32 0.0, %v1761
      %v1763 = vpop.f32.mrf.mxu0
      %v1764 = vadd.f32 0.0, %v1763
      %1765 = vmatmul.bf16.gmra.mxu0 %v1741
      %v1766 = vpop.f32.mrf.mxu0
      %v1767 = vadd.f32 0.0, %v1766
      %v1768 = vpop.f32.mrf.mxu0
      %v1769 = vadd.f32 0.0, %v1768
      %1770 = vmatmul.bf16.gmra.mxu0 %v1744
      %v1771 = vpop.f32.mrf.mxu0
      %v1772 = vadd.f32 0.0, %v1771
      %v1773 = vpop.f32.mrf.mxu0
      %v1774 = vadd.f32 0.0, %v1773
      %1775 = vmatmul.bf16.gmra.mxu0 %v1747
      %v1776 = vpop.f32.mrf.mxu0
      %v1777 = vadd.f32 0.0, %v1776
      %v1778 = vpop.f32.mrf.mxu0
      %v1779 = vadd.f32 0.0, %v1778
      %1780 = vdwg.mxu0
      %v1781 = vadd.f32 %v1659, %v1762
      %v1782 = vadd.f32 %v1660, %v1764
      %v1783 = vadd.f32 %v1661, %v1767
      %v1784 = vadd.f32 %v1662, %v1769
      %v1785 = vadd.f32 %v1663, %v1772
      %v1786 = vadd.f32 %v1664, %v1774
      %v1787 = vadd.f32 %v1665, %v1777
      %v1788 = vadd.f32 %v1666, %v1779
      %v1789 = vld [vmem:[%s2] sm:$0x1]
      %v1791 = vperm.slane %v1789, 0
      %v1793 = vmul.f32 %v1781, %v1791
      %v1794 = vmul.f32 %v1782, %v1791
      %v1795 = vmul.f32 %v1783, %v1791
      %v1796 = vmul.f32 %v1784, %v1791
      %v1797 = vmul.f32 %v1785, %v1791
      %v1798 = vmul.f32 %v1786, %v1791
      %v1799 = vmul.f32 %v1787, %v1791
      %v1800 = vmul.f32 %v1788, %v1791
      %v1801 = vld [vmem:[%s3] sm:$0x1]
      %v1803 = vperm.slane %v1801, 0
      %v1805 = vadd.f32 %v1793, %v1803
      %v1806 = vadd.f32 %v1794, %v1803
      %v1807 = vadd.f32 %v1795, %v1803
      %v1808 = vadd.f32 %v1796, %v1803
      %v1809 = vadd.f32 %v1797, %v1803
      %v1810 = vadd.f32 %v1798, %v1803
      %v1811 = vadd.f32 %v1799, %v1803
      %v1812 = vadd.f32 %v1800, %v1803
      %v1813 = vmax.f32 %v1805, 0.0
      %v1814 = vmax.f32 %v1806, 0.0
      %v1815 = vmax.f32 %v1807, 0.0
      %v1816 = vmax.f32 %v1808, 0.0
      %v1817 = vmax.f32 %v1809, 0.0
      %v1818 = vmax.f32 %v1810, 0.0
      %v1819 = vmax.f32 %v1811, 0.0
      %v1820 = vmax.f32 %v1812, 0.0
      %vm1821 = vcmask 60416
      %1822 = vst.msk [vmem:[#allocation3] sm:$0xf] %vm1821, 0
      %vm1823 = vcmask 57344
      %1824 = vst.msk [vmem:[#allocation3 + $0x4] sm:$0x1] %vm1823, 0
      %s1825 = scalar_lea.vmem [#allocation3], 72
      %1826 = vst.msk [vmem:[%s1825] sm:$0xf] %vm1821, 0
      %1827 = vst.msk [vmem:[%s1825 + $0x4] sm:$0x1] %vm1823, 0
      %vm1828 = vcmask 57344
      %vm1829 = vmand %vm1828, %vm409
      %v1830 = vld [vmem:[#allocation3] sm:$0x1]
      %v1831 = vsel %vm1829, 0, %v1830
      %1832 = vst [vmem:[#allocation3] sm:$0x1] %v1831
      %v1833 = vld [vmem:[#allocation3 + $0x8] sm:$0x1]
      %v1834 = vsel %vm1829, 0, %v1833
      %1835 = vst [vmem:[#allocation3 + $0x8] sm:$0x1] %v1834
      %v1836 = vld [vmem:[#allocation3 + $0x10] sm:$0x1]
      %v1837 = vsel %vm1829, 0, %v1836
      %1838 = vst [vmem:[#allocation3 + $0x10] sm:$0x1] %v1837
      %v1839 = vld [vmem:[#allocation3 + $0x18] sm:$0x1]
      %v1840 = vsel %vm1829, 0, %v1839
      %1841 = vst [vmem:[#allocation3 + $0x18] sm:$0x1] %v1840
      %v1842 = vld [vmem:[#allocation3 + $0x20] sm:$0x1]
      %v1843 = vsel %vm1829, 0, %v1842
      %1844 = vst [vmem:[#allocation3 + $0x20] sm:$0x1] %v1843
      %v1845 = vld [vmem:[#allocation3 + $0x28] sm:$0x1]
      %v1846 = vsel %vm1829, 0, %v1845
      %1847 = vst [vmem:[#allocation3 + $0x28] sm:$0x1] %v1846
      %v1848 = vld [vmem:[#allocation3 + $0x30] sm:$0x1]
      %v1849 = vsel %vm1829, 0, %v1848
      %1850 = vst [vmem:[#allocation3 + $0x30] sm:$0x1] %v1849
      %v1851 = vld [vmem:[#allocation3 + $0x38] sm:$0x1]
      %v1852 = vsel %vm1829, 0, %v1851
      %1853 = vst [vmem:[#allocation3 + $0x38] sm:$0x1] %v1852
      %v1854 = vld [vmem:[#allocation3 + $0x40] sm:$0x1]
      %v1855 = vsel %vm1829, 0, %v1854
      %1856 = vst [vmem:[#allocation3 + $0x40] sm:$0x1] %v1855
      %v1857 = vld [vmem:[#allocation3 + $0x48] sm:$0x1]
      %v1858 = vsel %vm1829, 0, %v1857
      %1859 = vst [vmem:[#allocation3 + $0x48] sm:$0x1] %v1858
      %vm1860 = vmand %vm1828, %vm441
      %v1861 = vld [vmem:[#allocation3 + $0x4] sm:$0x1]
      %v1862 = vsel %vm1860, 0, %v1861
      %1863 = vst [vmem:[#allocation3 + $0x4] sm:$0x1] %v1862
      %v1864 = vld [vmem:[#allocation3 + $0xc] sm:$0x1]
      %v1865 = vsel %vm1860, 0, %v1864
      %1866 = vst [vmem:[#allocation3 + $0xc] sm:$0x1] %v1865
      %v1867 = vld [vmem:[#allocation3 + $0x14] sm:$0x1]
      %v1868 = vsel %vm1860, 0, %v1867
      %1869 = vst [vmem:[#allocation3 + $0x14] sm:$0x1] %v1868
      %v1870 = vld [vmem:[#allocation3 + $0x1c] sm:$0x1]
      %v1871 = vsel %vm1860, 0, %v1870
      %1872 = vst [vmem:[#allocation3 + $0x1c] sm:$0x1] %v1871
      %v1873 = vld [vmem:[#allocation3 + $0x24] sm:$0x1]
      %v1874 = vsel %vm1860, 0, %v1873
      %1875 = vst [vmem:[#allocation3 + $0x24] sm:$0x1] %v1874
      %v1876 = vld [vmem:[#allocation3 + $0x2c] sm:$0x1]
      %v1877 = vsel %vm1860, 0, %v1876
      %1878 = vst [vmem:[#allocation3 + $0x2c] sm:$0x1] %v1877
      %v1879 = vld [vmem:[#allocation3 + $0x34] sm:$0x1]
      %v1880 = vsel %vm1860, 0, %v1879
      %1881 = vst [vmem:[#allocation3 + $0x34] sm:$0x1] %v1880
      %v1882 = vld [vmem:[#allocation3 + $0x3c] sm:$0x1]
      %v1883 = vsel %vm1860, 0, %v1882
      %1884 = vst [vmem:[#allocation3 + $0x3c] sm:$0x1] %v1883
      %v1885 = vld [vmem:[#allocation3 + $0x44] sm:$0x1]
      %v1886 = vsel %vm1860, 0, %v1885
      %1887 = vst [vmem:[#allocation3 + $0x44] sm:$0x1] %v1886
      %v1888 = vld [vmem:[#allocation3 + $0x4c] sm:$0x1]
      %v1889 = vsel %vm1860, 0, %v1888
      %1890 = vst [vmem:[#allocation3 + $0x4c] sm:$0x1] %v1889
      %v1891 = vpack.c.bf16 %v1813, %v1813
      %v1892 = vpack.c.bf16 %v1814, %v1814
      %v1893 = vpack.c.bf16 %v1815, %v1815
      %v1894 = vpack.c.bf16 %v1816, %v1816
      %v1895 = vpack.c.bf16 %v1817, %v1817
      %v1896 = vpack.c.bf16 %v1818, %v1818
      %v1897 = vpack.c.bf16 %v1819, %v1819
      %v1898 = vpack.c.bf16 %v1820, %v1820
      %v1900 = vshrl.u32 %v1891, 16
      %v1902 = vrot.slane %v1900, 7
      %v1903 = vshll.u32 %v1891, 16
      %v1905 = vor.u32 %v1902, %v1903
      %v1906 = vrot.slane %v1902, 4
      %v1908 = vshrl.u32 %v1892, 16
      %v1910 = vrot.slane %v1908, 7
      %v1911 = vshll.u32 %v1892, 16
      %v1913 = vor.u32 %v1910, %v1911
      %v1914 = vrot.slane %v1910, 4
      %v1916 = vshrl.u32 %v1893, 16
      %v1918 = vrot.slane %v1916, 7
      %v1919 = vshll.u32 %v1893, 16
      %v1921 = vor.u32 %v1918, %v1919
      %v1922 = vrot.slane %v1918, 4
      %v1924 = vshrl.u32 %v1894, 16
      %v1926 = vrot.slane %v1924, 7
      %v1927 = vshll.u32 %v1894, 16
      %v1929 = vor.u32 %v1926, %v1927
      %v1930 = vrot.slane %v1926, 4
      %v1932 = vshrl.u32 %v1895, 16
      %v1934 = vrot.slane %v1932, 7
      %v1935 = vshll.u32 %v1895, 16
      %v1937 = vor.u32 %v1934, %v1935
      %v1938 = vrot.slane %v1934, 4
      %v1940 = vshrl.u32 %v1896, 16
      %v1942 = vrot.slane %v1940, 7
      %v1943 = vshll.u32 %v1896, 16
      %v1945 = vor.u32 %v1942, %v1943
      %v1946 = vrot.slane %v1942, 4
      %v1948 = vshrl.u32 %v1897, 16
      %v1950 = vrot.slane %v1948, 7
      %v1951 = vshll.u32 %v1897, 16
      %v1953 = vor.u32 %v1950, %v1951
      %v1954 = vrot.slane %v1950, 4
      %v1956 = vshrl.u32 %v1898, 16
      %v1958 = vrot.slane %v1956, 7
      %v1959 = vshll.u32 %v1898, 16
      %v1961 = vor.u32 %v1958, %v1959
      %v1962 = vrot.slane %v1958, 4
      %s1979 = scalar_lea.vmem [#allocation3], 8
      %vm1980 = vcmask 60416
      %vm1981 = vmand %vm1980, %vm441
      %v1982 = vld [vmem:[%s1979] sm:$0xf]
      %v1983 = vsel %vm1981, %v1905, %v1982
      %1984 = vst [vmem:[%s1979] sm:$0xf] %v1983
      %v1985 = vld [vmem:[%s1979 + $0x4] sm:$0x1]
      %v1986 = vsel %vm1829, %v1906, %v1985
      %1987 = vst [vmem:[%s1979 + $0x4] sm:$0x1] %v1986
      %v1988 = vld [vmem:[%s1979 + $0x8] sm:$0xf]
      %v1989 = vsel %vm1981, %v1913, %v1988
      %1990 = vst [vmem:[%s1979 + $0x8] sm:$0xf] %v1989
      %v1991 = vld [vmem:[%s1979 + $0xc] sm:$0x1]
      %v1992 = vsel %vm1829, %v1914, %v1991
      %1993 = vst [vmem:[%s1979 + $0xc] sm:$0x1] %v1992
      %v1994 = vld [vmem:[%s1979 + $0x10] sm:$0xf]
      %v1995 = vsel %vm1981, %v1921, %v1994
      %1996 = vst [vmem:[%s1979 + $0x10] sm:$0xf] %v1995
      %v1997 = vld [vmem:[%s1979 + $0x14] sm:$0x1]
      %v1998 = vsel %vm1829, %v1922, %v1997
      %1999 = vst [vmem:[%s1979 + $0x14] sm:$0x1] %v1998
      %v2000 = vld [vmem:[%s1979 + $0x18] sm:$0xf]
      %v2001 = vsel %vm1981, %v1929, %v2000
      %2002 = vst [vmem:[%s1979 + $0x18] sm:$0xf] %v2001
      %v2003 = vld [vmem:[%s1979 + $0x1c] sm:$0x1]
      %v2004 = vsel %vm1829, %v1930, %v2003
      %2005 = vst [vmem:[%s1979 + $0x1c] sm:$0x1] %v2004
      %v2006 = vld [vmem:[%s1979 + $0x20] sm:$0xf]
      %v2007 = vsel %vm1981, %v1937, %v2006
      %2008 = vst [vmem:[%s1979 + $0x20] sm:$0xf] %v2007
      %v2009 = vld [vmem:[%s1979 + $0x24] sm:$0x1]
      %v2010 = vsel %vm1829, %v1938, %v2009
      %2011 = vst [vmem:[%s1979 + $0x24] sm:$0x1] %v2010
      %v2012 = vld [vmem:[%s1979 + $0x28] sm:$0xf]
      %v2013 = vsel %vm1981, %v1945, %v2012
      %2014 = vst [vmem:[%s1979 + $0x28] sm:$0xf] %v2013
      %v2015 = vld [vmem:[%s1979 + $0x2c] sm:$0x1]
      %v2016 = vsel %vm1829, %v1946, %v2015
      %2017 = vst [vmem:[%s1979 + $0x2c] sm:$0x1] %v2016
      %v2018 = vld [vmem:[%s1979 + $0x30] sm:$0xf]
      %v2019 = vsel %vm1981, %v1953, %v2018
      %2020 = vst [vmem:[%s1979 + $0x30] sm:$0xf] %v2019
      %v2021 = vld [vmem:[%s1979 + $0x34] sm:$0x1]
      %v2022 = vsel %vm1829, %v1954, %v2021
      %2023 = vst [vmem:[%s1979 + $0x34] sm:$0x1] %v2022
      %v2024 = vld [vmem:[%s1979 + $0x38] sm:$0xf]
      %v2025 = vsel %vm1981, %v1961, %v2024
      %2026 = vst [vmem:[%s1979 + $0x38] sm:$0xf] %v2025
      %v2027 = vld [vmem:[%s1979 + $0x3c] sm:$0x1]
      %v2028 = vsel %vm1829, %v1962, %v2027
      %2029 = vst [vmem:[%s1979 + $0x3c] sm:$0x1] %v2028
      %v2030 = vld [vmem:[#allocation3] sm:$0xf]
      %v2031 = vld [vmem:[#allocation3 + $0x8] sm:$0xf]
      %v2032 = vld [vmem:[#allocation3 + $0x10] sm:$0xf]
      %v2033 = vld [vmem:[#allocation3 + $0x18] sm:$0xf]
      %v2034 = vld [vmem:[#allocation3 + $0x20] sm:$0xf]
      %v2035 = vld [vmem:[#allocation3 + $0x28] sm:$0xf]
      %v2036 = vld [vmem:[#allocation3 + $0x30] sm:$0xf]
      %v2037 = vld [vmem:[#allocation3 + $0x38] sm:$0xf]
      %v2038 = vld [vmem:[%s4] sm:$0xf]
      %v2039 = vld [vmem:[#allocation3 + $0x4] sm:$0x1]
      %v2040 = vld [vmem:[#allocation3 + $0xc] sm:$0x1]
      %v2041 = vld [vmem:[#allocation3 + $0x14] sm:$0x1]
      %v2042 = vld [vmem:[#allocation3 + $0x1c] sm:$0x1]
      %v2043 = vld [vmem:[#allocation3 + $0x24] sm:$0x1]
      %v2044 = vld [vmem:[#allocation3 + $0x2c] sm:$0x1]
      %v2045 = vld [vmem:[#allocation3 + $0x34] sm:$0x1]
      %v2046 = vld [vmem:[#allocation3 + $0x3c] sm:$0x1]
      %v2048 = vshrl.u32 %v2030, 16
      %v2050 = vrot.slane %v2048, 4
      %v2051 = vshll.u32 %v2030, 16
      %v2053 = vrot.slane %v2051, 5
      %v2054 = vor.u32 %v2050, %v2053
      %v2055 = vrot.slane %v2054, 4
      %v2057 = vshll.u32 %v2039, 16
      %v2059 = vrot.slane %v2057, 5
      %v2060 = vsel %vm631, %v2055, %v2059
      %v2062 = vshrl.u32 %v2031, 16
      %v2064 = vrot.slane %v2062, 4
      %v2065 = vshll.u32 %v2031, 16
      %v2067 = vrot.slane %v2065, 5
      %v2068 = vor.u32 %v2064, %v2067
      %v2069 = vrot.slane %v2068, 4
      %v2071 = vshll.u32 %v2040, 16
      %v2073 = vrot.slane %v2071, 5
      %v2074 = vsel %vm631, %v2069, %v2073
      %v2076 = vshrl.u32 %v2032, 16
      %v2078 = vrot.slane %v2076, 4
      %v2079 = vshll.u32 %v2032, 16
      %v2081 = vrot.slane %v2079, 5
      %v2082 = vor.u32 %v2078, %v2081
      %v2083 = vrot.slane %v2082, 4
      %v2085 = vshll.u32 %v2041, 16
      %v2087 = vrot.slane %v2085, 5
      %v2088 = vsel %vm631, %v2083, %v2087
      %v2090 = vshrl.u32 %v2033, 16
      %v2092 = vrot.slane %v2090, 4
      %v2093 = vshll.u32 %v2033, 16
      %v2095 = vrot.slane %v2093, 5
      %v2096 = vor.u32 %v2092, %v2095
      %v2097 = vrot.slane %v2096, 4
      %v2099 = vshll.u32 %v2042, 16
      %v2101 = vrot.slane %v2099, 5
      %v2102 = vsel %vm631, %v2097, %v2101
      %v2104 = vshrl.u32 %v2034, 16
      %v2106 = vrot.slane %v2104, 4
      %v2107 = vshll.u32 %v2034, 16
      %v2109 = vrot.slane %v2107, 5
      %v2110 = vor.u32 %v2106, %v2109
      %v2111 = vrot.slane %v2110, 4
      %v2113 = vshll.u32 %v2043, 16
      %v2115 = vrot.slane %v2113, 5
      %v2116 = vsel %vm631, %v2111, %v2115
      %v2118 = vshrl.u32 %v2035, 16
      %v2120 = vrot.slane %v2118, 4
      %v2121 = vshll.u32 %v2035, 16
      %v2123 = vrot.slane %v2121, 5
      %v2124 = vor.u32 %v2120, %v2123
      %v2125 = vrot.slane %v2124, 4
      %v2127 = vshll.u32 %v2044, 16
      %v2129 = vrot.slane %v2127, 5
      %v2130 = vsel %vm631, %v2125, %v2129
      %v2132 = vshrl.u32 %v2036, 16
      %v2134 = vrot.slane %v2132, 4
      %v2135 = vshll.u32 %v2036, 16
      %v2137 = vrot.slane %v2135, 5
      %v2138 = vor.u32 %v2134, %v2137
      %v2139 = vrot.slane %v2138, 4
      %v2141 = vshll.u32 %v2045, 16
      %v2143 = vrot.slane %v2141, 5
      %v2144 = vsel %vm631, %v2139, %v2143
      %v2146 = vshrl.u32 %v2037, 16
      %v2148 = vrot.slane %v2146, 4
      %v2149 = vshll.u32 %v2037, 16
      %v2151 = vrot.slane %v2149, 5
      %v2152 = vor.u32 %v2148, %v2151
      %v2153 = vrot.slane %v2152, 4
      %v2155 = vshll.u32 %v2046, 16
      %v2157 = vrot.slane %v2155, 5
      %v2158 = vsel %vm631, %v2153, %v2157
      %s2159 = scalar_lea.vmem %s4, 4
      %v2160 = vld [vmem:[%s2159] sm:$0xf]
      %v2161 = vunpack.c.l.b16 %v2060
      %v2162 = vunpack.c.l.b16 %v2074
      %v2163 = vunpack.c.l.b16 %v2088
      %v2164 = vunpack.c.l.b16 %v2102
      %v2165 = vunpack.c.l.b16 %v2116
      %v2166 = vunpack.c.l.b16 %v2130
      %v2167 = vunpack.c.l.b16 %v2144
      %v2168 = vunpack.c.l.b16 %v2158
      %v2169 = vpack.c.b16 %v2162, %v2161
      %v2170 = vpack.c.b16 %v2164, %v2163
      %v2171 = vpack.c.b16 %v2166, %v2165
      %v2172 = vpack.c.b16 %v2168, %v2167
      %vm2173 = vcmask 64512
      %v2175 = vsel %vm2173, %v2169, 0
      %v2178 = vsel %vm2173, %v2170, 0
      %v2181 = vsel %vm2173, %v2171, 0
      %v2184 = vsel %vm2173, %v2172, 0
      %vm2186 = vcmask 1043456
      %v2188 = vsel %vm2186, %v2160, 0
      %2190 = vmatpush.bf16.msra.mxu0 0
      %2191 = vmatpush.bf16.msra.mxu0 0
      %2192 = vmatpush.bf16.msra.mxu0 0
      %2193 = vmatpush.bf16.msra.mxu0 0
      %2194 = vmatpush.bf16.msra.mxu0 0
      %2195 = vmatpush.bf16.msra.mxu0 0
      %2196 = vmatpush.bf16.msra.mxu0 0
      %2197 = vmatpush.bf16.msra.mxu0 %v2188
      %2198 = vmatmul.bf16.gmra.mxu0 %v2175
      %v2199 = vpop.f32.mrf.mxu0
      %v2200 = vadd.f32 0.0, %v2199
      %v2201 = vpop.f32.mrf.mxu0
      %v2202 = vadd.f32 0.0, %v2201
      %2203 = vmatmul.bf16.gmra.mxu0 %v2178
      %v2204 = vpop.f32.mrf.mxu0
      %v2205 = vadd.f32 0.0, %v2204
      %v2206 = vpop.f32.mrf.mxu0
      %v2207 = vadd.f32 0.0, %v2206
      %2208 = vmatmul.bf16.gmra.mxu0 %v2181
      %v2209 = vpop.f32.mrf.mxu0
      %v2210 = vadd.f32 0.0, %v2209
      %v2211 = vpop.f32.mrf.mxu0
      %v2212 = vadd.f32 0.0, %v2211
      %2213 = vmatmul.bf16.gmra.mxu0 %v2184
      %v2214 = vpop.f32.mrf.mxu0
      %v2215 = vadd.f32 0.0, %v2214
      %v2216 = vpop.f32.mrf.mxu0
      %v2217 = vadd.f32 0.0, %v2216
      %2218 = vdwg.mxu0
      %v2227 = vunpack.c.l.b16 %v2030
      %v2228 = vunpack.c.l.b16 %v2031
      %v2229 = vunpack.c.l.b16 %v2032
      %v2230 = vunpack.c.l.b16 %v2033
      %v2231 = vunpack.c.l.b16 %v2034
      %v2232 = vunpack.c.l.b16 %v2035
      %v2233 = vunpack.c.l.b16 %v2036
      %v2234 = vunpack.c.l.b16 %v2037
      %v2235 = vpack.c.b16 %v2228, %v2227
      %v2236 = vpack.c.b16 %v2230, %v2229
      %v2237 = vpack.c.b16 %v2232, %v2231
      %v2238 = vpack.c.b16 %v2234, %v2233
      %v2240 = vsel %vm2173, %v2235, 0
      %v2243 = vsel %vm2173, %v2236, 0
      %v2246 = vsel %vm2173, %v2237, 0
      %v2249 = vsel %vm2173, %v2238, 0
      %v2252 = vsel %vm2186, %v2038, 0
      %2254 = vmatpush.bf16.msra.mxu0 0
      %2255 = vmatpush.bf16.msra.mxu0 0
      %2256 = vmatpush.bf16.msra.mxu0 0
      %2257 = vmatpush.bf16.msra.mxu0 0
      %2258 = vmatpush.bf16.msra.mxu0 0
      %2259 = vmatpush.bf16.msra.mxu0 0
      %2260 = vmatpush.bf16.msra.mxu0 0
      %2261 = vmatpush.bf16.msra.mxu0 %v2252
      %2262 = vmatmul.bf16.gmra.mxu0 %v2240
      %v2263 = vpop.f32.mrf.mxu0
      %v2264 = vadd.f32 %v2200, %v2263
      %v2265 = vpop.f32.mrf.mxu0
      %v2266 = vadd.f32 %v2202, %v2265
      %2267 = vmatmul.bf16.gmra.mxu0 %v2243
      %v2268 = vpop.f32.mrf.mxu0
      %v2269 = vadd.f32 %v2205, %v2268
      %v2270 = vpop.f32.mrf.mxu0
      %v2271 = vadd.f32 %v2207, %v2270
      %2272 = vmatmul.bf16.gmra.mxu0 %v2246
      %v2273 = vpop.f32.mrf.mxu0
      %v2274 = vadd.f32 %v2210, %v2273
      %v2275 = vpop.f32.mrf.mxu0
      %v2276 = vadd.f32 %v2212, %v2275
      %2277 = vmatmul.bf16.gmra.mxu0 %v2249
      %v2278 = vpop.f32.mrf.mxu0
      %v2279 = vadd.f32 %v2215, %v2278
      %v2280 = vpop.f32.mrf.mxu0
      %v2281 = vadd.f32 %v2217, %v2280
      %2282 = vdwg.mxu0
      %v2283 = vld [vmem:[#allocation3] sm:$0xe]
      %v2284 = vld [vmem:[#allocation3 + $0x8] sm:$0xe]
      %v2285 = vld [vmem:[#allocation3 + $0x10] sm:$0xe]
      %v2286 = vld [vmem:[#allocation3 + $0x18] sm:$0xe]
      %v2287 = vld [vmem:[#allocation3 + $0x20] sm:$0xe]
      %v2288 = vld [vmem:[#allocation3 + $0x28] sm:$0xe]
      %v2289 = vld [vmem:[#allocation3 + $0x30] sm:$0xe]
      %v2290 = vld [vmem:[#allocation3 + $0x38] sm:$0xe]
      %v2307 = vrot.slane %v2283, 5
      %v2308 = vrot.slane %v2307, 4
      %v2309 = vrot.slane %v2039, 5
      %v2310 = vsel %vm893, %v2308, %v2309
      %v2311 = vrot.slane %v2284, 5
      %v2312 = vrot.slane %v2311, 4
      %v2313 = vrot.slane %v2040, 5
      %v2314 = vsel %vm893, %v2312, %v2313
      %v2315 = vrot.slane %v2285, 5
      %v2316 = vrot.slane %v2315, 4
      %v2317 = vrot.slane %v2041, 5
      %v2318 = vsel %vm893, %v2316, %v2317
      %v2319 = vrot.slane %v2286, 5
      %v2320 = vrot.slane %v2319, 4
      %v2321 = vrot.slane %v2042, 5
      %v2322 = vsel %vm893, %v2320, %v2321
      %v2323 = vrot.slane %v2287, 5
      %v2324 = vrot.slane %v2323, 4
      %v2325 = vrot.slane %v2043, 5
      %v2326 = vsel %vm893, %v2324, %v2325
      %v2327 = vrot.slane %v2288, 5
      %v2328 = vrot.slane %v2327, 4
      %v2329 = vrot.slane %v2044, 5
      %v2330 = vsel %vm893, %v2328, %v2329
      %v2331 = vrot.slane %v2289, 5
      %v2332 = vrot.slane %v2331, 4
      %v2333 = vrot.slane %v2045, 5
      %v2334 = vsel %vm893, %v2332, %v2333
      %v2335 = vrot.slane %v2290, 5
      %v2336 = vrot.slane %v2335, 4
      %v2337 = vrot.slane %v2046, 5
      %v2338 = vsel %vm893, %v2336, %v2337
      %s2339 = scalar_lea.vmem %s4, 8
      %v2340 = vld [vmem:[%s2339] sm:$0xf]
      %v2341 = vunpack.c.l.b16 %v2310
      %v2342 = vunpack.c.l.b16 %v2314
      %v2343 = vunpack.c.l.b16 %v2318
      %v2344 = vunpack.c.l.b16 %v2322
      %v2345 = vunpack.c.l.b16 %v2326
      %v2346 = vunpack.c.l.b16 %v2330
      %v2347 = vunpack.c.l.b16 %v2334
      %v2348 = vunpack.c.l.b16 %v2338
      %v2349 = vpack.c.b16 %v2342, %v2341
      %v2350 = vpack.c.b16 %v2344, %v2343
      %v2351 = vpack.c.b16 %v2346, %v2345
      %v2352 = vpack.c.b16 %v2348, %v2347
      %v2354 = vsel %vm2173, %v2349, 0
      %v2357 = vsel %vm2173, %v2350, 0
      %v2360 = vsel %vm2173, %v2351, 0
      %v2363 = vsel %vm2173, %v2352, 0
      %v2366 = vsel %vm2186, %v2340, 0
      %2368 = vmatpush.bf16.msra.mxu0 0
      %2369 = vmatpush.bf16.msra.mxu0 0
      %2370 = vmatpush.bf16.msra.mxu0 0
      %2371 = vmatpush.bf16.msra.mxu0 0
      %2372 = vmatpush.bf16.msra.mxu0 0
      %2373 = vmatpush.bf16.msra.mxu0 0
      %2374 = vmatpush.bf16.msra.mxu0 0
      %2375 = vmatpush.bf16.msra.mxu0 %v2366
      %2376 = vmatmul.bf16.gmra.mxu0 %v2354
      %v2377 = vpop.f32.mrf.mxu0
      %v2378 = vadd.f32 0.0, %v2377
      %v2379 = vpop.f32.mrf.mxu0
      %v2380 = vadd.f32 0.0, %v2379
      %2381 = vmatmul.bf16.gmra.mxu0 %v2357
      %v2382 = vpop.f32.mrf.mxu0
      %v2383 = vadd.f32 0.0, %v2382
      %v2384 = vpop.f32.mrf.mxu0
      %v2385 = vadd.f32 0.0, %v2384
      %2386 = vmatmul.bf16.gmra.mxu0 %v2360
      %v2387 = vpop.f32.mrf.mxu0
      %v2388 = vadd.f32 0.0, %v2387
      %v2389 = vpop.f32.mrf.mxu0
      %v2390 = vadd.f32 0.0, %v2389
      %2391 = vmatmul.bf16.gmra.mxu0 %v2363
      %v2392 = vpop.f32.mrf.mxu0
      %v2393 = vadd.f32 0.0, %v2392
      %v2394 = vpop.f32.mrf.mxu0
      %v2395 = vadd.f32 0.0, %v2394
      %2396 = vdwg.mxu0
      %v2397 = vadd.f32 %v2264, %v2378
      %v2398 = vadd.f32 %v2266, %v2380
      %v2399 = vadd.f32 %v2269, %v2383
      %v2400 = vadd.f32 %v2271, %v2385
      %v2401 = vadd.f32 %v2274, %v2388
      %v2402 = vadd.f32 %v2276, %v2390
      %v2403 = vadd.f32 %v2279, %v2393
      %v2404 = vadd.f32 %v2281, %v2395
      %v2405 = vld [vmem:[%s1979] sm:$0xf]
      %v2406 = vld [vmem:[%s1979 + $0x8] sm:$0xf]
      %v2407 = vld [vmem:[%s1979 + $0x10] sm:$0xf]
      %v2408 = vld [vmem:[%s1979 + $0x18] sm:$0xf]
      %v2409 = vld [vmem:[%s1979 + $0x20] sm:$0xf]
      %v2410 = vld [vmem:[%s1979 + $0x28] sm:$0xf]
      %v2411 = vld [vmem:[%s1979 + $0x30] sm:$0xf]
      %v2412 = vld [vmem:[%s1979 + $0x38] sm:$0xf]
      %s2413 = scalar_lea.vmem %s4, 12
      %v2414 = vld [vmem:[%s2413] sm:$0xf]
      %v2423 = vunpack.c.l.b16 %v2405
      %v2424 = vunpack.c.l.b16 %v2406
      %v2425 = vunpack.c.l.b16 %v2407
      %v2426 = vunpack.c.l.b16 %v2408
      %v2427 = vunpack.c.l.b16 %v2409
      %v2428 = vunpack.c.l.b16 %v2410
      %v2429 = vunpack.c.l.b16 %v2411
      %v2430 = vunpack.c.l.b16 %v2412
      %v2431 = vpack.c.b16 %v2424, %v2423
      %v2432 = vpack.c.b16 %v2426, %v2425
      %v2433 = vpack.c.b16 %v2428, %v2427
      %v2434 = vpack.c.b16 %v2430, %v2429
      %v2436 = vsel %vm2173, %v2431, 0
      %v2439 = vsel %vm2173, %v2432, 0
      %v2442 = vsel %vm2173, %v2433, 0
      %v2445 = vsel %vm2173, %v2434, 0
      %v2448 = vsel %vm2186, %v2414, 0
      %2450 = vmatpush.bf16.msra.mxu0 0
      %2451 = vmatpush.bf16.msra.mxu0 0
      %2452 = vmatpush.bf16.msra.mxu0 0
      %2453 = vmatpush.bf16.msra.mxu0 0
      %2454 = vmatpush.bf16.msra.mxu0 0
      %2455 = vmatpush.bf16.msra.mxu0 0
      %2456 = vmatpush.bf16.msra.mxu0 0
      %2457 = vmatpush.bf16.msra.mxu0 %v2448
      %2458 = vmatmul.bf16.gmra.mxu0 %v2436
      %v2459 = vpop.f32.mrf.mxu0
      %v2460 = vadd.f32 0.0, %v2459
      %v2461 = vpop.f32.mrf.mxu0
      %v2462 = vadd.f32 0.0, %v2461
      %2463 = vmatmul.bf16.gmra.mxu0 %v2439
      %v2464 = vpop.f32.mrf.mxu0
      %v2465 = vadd.f32 0.0, %v2464
      %v2466 = vpop.f32.mrf.mxu0
      %v2467 = vadd.f32 0.0, %v2466
      %2468 = vmatmul.bf16.gmra.mxu0 %v2442
      %v2469 = vpop.f32.mrf.mxu0
      %v2470 = vadd.f32 0.0, %v2469
      %v2471 = vpop.f32.mrf.mxu0
      %v2472 = vadd.f32 0.0, %v2471
      %2473 = vmatmul.bf16.gmra.mxu0 %v2445
      %v2474 = vpop.f32.mrf.mxu0
      %v2475 = vadd.f32 0.0, %v2474
      %v2476 = vpop.f32.mrf.mxu0
      %v2477 = vadd.f32 0.0, %v2476
      %2478 = vdwg.mxu0
      %v2479 = vadd.f32 %v2397, %v2460
      %v2480 = vadd.f32 %v2398, %v2462
      %v2481 = vadd.f32 %v2399, %v2465
      %v2482 = vadd.f32 %v2400, %v2467
      %v2483 = vadd.f32 %v2401, %v2470
      %v2484 = vadd.f32 %v2402, %v2472
      %v2485 = vadd.f32 %v2403, %v2475
      %v2486 = vadd.f32 %v2404, %v2477
      %v2487 = vld [vmem:[%s1979] sm:$0xf]
      %v2488 = vld [vmem:[%s1979 + $0x4] sm:$0x1]
      %v2489 = vld [vmem:[%s1979 + $0x8] sm:$0xf]
      %v2490 = vld [vmem:[%s1979 + $0xc] sm:$0x1]
      %v2491 = vld [vmem:[%s1979 + $0x10] sm:$0xf]
      %v2492 = vld [vmem:[%s1979 + $0x14] sm:$0x1]
      %v2493 = vld [vmem:[%s1979 + $0x18] sm:$0xf]
      %v2494 = vld [vmem:[%s1979 + $0x1c] sm:$0x1]
      %v2495 = vld [vmem:[%s1979 + $0x20] sm:$0xf]
      %v2496 = vld [vmem:[%s1979 + $0x24] sm:$0x1]
      %v2497 = vld [vmem:[%s1979 + $0x28] sm:$0xf]
      %v2498 = vld [vmem:[%s1979 + $0x2c] sm:$0x1]
      %v2499 = vld [vmem:[%s1979 + $0x30] sm:$0xf]
      %v2500 = vld [vmem:[%s1979 + $0x34] sm:$0x1]
      %v2501 = vld [vmem:[%s1979 + $0x38] sm:$0xf]
      %v2502 = vld [vmem:[%s1979 + $0x3c] sm:$0x1]
      %v2504 = vshrl.u32 %v2487, 16
      %v2506 = vrot.slane %v2504, 4
      %v2507 = vshll.u32 %v2487, 16
      %v2509 = vrot.slane %v2507, 5
      %v2510 = vor.u32 %v2506, %v2509
      %v2511 = vrot.slane %v2510, 4
      %v2513 = vshll.u32 %v2488, 16
      %v2515 = vrot.slane %v2513, 5
      %v2516 = vsel %vm631, %v2511, %v2515
      %v2518 = vshrl.u32 %v2489, 16
      %v2520 = vrot.slane %v2518, 4
      %v2521 = vshll.u32 %v2489, 16
      %v2523 = vrot.slane %v2521, 5
      %v2524 = vor.u32 %v2520, %v2523
      %v2525 = vrot.slane %v2524, 4
      %v2527 = vshll.u32 %v2490, 16
      %v2529 = vrot.slane %v2527, 5
      %v2530 = vsel %vm631, %v2525, %v2529
      %v2532 = vshrl.u32 %v2491, 16
      %v2534 = vrot.slane %v2532, 4
      %v2535 = vshll.u32 %v2491, 16
      %v2537 = vrot.slane %v2535, 5
      %v2538 = vor.u32 %v2534, %v2537
      %v2539 = vrot.slane %v2538, 4
      %v2541 = vshll.u32 %v2492, 16
      %v2543 = vrot.slane %v2541, 5
      %v2544 = vsel %vm631, %v2539, %v2543
      %v2546 = vshrl.u32 %v2493, 16
      %v2548 = vrot.slane %v2546, 4
      %v2549 = vshll.u32 %v2493, 16
      %v2551 = vrot.slane %v2549, 5
      %v2552 = vor.u32 %v2548, %v2551
      %v2553 = vrot.slane %v2552, 4
      %v2555 = vshll.u32 %v2494, 16
      %v2557 = vrot.slane %v2555, 5
      %v2558 = vsel %vm631, %v2553, %v2557
      %v2560 = vshrl.u32 %v2495, 16
      %v2562 = vrot.slane %v2560, 4
      %v2563 = vshll.u32 %v2495, 16
      %v2565 = vrot.slane %v2563, 5
      %v2566 = vor.u32 %v2562, %v2565
      %v2567 = vrot.slane %v2566, 4
      %v2569 = vshll.u32 %v2496, 16
      %v2571 = vrot.slane %v2569, 5
      %v2572 = vsel %vm631, %v2567, %v2571
      %v2574 = vshrl.u32 %v2497, 16
      %v2576 = vrot.slane %v2574, 4
      %v2577 = vshll.u32 %v2497, 16
      %v2579 = vrot.slane %v2577, 5
      %v2580 = vor.u32 %v2576, %v2579
      %v2581 = vrot.slane %v2580, 4
      %v2583 = vshll.u32 %v2498, 16
      %v2585 = vrot.slane %v2583, 5
      %v2586 = vsel %vm631, %v2581, %v2585
      %v2588 = vshrl.u32 %v2499, 16
      %v2590 = vrot.slane %v2588, 4
      %v2591 = vshll.u32 %v2499, 16
      %v2593 = vrot.slane %v2591, 5
      %v2594 = vor.u32 %v2590, %v2593
      %v2595 = vrot.slane %v2594, 4
      %v2597 = vshll.u32 %v2500, 16
      %v2599 = vrot.slane %v2597, 5
      %v2600 = vsel %vm631, %v2595, %v2599
      %v2602 = vshrl.u32 %v2501, 16
      %v2604 = vrot.slane %v2602, 4
      %v2605 = vshll.u32 %v2501, 16
      %v2607 = vrot.slane %v2605, 5
      %v2608 = vor.u32 %v2604, %v2607
      %v2609 = vrot.slane %v2608, 4
      %v2611 = vshll.u32 %v2502, 16
      %v2613 = vrot.slane %v2611, 5
      %v2614 = vsel %vm631, %v2609, %v2613
      %s2615 = scalar_lea.vmem %s4, 16
      %v2616 = vld [vmem:[%s2615] sm:$0xf]
      %v2617 = vunpack.c.l.b16 %v2516
      %v2618 = vunpack.c.l.b16 %v2530
      %v2619 = vunpack.c.l.b16 %v2544
      %v2620 = vunpack.c.l.b16 %v2558
      %v2621 = vunpack.c.l.b16 %v2572
      %v2622 = vunpack.c.l.b16 %v2586
      %v2623 = vunpack.c.l.b16 %v2600
      %v2624 = vunpack.c.l.b16 %v2614
      %v2625 = vpack.c.b16 %v2618, %v2617
      %v2626 = vpack.c.b16 %v2620, %v2619
      %v2627 = vpack.c.b16 %v2622, %v2621
      %v2628 = vpack.c.b16 %v2624, %v2623
      %v2630 = vsel %vm2173, %v2625, 0
      %v2633 = vsel %vm2173, %v2626, 0
      %v2636 = vsel %vm2173, %v2627, 0
      %v2639 = vsel %vm2173, %v2628, 0
      %v2642 = vsel %vm2186, %v2616, 0
      %2644 = vmatpush.bf16.msra.mxu0 0
      %2645 = vmatpush.bf16.msra.mxu0 0
      %2646 = vmatpush.bf16.msra.mxu0 0
      %2647 = vmatpush.bf16.msra.mxu0 0
      %2648 = vmatpush.bf16.msra.mxu0 0
      %2649 = vmatpush.bf16.msra.mxu0 0
      %2650 = vmatpush.bf16.msra.mxu0 0
      %2651 = vmatpush.bf16.msra.mxu0 %v2642
      %2652 = vmatmul.bf16.gmra.mxu0 %v2630
      %v2653 = vpop.f32.mrf.mxu0
      %v2654 = vadd.f32 0.0, %v2653
      %v2655 = vpop.f32.mrf.mxu0
      %v2656 = vadd.f32 0.0, %v2655
      %2657 = vmatmul.bf16.gmra.mxu0 %v2633
      %v2658 = vpop.f32.mrf.mxu0
      %v2659 = vadd.f32 0.0, %v2658
      %v2660 = vpop.f32.mrf.mxu0
      %v2661 = vadd.f32 0.0, %v2660
      %2662 = vmatmul.bf16.gmra.mxu0 %v2636
      %v2663 = vpop.f32.mrf.mxu0
      %v2664 = vadd.f32 0.0, %v2663
      %v2665 = vpop.f32.mrf.mxu0
      %v2666 = vadd.f32 0.0, %v2665
      %2667 = vmatmul.bf16.gmra.mxu0 %v2639
      %v2668 = vpop.f32.mrf.mxu0
      %v2669 = vadd.f32 0.0, %v2668
      %v2670 = vpop.f32.mrf.mxu0
      %v2671 = vadd.f32 0.0, %v2670
      %2672 = vdwg.mxu0
      %v2673 = vadd.f32 %v2479, %v2654
      %v2674 = vadd.f32 %v2480, %v2656
      %v2675 = vadd.f32 %v2481, %v2659
      %v2676 = vadd.f32 %v2482, %v2661
      %v2677 = vadd.f32 %v2483, %v2664
      %v2678 = vadd.f32 %v2484, %v2666
      %v2679 = vadd.f32 %v2485, %v2669
      %v2680 = vadd.f32 %v2486, %v2671
      %v2681 = vld [vmem:[%s1979] sm:$0xe]
      %v2682 = vld [vmem:[%s1979 + $0x8] sm:$0xe]
      %v2683 = vld [vmem:[%s1979 + $0x10] sm:$0xe]
      %v2684 = vld [vmem:[%s1979 + $0x18] sm:$0xe]
      %v2685 = vld [vmem:[%s1979 + $0x20] sm:$0xe]
      %v2686 = vld [vmem:[%s1979 + $0x28] sm:$0xe]
      %v2687 = vld [vmem:[%s1979 + $0x30] sm:$0xe]
      %v2688 = vld [vmem:[%s1979 + $0x38] sm:$0xe]
      %v2705 = vrot.slane %v2681, 5
      %v2706 = vrot.slane %v2705, 4
      %v2707 = vrot.slane %v2488, 5
      %v2708 = vsel %vm893, %v2706, %v2707
      %v2709 = vrot.slane %v2682, 5
      %v2710 = vrot.slane %v2709, 4
      %v2711 = vrot.slane %v2490, 5
      %v2712 = vsel %vm893, %v2710, %v2711
      %v2713 = vrot.slane %v2683, 5
      %v2714 = vrot.slane %v2713, 4
      %v2715 = vrot.slane %v2492, 5
      %v2716 = vsel %vm893, %v2714, %v2715
      %v2717 = vrot.slane %v2684, 5
      %v2718 = vrot.slane %v2717, 4
      %v2719 = vrot.slane %v2494, 5
      %v2720 = vsel %vm893, %v2718, %v2719
      %v2721 = vrot.slane %v2685, 5
      %v2722 = vrot.slane %v2721, 4
      %v2723 = vrot.slane %v2496, 5
      %v2724 = vsel %vm893, %v2722, %v2723
      %v2725 = vrot.slane %v2686, 5
      %v2726 = vrot.slane %v2725, 4
      %v2727 = vrot.slane %v2498, 5
      %v2728 = vsel %vm893, %v2726, %v2727
      %v2729 = vrot.slane %v2687, 5
      %v2730 = vrot.slane %v2729, 4
      %v2731 = vrot.slane %v2500, 5
      %v2732 = vsel %vm893, %v2730, %v2731
      %v2733 = vrot.slane %v2688, 5
      %v2734 = vrot.slane %v2733, 4
      %v2735 = vrot.slane %v2502, 5
      %v2736 = vsel %vm893, %v2734, %v2735
      %s2737 = scalar_lea.vmem %s4, 20
      %v2738 = vld [vmem:[%s2737] sm:$0xf]
      %v2739 = vunpack.c.l.b16 %v2708
      %v2740 = vunpack.c.l.b16 %v2712
      %v2741 = vunpack.c.l.b16 %v2716
      %v2742 = vunpack.c.l.b16 %v2720
      %v2743 = vunpack.c.l.b16 %v2724
      %v2744 = vunpack.c.l.b16 %v2728
      %v2745 = vunpack.c.l.b16 %v2732
      %v2746 = vunpack.c.l.b16 %v2736
      %v2747 = vpack.c.b16 %v2740, %v2739
      %v2748 = vpack.c.b16 %v2742, %v2741
      %v2749 = vpack.c.b16 %v2744, %v2743
      %v2750 = vpack.c.b16 %v2746, %v2745
      %v2752 = vsel %vm2173, %v2747, 0
      %v2755 = vsel %vm2173, %v2748, 0
      %v2758 = vsel %vm2173, %v2749, 0
      %v2761 = vsel %vm2173, %v2750, 0
      %v2764 = vsel %vm2186, %v2738, 0
      %2766 = vmatpush.bf16.msra.mxu0 0
      %2767 = vmatpush.bf16.msra.mxu0 0
      %2768 = vmatpush.bf16.msra.mxu0 0
      %2769 = vmatpush.bf16.msra.mxu0 0
      %2770 = vmatpush.bf16.msra.mxu0 0
      %2771 = vmatpush.bf16.msra.mxu0 0
      %2772 = vmatpush.bf16.msra.mxu0 0
      %2773 = vmatpush.bf16.msra.mxu0 %v2764
      %2774 = vmatmul.bf16.gmra.mxu0 %v2752
      %v2775 = vpop.f32.mrf.mxu0
      %v2776 = vadd.f32 0.0, %v2775
      %v2777 = vpop.f32.mrf.mxu0
      %v2778 = vadd.f32 0.0, %v2777
      %2779 = vmatmul.bf16.gmra.mxu0 %v2755
      %v2780 = vpop.f32.mrf.mxu0
      %v2781 = vadd.f32 0.0, %v2780
      %v2782 = vpop.f32.mrf.mxu0
      %v2783 = vadd.f32 0.0, %v2782
      %2784 = vmatmul.bf16.gmra.mxu0 %v2758
      %v2785 = vpop.f32.mrf.mxu0
      %v2786 = vadd.f32 0.0, %v2785
      %v2787 = vpop.f32.mrf.mxu0
      %v2788 = vadd.f32 0.0, %v2787
      %2789 = vmatmul.bf16.gmra.mxu0 %v2761
      %v2790 = vpop.f32.mrf.mxu0
      %v2791 = vadd.f32 0.0, %v2790
      %v2792 = vpop.f32.mrf.mxu0
      %v2793 = vadd.f32 0.0, %v2792
      %2794 = vdwg.mxu0
      %v2795 = vadd.f32 %v2673, %v2776
      %v2796 = vadd.f32 %v2674, %v2778
      %v2797 = vadd.f32 %v2675, %v2781
      %v2798 = vadd.f32 %v2676, %v2783
      %v2799 = vadd.f32 %v2677, %v2786
      %v2800 = vadd.f32 %v2678, %v2788
      %v2801 = vadd.f32 %v2679, %v2791
      %v2802 = vadd.f32 %v2680, %v2793
      %s2803 = scalar_lea.vmem [#allocation3], 16
      %v2804 = vld [vmem:[%s2803] sm:$0xf]
      %v2805 = vld [vmem:[%s2803 + $0x8] sm:$0xf]
      %v2806 = vld [vmem:[%s2803 + $0x10] sm:$0xf]
      %v2807 = vld [vmem:[%s2803 + $0x18] sm:$0xf]
      %v2808 = vld [vmem:[%s2803 + $0x20] sm:$0xf]
      %v2809 = vld [vmem:[%s2803 + $0x28] sm:$0xf]
      %v2810 = vld [vmem:[%s2803 + $0x30] sm:$0xf]
      %v2811 = vld [vmem:[%s2803 + $0x38] sm:$0xf]
      %s2812 = scalar_lea.vmem %s4, 24
      %v2813 = vld [vmem:[%s2812] sm:$0xf]
      %v2822 = vunpack.c.l.b16 %v2804
      %v2823 = vunpack.c.l.b16 %v2805
      %v2824 = vunpack.c.l.b16 %v2806
      %v2825 = vunpack.c.l.b16 %v2807
      %v2826 = vunpack.c.l.b16 %v2808
      %v2827 = vunpack.c.l.b16 %v2809
      %v2828 = vunpack.c.l.b16 %v2810
      %v2829 = vunpack.c.l.b16 %v2811
      %v2830 = vpack.c.b16 %v2823, %v2822
      %v2831 = vpack.c.b16 %v2825, %v2824
      %v2832 = vpack.c.b16 %v2827, %v2826
      %v2833 = vpack.c.b16 %v2829, %v2828
      %v2835 = vsel %vm2173, %v2830, 0
      %v2838 = vsel %vm2173, %v2831, 0
      %v2841 = vsel %vm2173, %v2832, 0
      %v2844 = vsel %vm2173, %v2833, 0
      %v2847 = vsel %vm2186, %v2813, 0
      %2849 = vmatpush.bf16.msra.mxu0 0
      %2850 = vmatpush.bf16.msra.mxu0 0
      %2851 = vmatpush.bf16.msra.mxu0 0
      %2852 = vmatpush.bf16.msra.mxu0 0
      %2853 = vmatpush.bf16.msra.mxu0 0
      %2854 = vmatpush.bf16.msra.mxu0 0
      %2855 = vmatpush.bf16.msra.mxu0 0
      %2856 = vmatpush.bf16.msra.mxu0 %v2847
      %2857 = vmatmul.bf16.gmra.mxu0 %v2835
      %v2858 = vpop.f32.mrf.mxu0
      %v2859 = vadd.f32 0.0, %v2858
      %v2860 = vpop.f32.mrf.mxu0
      %v2861 = vadd.f32 0.0, %v2860
      %2862 = vmatmul.bf16.gmra.mxu0 %v2838
      %v2863 = vpop.f32.mrf.mxu0
      %v2864 = vadd.f32 0.0, %v2863
      %v2865 = vpop.f32.mrf.mxu0
      %v2866 = vadd.f32 0.0, %v2865
      %2867 = vmatmul.bf16.gmra.mxu0 %v2841
      %v2868 = vpop.f32.mrf.mxu0
      %v2869 = vadd.f32 0.0, %v2868
      %v2870 = vpop.f32.mrf.mxu0
      %v2871 = vadd.f32 0.0, %v2870
      %2872 = vmatmul.bf16.gmra.mxu0 %v2844
      %v2873 = vpop.f32.mrf.mxu0
      %v2874 = vadd.f32 0.0, %v2873
      %v2875 = vpop.f32.mrf.mxu0
      %v2876 = vadd.f32 0.0, %v2875
      %2877 = vdwg.mxu0
      %v2878 = vadd.f32 %v2795, %v2859
      %v2879 = vadd.f32 %v2796, %v2861
      %v2880 = vadd.f32 %v2797, %v2864
      %v2881 = vadd.f32 %v2798, %v2866
      %v2882 = vadd.f32 %v2799, %v2869
      %v2883 = vadd.f32 %v2800, %v2871
      %v2884 = vadd.f32 %v2801, %v2874
      %v2885 = vadd.f32 %v2802, %v2876
      %v2886 = vld [vmem:[%s2803] sm:$0xf]
      %v2887 = vld [vmem:[%s2803 + $0x4] sm:$0x1]
      %v2888 = vld [vmem:[%s2803 + $0x8] sm:$0xf]
      %v2889 = vld [vmem:[%s2803 + $0xc] sm:$0x1]
      %v2890 = vld [vmem:[%s2803 + $0x10] sm:$0xf]
      %v2891 = vld [vmem:[%s2803 + $0x14] sm:$0x1]
      %v2892 = vld [vmem:[%s2803 + $0x18] sm:$0xf]
      %v2893 = vld [vmem:[%s2803 + $0x1c] sm:$0x1]
      %v2894 = vld [vmem:[%s2803 + $0x20] sm:$0xf]
      %v2895 = vld [vmem:[%s2803 + $0x24] sm:$0x1]
      %v2896 = vld [vmem:[%s2803 + $0x28] sm:$0xf]
      %v2897 = vld [vmem:[%s2803 + $0x2c] sm:$0x1]
      %v2898 = vld [vmem:[%s2803 + $0x30] sm:$0xf]
      %v2899 = vld [vmem:[%s2803 + $0x34] sm:$0x1]
      %v2900 = vld [vmem:[%s2803 + $0x38] sm:$0xf]
      %v2901 = vld [vmem:[%s2803 + $0x3c] sm:$0x1]
      %v2903 = vshrl.u32 %v2886, 16
      %v2905 = vrot.slane %v2903, 4
      %v2906 = vshll.u32 %v2886, 16
      %v2908 = vrot.slane %v2906, 5
      %v2909 = vor.u32 %v2905, %v2908
      %v2910 = vrot.slane %v2909, 4
      %v2912 = vshll.u32 %v2887, 16
      %v2914 = vrot.slane %v2912, 5
      %v2915 = vsel %vm631, %v2910, %v2914
      %v2917 = vshrl.u32 %v2888, 16
      %v2919 = vrot.slane %v2917, 4
      %v2920 = vshll.u32 %v2888, 16
      %v2922 = vrot.slane %v2920, 5
      %v2923 = vor.u32 %v2919, %v2922
      %v2924 = vrot.slane %v2923, 4
      %v2926 = vshll.u32 %v2889, 16
      %v2928 = vrot.slane %v2926, 5
      %v2929 = vsel %vm631, %v2924, %v2928
      %v2931 = vshrl.u32 %v2890, 16
      %v2933 = vrot.slane %v2931, 4
      %v2934 = vshll.u32 %v2890, 16
      %v2936 = vrot.slane %v2934, 5
      %v2937 = vor.u32 %v2933, %v2936
      %v2938 = vrot.slane %v2937, 4
      %v2940 = vshll.u32 %v2891, 16
      %v2942 = vrot.slane %v2940, 5
      %v2943 = vsel %vm631, %v2938, %v2942
      %v2945 = vshrl.u32 %v2892, 16
      %v2947 = vrot.slane %v2945, 4
      %v2948 = vshll.u32 %v2892, 16
      %v2950 = vrot.slane %v2948, 5
      %v2951 = vor.u32 %v2947, %v2950
      %v2952 = vrot.slane %v2951, 4
      %v2954 = vshll.u32 %v2893, 16
      %v2956 = vrot.slane %v2954, 5
      %v2957 = vsel %vm631, %v2952, %v2956
      %v2959 = vshrl.u32 %v2894, 16
      %v2961 = vrot.slane %v2959, 4
      %v2962 = vshll.u32 %v2894, 16
      %v2964 = vrot.slane %v2962, 5
      %v2965 = vor.u32 %v2961, %v2964
      %v2966 = vrot.slane %v2965, 4
      %v2968 = vshll.u32 %v2895, 16
      %v2970 = vrot.slane %v2968, 5
      %v2971 = vsel %vm631, %v2966, %v2970
      %v2973 = vshrl.u32 %v2896, 16
      %v2975 = vrot.slane %v2973, 4
      %v2976 = vshll.u32 %v2896, 16
      %v2978 = vrot.slane %v2976, 5
      %v2979 = vor.u32 %v2975, %v2978
      %v2980 = vrot.slane %v2979, 4
      %v2982 = vshll.u32 %v2897, 16
      %v2984 = vrot.slane %v2982, 5
      %v2985 = vsel %vm631, %v2980, %v2984
      %v2987 = vshrl.u32 %v2898, 16
      %v2989 = vrot.slane %v2987, 4
      %v2990 = vshll.u32 %v2898, 16
      %v2992 = vrot.slane %v2990, 5
      %v2993 = vor.u32 %v2989, %v2992
      %v2994 = vrot.slane %v2993, 4
      %v2996 = vshll.u32 %v2899, 16
      %v2998 = vrot.slane %v2996, 5
      %v2999 = vsel %vm631, %v2994, %v2998
      %v3001 = vshrl.u32 %v2900, 16
      %v3003 = vrot.slane %v3001, 4
      %v3004 = vshll.u32 %v2900, 16
      %v3006 = vrot.slane %v3004, 5
      %v3007 = vor.u32 %v3003, %v3006
      %v3008 = vrot.slane %v3007, 4
      %v3010 = vshll.u32 %v2901, 16
      %v3012 = vrot.slane %v3010, 5
      %v3013 = vsel %vm631, %v3008, %v3012
      %s3014 = scalar_lea.vmem %s4, 28
      %v3015 = vld [vmem:[%s3014] sm:$0xf]
      %v3016 = vunpack.c.l.b16 %v2915
      %v3017 = vunpack.c.l.b16 %v2929
      %v3018 = vunpack.c.l.b16 %v2943
      %v3019 = vunpack.c.l.b16 %v2957
      %v3020 = vunpack.c.l.b16 %v2971
      %v3021 = vunpack.c.l.b16 %v2985
      %v3022 = vunpack.c.l.b16 %v2999
      %v3023 = vunpack.c.l.b16 %v3013
      %v3024 = vpack.c.b16 %v3017, %v3016
      %v3025 = vpack.c.b16 %v3019, %v3018
      %v3026 = vpack.c.b16 %v3021, %v3020
      %v3027 = vpack.c.b16 %v3023, %v3022
      %v3029 = vsel %vm2173, %v3024, 0
      %v3032 = vsel %vm2173, %v3025, 0
      %v3035 = vsel %vm2173, %v3026, 0
      %v3038 = vsel %vm2173, %v3027, 0
      %v3041 = vsel %vm2186, %v3015, 0
      %3043 = vmatpush.bf16.msra.mxu0 0
      %3044 = vmatpush.bf16.msra.mxu0 0
      %3045 = vmatpush.bf16.msra.mxu0 0
      %3046 = vmatpush.bf16.msra.mxu0 0
      %3047 = vmatpush.bf16.msra.mxu0 0
      %3048 = vmatpush.bf16.msra.mxu0 0
      %3049 = vmatpush.bf16.msra.mxu0 0
      %3050 = vmatpush.bf16.msra.mxu0 %v3041
      %3051 = vmatmul.bf16.gmra.mxu0 %v3029
      %v3052 = vpop.f32.mrf.mxu0
      %v3053 = vadd.f32 0.0, %v3052
      %v3054 = vpop.f32.mrf.mxu0
      %v3055 = vadd.f32 0.0, %v3054
      %3056 = vmatmul.bf16.gmra.mxu0 %v3032
      %v3057 = vpop.f32.mrf.mxu0
      %v3058 = vadd.f32 0.0, %v3057
      %v3059 = vpop.f32.mrf.mxu0
      %v3060 = vadd.f32 0.0, %v3059
      %3061 = vmatmul.bf16.gmra.mxu0 %v3035
      %v3062 = vpop.f32.mrf.mxu0
      %v3063 = vadd.f32 0.0, %v3062
      %v3064 = vpop.f32.mrf.mxu0
      %v3065 = vadd.f32 0.0, %v3064
      %3066 = vmatmul.bf16.gmra.mxu0 %v3038
      %v3067 = vpop.f32.mrf.mxu0
      %v3068 = vadd.f32 0.0, %v3067
      %v3069 = vpop.f32.mrf.mxu0
      %v3070 = vadd.f32 0.0, %v3069
      %3071 = vdwg.mxu0
      %v3072 = vadd.f32 %v2878, %v3053
      %v3073 = vadd.f32 %v2879, %v3055
      %v3074 = vadd.f32 %v2880, %v3058
      %v3075 = vadd.f32 %v2881, %v3060
      %v3076 = vadd.f32 %v2882, %v3063
      %v3077 = vadd.f32 %v2883, %v3065
      %v3078 = vadd.f32 %v2884, %v3068
      %v3079 = vadd.f32 %v2885, %v3070
      %v3080 = vld [vmem:[%s2803] sm:$0xe]
      %v3081 = vld [vmem:[%s2803 + $0x8] sm:$0xe]
      %v3082 = vld [vmem:[%s2803 + $0x10] sm:$0xe]
      %v3083 = vld [vmem:[%s2803 + $0x18] sm:$0xe]
      %v3084 = vld [vmem:[%s2803 + $0x20] sm:$0xe]
      %v3085 = vld [vmem:[%s2803 + $0x28] sm:$0xe]
      %v3086 = vld [vmem:[%s2803 + $0x30] sm:$0xe]
      %v3087 = vld [vmem:[%s2803 + $0x38] sm:$0xe]
      %v3104 = vrot.slane %v3080, 5
      %v3105 = vrot.slane %v3104, 4
      %v3106 = vrot.slane %v2887, 5
      %v3107 = vsel %vm893, %v3105, %v3106
      %v3108 = vrot.slane %v3081, 5
      %v3109 = vrot.slane %v3108, 4
      %v3110 = vrot.slane %v2889, 5
      %v3111 = vsel %vm893, %v3109, %v3110
      %v3112 = vrot.slane %v3082, 5
      %v3113 = vrot.slane %v3112, 4
      %v3114 = vrot.slane %v2891, 5
      %v3115 = vsel %vm893, %v3113, %v3114
      %v3116 = vrot.slane %v3083, 5
      %v3117 = vrot.slane %v3116, 4
      %v3118 = vrot.slane %v2893, 5
      %v3119 = vsel %vm893, %v3117, %v3118
      %v3120 = vrot.slane %v3084, 5
      %v3121 = vrot.slane %v3120, 4
      %v3122 = vrot.slane %v2895, 5
      %v3123 = vsel %vm893, %v3121, %v3122
      %v3124 = vrot.slane %v3085, 5
      %v3125 = vrot.slane %v3124, 4
      %v3126 = vrot.slane %v2897, 5
      %v3127 = vsel %vm893, %v3125, %v3126
      %v3128 = vrot.slane %v3086, 5
      %v3129 = vrot.slane %v3128, 4
      %v3130 = vrot.slane %v2899, 5
      %v3131 = vsel %vm893, %v3129, %v3130
      %v3132 = vrot.slane %v3087, 5
      %v3133 = vrot.slane %v3132, 4
      %v3134 = vrot.slane %v2901, 5
      %v3135 = vsel %vm893, %v3133, %v3134
      %s3136 = scalar_lea.vmem %s4, 32
      %v3137 = vld [vmem:[%s3136] sm:$0xf]
      %v3138 = vunpack.c.l.b16 %v3107
      %v3139 = vunpack.c.l.b16 %v3111
      %v3140 = vunpack.c.l.b16 %v3115
      %v3141 = vunpack.c.l.b16 %v3119
      %v3142 = vunpack.c.l.b16 %v3123
      %v3143 = vunpack.c.l.b16 %v3127
      %v3144 = vunpack.c.l.b16 %v3131
      %v3145 = vunpack.c.l.b16 %v3135
      %v3146 = vpack.c.b16 %v3139, %v3138
      %v3147 = vpack.c.b16 %v3141, %v3140
      %v3148 = vpack.c.b16 %v3143, %v3142
      %v3149 = vpack.c.b16 %v3145, %v3144
      %v3151 = vsel %vm2173, %v3146, 0
      %v3154 = vsel %vm2173, %v3147, 0
      %v3157 = vsel %vm2173, %v3148, 0
      %v3160 = vsel %vm2173, %v3149, 0
      %v3163 = vsel %vm2186, %v3137, 0
      %3165 = vmatpush.bf16.msra.mxu0 0
      %3166 = vmatpush.bf16.msra.mxu0 0
      %3167 = vmatpush.bf16.msra.mxu0 0
      %3168 = vmatpush.bf16.msra.mxu0 0
      %3169 = vmatpush.bf16.msra.mxu0 0
      %3170 = vmatpush.bf16.msra.mxu0 0
      %3171 = vmatpush.bf16.msra.mxu0 0
      %3172 = vmatpush.bf16.msra.mxu0 %v3163
      %3173 = vmatmul.bf16.gmra.mxu0 %v3151
      %v3174 = vpop.f32.mrf.mxu0
      %v3175 = vadd.f32 0.0, %v3174
      %v3176 = vpop.f32.mrf.mxu0
      %v3177 = vadd.f32 0.0, %v3176
      %3178 = vmatmul.bf16.gmra.mxu0 %v3154
      %v3179 = vpop.f32.mrf.mxu0
      %v3180 = vadd.f32 0.0, %v3179
      %v3181 = vpop.f32.mrf.mxu0
      %v3182 = vadd.f32 0.0, %v3181
      %3183 = vmatmul.bf16.gmra.mxu0 %v3157
      %v3184 = vpop.f32.mrf.mxu0
      %v3185 = vadd.f32 0.0, %v3184
      %v3186 = vpop.f32.mrf.mxu0
      %v3187 = vadd.f32 0.0, %v3186
      %3188 = vmatmul.bf16.gmra.mxu0 %v3160
      %v3189 = vpop.f32.mrf.mxu0
      %v3190 = vadd.f32 0.0, %v3189
      %v3191 = vpop.f32.mrf.mxu0
      %v3192 = vadd.f32 0.0, %v3191
      %3193 = vdwg.mxu0
      %v3194 = vadd.f32 %v3072, %v3175
      %v3195 = vadd.f32 %v3073, %v3177
      %v3196 = vadd.f32 %v3074, %v3180
      %v3197 = vadd.f32 %v3075, %v3182
      %v3198 = vadd.f32 %v3076, %v3185
      %v3199 = vadd.f32 %v3077, %v3187
      %v3200 = vadd.f32 %v3078, %v3190
      %v3201 = vadd.f32 %v3079, %v3192
      %v3202 = vld [vmem:[%s5] sm:$0x1]
      %v3204 = vperm.slane %v3202, 0
      %v3206 = vmul.f32 %v3194, %v3204
      %v3207 = vmul.f32 %v3195, %v3204
      %v3208 = vmul.f32 %v3196, %v3204
      %v3209 = vmul.f32 %v3197, %v3204
      %v3210 = vmul.f32 %v3198, %v3204
      %v3211 = vmul.f32 %v3199, %v3204
      %v3212 = vmul.f32 %v3200, %v3204
      %v3213 = vmul.f32 %v3201, %v3204
      %v3214 = vld [vmem:[%s6] sm:$0x1]
      %v3216 = vperm.slane %v3214, 0
      %v3218 = vadd.f32 %v3206, %v3216
      %v3219 = vadd.f32 %v3207, %v3216
      %v3220 = vadd.f32 %v3208, %v3216
      %v3221 = vadd.f32 %v3209, %v3216
      %v3222 = vadd.f32 %v3210, %v3216
      %v3223 = vadd.f32 %v3211, %v3216
      %v3224 = vadd.f32 %v3212, %v3216
      %v3225 = vadd.f32 %v3213, %v3216
      %v3226 = vmax.f32 %v3218, 0.0
      %v3227 = vmax.f32 %v3219, 0.0
      %v3228 = vmax.f32 %v3220, 0.0
      %v3229 = vmax.f32 %v3221, 0.0
      %v3230 = vmax.f32 %v3222, 0.0
      %v3231 = vmax.f32 %v3223, 0.0
      %v3232 = vmax.f32 %v3224, 0.0
      %v3233 = vmax.f32 %v3225, 0.0
      %3234 = vst.msk [vmem:[%s278] sm:$0xff] %vm2173, %v3226
      %3235 = vst.msk [vmem:[%s278 + $0x8] sm:$0xff] %vm2173, %v3227
      %3236 = vst.msk [vmem:[%s278 + $0x10] sm:$0xff] %vm2173, %v3228
      %3237 = vst.msk [vmem:[%s278 + $0x18] sm:$0xff] %vm2173, %v3229
      %3238 = vst.msk [vmem:[%s278 + $0x20] sm:$0xff] %vm2173, %v3230
      %3239 = vst.msk [vmem:[%s278 + $0x28] sm:$0xff] %vm2173, %v3231
      %3240 = vst.msk [vmem:[%s278 + $0x30] sm:$0xff] %vm2173, %v3232
      %3241 = vst.msk [vmem:[%s278 + $0x38] sm:$0xff] %vm2173, %v3233
      %p3242 = scmp.lt.s32.totalorder %s18, 1
      %s3243 = scalar_select %p3242, %s18, 1
      %s3244 = smul.addr %s3243, 8
      %s3245 = smul.addr %s3244, 8
      %s3246 = scalar_lea.vmem %s7, %s3245
      // Predicated region
      $region49: #{down_forward.1} parent=47 // pred_check
        %p3247 = pneg %p188
      $region50: #{down_forward.1} parent=47 // pred_check_branch
        %3249 = sbr.rel (%p3247) target = $region52
      $region51: #{down_forward.1} parent=47 // pred_region
        _
      $region52: #{down_forward.1} parent=47 // pred_fallthru
        _
    $region48: #{down_forward.1} parent=5 // pred_fallthru
      _
    %p3250 = scmp.le.s32.totalorder 2, %s13
    // Predicated region
    $region53: #{down_forward.1} parent=5 // pred_check
      %p3251 = pneg %p3250
    $region54: #{down_forward.1} parent=5 // pred_check_branch
      %3253 = sbr.rel (%p3251) target = $region56
    $region55: #{down_forward.1} parent=5 // pred_region
      %s3254 = ssub.s32 %s13, 2
      // Predicated region
      $region57: #{down_forward.1} parent=55 // pred_check
        %p3255 = pneg %p194
      $region58: #{down_forward.1} parent=55 // pred_check_branch
        %3257 = sbr.rel (%p3255) target = $region60
      $region59: #{down_forward.1} parent=55 // pred_region
        %p3258 = scmp.lt.s32.totalorder %s19, 1
        %s3259 = scalar_select %p3258, %s19, 1
        %s3260 = smul.addr %s3259, 8
        %s3261 = smul.addr %s3260, 8
        %s3262 = scalar_lea.vmem %s7, %s3261
      $region60: #{down_forward.1} parent=55 // pred_fallthru
        _
    $region56: #{down_forward.1} parent=5 // pred_fallthru
      _
  $region6: #{down_forward.1} parent=0 // loop_footer
    %s17 = sadd.s32 1, %s13
  $region7: #{down_forward.1} parent=0 // loop_footer_branch
    %12 = sbr.rel target = $region3
  $region8: #{down_forward.1} parent=0 // loop_exit
    _

</llo_original>
